<compile_context>
chip_gen: v6e
topology: v6e:2x2x1
jax: 0.10.0
libtpu: 0.0.40
codegen_flags: <defaults>
</compile_context>

<pallas_src>
import math

import jax
import jax.numpy as jnp
from jax.experimental import pallas as pl
from jax.experimental.pallas import tpu as pltpu

_SQRT2_INV = 1.0 / math.sqrt(2.0)
_EPS = 1e-5                      # nn.GroupNorm default
MXU_DTYPE = jnp.bfloat16         # MXU operand dtype (accumulation stays f32)


def _gelu(x):
    # exact (erf-based) GELU, matching PyTorch default F.gelu / nn.GELU()
    return 0.5 * x * (1.0 + jax.lax.erf(x * _SQRT2_INV))


# ----------------------- fused DownConv Pallas kernel -----------------------

def _make_down_conv_kernel(Ho, Wo, chans, Cmax):
    """chans: tuple of (cin, cout) for the 4 conv stages (static python ints)."""
    M = Ho * Wo
    Cin0 = chans[0][0]

    def kernel(x_ref, *rest):
        p_refs = [rest[4 * s: 4 * s + 4] for s in range(4)]   # (w, b, gamma, beta) per conv
        o_ref, pad_ref, col_ref = rest[16], rest[17], rest[18]

        # Fresh zero halo border / zero im2col padding lanes for this grid step.
        # (Interior regions are always overwritten before being read.)
        pad_ref[...] = jnp.zeros_like(pad_ref)
        col_ref[...] = jnp.zeros_like(col_ref)

        # ---------------- fused 2x2 max pool ----------------
        # x_ref block is (1, Ho, 2, Wo, 2*Cin): axis 2 = even/odd row of the pool pair,
        # lanes = [even-col channels | odd-col channels].
        x_ev = x_ref[0, :, 0, :, :]                                  # (Ho, Wo, 2*Cin0)
        x_od = x_ref[0, :, 1, :, :]
        m_ev = jnp.maximum(x_ev[:, :, :Cin0], x_ev[:, :, Cin0:])
        m_od = jnp.maximum(x_od[:, :, :Cin0], x_od[:, :, Cin0:])
        pooled = jnp.maximum(m_ev, m_od).astype(jnp.float32).reshape(M, Cin0)

        # -------- one conv3x3 + GroupNorm(2) + (residual) + GELU stage --------
        def stage(x2d, cin, cout, w_ref, b_ref, g_ref, t_ref, residual=None):
            # SAME-conv halo handled in VMEM: write interior of a zero-bordered scratch.
            pad_ref[1:Ho + 1, 1:Wo + 1, 0:cin] = x2d.reshape(Ho, Wo, cin)

            # im2col: 9 shifted windows -> (M, 9*Cmax) scratch -> ONE MXU matmul.
            for di in range(3):
                for dj in range(3):
                    t = di * 3 + dj
                    col_ref[:, t * Cmax: t * Cmax + cin] = (
                        pad_ref[di:di + Ho, dj:dj + Wo, 0:cin].reshape(M, cin))
            y = jnp.dot(col_ref[...].astype(MXU_DTYPE), w_ref[...],
                        preferred_element_type=jnp.float32)          # (M, cout) f32
            y = y + b_ref[...]                                       # bias (1, cout)

            # GroupNorm(2): per-group stats from static channel-half slices
            # (biased variance over H*W*(C/2) elements, per sample).
            half = cout // 2
            inv_n = 1.0 / float(M * half)

            def _stats(v):                                           # v: (M, half)
                s = jnp.sum(jnp.sum(v, axis=1, keepdims=True), axis=0, keepdims=True)
                mu = s * inv_n
                d = v - mu
                s2 = jnp.sum(jnp.sum(d * d, axis=1, keepdims=True), axis=0, keepdims=True)
                return mu, jax.lax.rsqrt(s2 * inv_n + _EPS)

            mu0, r0 = _stats(y[:, :half])
            mu1, r1 = _stats(y[:, half:])
            lane = jax.lax.broadcasted_iota(jnp.int32, (1, cout), 1)
            in_g0 = lane < half
            mu = jnp.where(in_g0, mu0, mu1)                          # (1, cout)
            rstd = jnp.where(in_g0, r0, r1)                          # (1, cout)

            z = (y - mu) * rstd * g_ref[...] + t_ref[...]
            if residual is not None:
                z = z + residual
            return _gelu(z)                                          # (M, cout) f32

        h = pooled
        residuals = (None, pooled, None, None)   # block-1's 2nd conv adds the block input
        for s in range(4):
            cin, cout = chans[s]
            h = stage(h, cin, cout, *p_refs[s], residual=residuals[s])

        o_ref[0] = h.astype(o_ref.dtype)                             # (M, Cout)

    return kernel


def down_conv(x, params_block1, params_block2):
    """NHWC DownConv: MaxPool2d(2) -> ConvBlock(C,C,residual) -> ConvBlock(C,Cout)."""
    B, H, W, Cin = x.shape
    assert H % 2 == 0 and W % 2 == 0, "MaxPool2d(2) path assumes even H, W"
    Ho, Wo = H // 2, W // 2
    M = Ho * Wo

    w1, b1, g1, t1, w2, b2, g2, t2 = params_block1
    w3, b3, g3, t3, w4, b4, g4, t4 = params_block2
    chans = tuple((int(w.shape[2]), int(w.shape[3])) for w in (w1, w2, w3, w4))
    assert chans[0][0] == Cin and chans[1][1] == Cin   # residual path needs in == out
    Cout = chans[3][1]
    Cmax = max(c for cc in chans for c in cc)

    # Pure dim-split reshape (bitcast, no HBM copy): exposes the 2x2 pool window as
    # (rows: even/odd h) x (lanes: [even-w channels | odd-w channels]).
    x_r = x.reshape(B, Ho, 2, Wo, 2 * Cin)

    def prep_w(w):   # (3,3,cin,cout) -> (9*Cmax, cout); zero K-padding rows; bf16 operands
        cin, cout = w.shape[2], w.shape[3]
        w9 = jnp.pad(w.reshape(9, cin, cout), ((0, 0), (0, Cmax - cin), (0, 0)))
        return w9.reshape(9 * Cmax, cout).astype(MXU_DTYPE)

    def prep_v(v):   # per-channel vector -> (1, C) f32
        return v.reshape(1, -1).astype(jnp.float32)

    params = []
    for w, b, g, t in ((w1, b1, g1, t1), (w2, b2, g2, t2),
                       (w3, b3, g3, t3), (w4, b4, g4, t4)):
        params += [prep_w(w), prep_v(b), prep_v(g), prep_v(t)]

    param_specs = [pl.BlockSpec(p.shape, lambda b: (0, 0)) for p in params]

    out = pl.pallas_call(
        _make_down_conv_kernel(Ho, Wo, chans, Cmax),
        out_shape=jax.ShapeDtypeStruct((B, M, Cout), jnp.float32),
        grid=(B,),
        in_specs=[pl.BlockSpec((1, Ho, 2, Wo, 2 * Cin), lambda b: (b, 0, 0, 0, 0))]
                 + param_specs,
        out_specs=pl.BlockSpec((1, M, Cout), lambda b: (b, 0, 0)),
        scratch_shapes=[
            pltpu.VMEM((Ho + 2, Wo + 2, Cmax), jnp.float32),   # zero-halo stage input
            pltpu.VMEM((M, 9 * Cmax), jnp.float32),            # im2col matrix
        ],
        compiler_params=pltpu.CompilerParams(
            # GroupNorm stats are per-sample, so batch steps are independent:
            # shards across v7x's 2 TensorCores, harmless on v5e/v6e.
            dimension_semantics=("parallel",),
            vmem_limit_bytes=32 * 1024 * 1024,   # explicit; well inside v7x's 64 MiB VMEM
        ),
    )(x_r, *params)

    return out.reshape(B, Ho, Wo, Cout)


# --------------------------- parameter creation -----------------------------

def init_conv_params(key, cin, cout):
    kw, kb = jax.random.split(key)
    bound = 1.0 / math.sqrt(cin * 9)
    w = jax.random.uniform(kw, (3, 3, cin, cout), jnp.float32, -bound, bound)  # HWIO
    b = jax.random.uniform(kb, (cout,), jnp.float32, -bound, bound)
    return w, b


def init_gn_params(key, c):
    kg, kb = jax.random.split(key)
    gamma = 1.0 + 0.1 * jax.random.normal(kg, (c,), jnp.float32)
    beta = 0.05 * jax.random.normal(kb, (c,), jnp.float32)
    return gamma, beta


def init_conv_block(key, cin, cout):
    k1, k2, k3, k4 = jax.random.split(key, 4)
    w1, b1 = init_conv_params(k1, cin, cout)     # wide=True -> mid = out
    g1, bt1 = init_gn_params(k2, cout)
    w2, b2 = init_conv_params(k3, cout, cout)
    g2, bt2 = init_gn_params(k4, cout)
    return (w1, b1, g1, bt1, w2, b2, g2, bt2)


# ----------------------------- JAX references --------------------------------

def _ref_gn(y, gamma, beta, groups=2, eps=_EPS):
    B, H, W, C = y.shape
    yg = y.reshape(B, H, W, groups, C // groups)
    mu = jnp.mean(yg, axis=(1, 2, 4), keepdims=True)
    var = jnp.mean((yg - mu) ** 2, axis=(1, 2, 4), keepdims=True)
    yn = (yg - mu) / jnp.sqrt(var + eps)
    return yn.reshape(B, H, W, C) * gamma.reshape(1, 1, 1, -1) + beta.reshape(1, 1, 1, -1)


def _ref_conv_exact(x, w, b):
    # exact f32 conv (PyTorch semantics)
    y = jax.lax.conv_general_dilated(
        x, w, window_strides=(1, 1), padding="SAME",
        dimension_numbers=("NHWC", "HWIO", "NHWC"),
        precision=jax.lax.Precision.HIGHEST)
    return y + b.reshape(1, 1, 1, -1)


def _ref_conv_matched(x, w, b):
    # mirrors the kernel's numerics: im2col + bf16-operand matmul, f32 accumulation
    B, H, W, Cin = x.shape
    Cout = w.shape[-1]
    xp = jnp.pad(x, ((0, 0), (1, 1), (1, 1), (0, 0)))
    taps = [xp[:, di:di + H, dj:dj + W, :] for di in range(3) for dj in range(3)]
    col = jnp.concatenate(taps, axis=-1).reshape(B * H * W, 9 * Cin)
    wf = w.reshape(9 * Cin, Cout)
    y = jnp.dot(col.astype(MXU_DTYPE), wf.astype(MXU_DTYPE),
                preferred_element_type=jnp.float32)
    return y.reshape(B, H, W, Cout) + b.reshape(1, 1, 1, -1)


def _ref_block(x, p, residual, conv_fn):
    w1, b1, g1, t1, w2, b2, g2, t2 = p
    y = _gelu(_ref_gn(conv_fn(x, w1, b1), g1, t1))
    y2 = _ref_gn(conv_fn(y, w2, b2), g2, t2)
    return _gelu(x + y2) if residual else _gelu(y2)


def _ref_down_conv(x, p1, p2, matched):
    conv_fn = _ref_conv_matched if matched else _ref_conv_exact
    B, H, W, C = x.shape
    x = x.reshape(B, H // 2, 2, W // 2, 2, C).max(axis=(2, 4))
    x = _ref_block(x, p1, residual=True, conv_fn=conv_fn)
    x = _ref_block(x, p2, residual=False, conv_fn=conv_fn)
    return x


# ---------------------------------- main -------------------------------------

if __name__ == "__main__":
    B, in_dims, Hs, Ws = 2, 4, 16, 16
    out_dims = 8

    key = jax.random.PRNGKey(0)
    kx, k1, k2 = jax.random.split(key, 3)

    x_nchw = jax.random.normal(kx, (B, in_dims, Hs, Ws), jnp.float32)  # PyTorch NCHW input
    x = jnp.transpose(x_nchw, (0, 2, 3, 1))                            # -> NHWC

    params_block1 = init_conv_block(k1, in_dims, in_dims)   # ConvBlock(in, in), residual
    params_block2 = init_conv_block(k2, in_dims, out_dims)  # ConvBlock(in, out), no residual

    out = jax.block_until_ready(down_conv(x, params_block1, params_block2))
    assert out.shape == (B, Hs // 2, Ws // 2, out_dims), out.shape

    # (1) tight check vs a JAX reference that mirrors the kernel numerics (bf16 MXU operands)
    ref_m = jax.block_until_ready(_ref_down_conv(x, params_block1, params_block2, matched=True))
    err_m = float(jnp.max(jnp.abs(out - ref_m)))
    assert jnp.allclose(out, ref_m, atol=2e-3, rtol=2e-3), f"matched-ref max abs err {err_m}"

    # (2) loose check vs the exact f32 (PyTorch-semantics) reference; slack covers the
    #     bf16 MXU-operand rounding accumulated over the 4 conv + GroupNorm stages.
    ref_e = jax.block_until_ready(_ref_down_conv(x, params_block1, params_block2, matched=False))
    err_e = float(jnp.max(jnp.abs(out - ref_e)))
    assert jnp.allclose(out, ref_e, atol=5e-2, rtol=5e-2), f"exact-ref max abs err {err_e}"

    print("KERNEL_OK")
</pallas_src>

<mosaic_0001>
module attributes {stable_mosaic.version = 11 : i64} {
  func.func @kernel(%arg0: i32, %arg1: memref<1x8x2x8x8xf32, #tpu.memory_space<vmem>>, %arg2: memref<72x4xbf16, #tpu.memory_space<vmem>>, %arg3: memref<1x4xf32, #tpu.memory_space<vmem>>, %arg4: memref<1x4xf32, #tpu.memory_space<vmem>>, %arg5: memref<1x4xf32, #tpu.memory_space<vmem>>, %arg6: memref<72x4xbf16, #tpu.memory_space<vmem>>, %arg7: memref<1x4xf32, #tpu.memory_space<vmem>>, %arg8: memref<1x4xf32, #tpu.memory_space<vmem>>, %arg9: memref<1x4xf32, #tpu.memory_space<vmem>>, %arg10: memref<72x8xbf16, #tpu.memory_space<vmem>>, %arg11: memref<1x8xf32, #tpu.memory_space<vmem>>, %arg12: memref<1x8xf32, #tpu.memory_space<vmem>>, %arg13: memref<1x8xf32, #tpu.memory_space<vmem>>, %arg14: memref<72x8xbf16, #tpu.memory_space<vmem>>, %arg15: memref<1x8xf32, #tpu.memory_space<vmem>>, %arg16: memref<1x8xf32, #tpu.memory_space<vmem>>, %arg17: memref<1x8xf32, #tpu.memory_space<vmem>>, %arg18: memref<1x64x8xf32, #tpu.memory_space<vmem>>, %arg19: memref<10x10x8xf32, #tpu.memory_space<vmem>>, %arg20: memref<64x72xf32, #tpu.memory_space<vmem>>) attributes {dimension_semantics = [#tpu.dimension_semantics<parallel>], iteration_bounds = array<i64: 2>, scalar_prefetch = 0 : i64, scratch_operands = 2 : i64, tpu.core_type = #tpu.core_type<tc>, window_params = [{transform_indices = @transform_0, window_bounds = array<i64: 1, 8, 2, 8, 8>}, {pipeline_mode = #tpu.pipeline_mode<synchronous>, transform_indices = @transform_1, window_bounds = array<i64: 72, 4>}, {pipeline_mode = #tpu.pipeline_mode<synchronous>, transform_indices = @transform_2, window_bounds = array<i64: 1, 4>}, {pipeline_mode = #tpu.pipeline_mode<synchronous>, transform_indices = @transform_3, window_bounds = array<i64: 1, 4>}, {pipeline_mode = #tpu.pipeline_mode<synchronous>, transform_indices = @transform_4, window_bounds = array<i64: 1, 4>}, {pipeline_mode = #tpu.pipeline_mode<synchronous>, transform_indices = @transform_5, window_bounds = array<i64: 72, 4>}, {pipeline_mode = #tpu.pipeline_mode<synchronous>, transform_indices = @transform_6, window_bounds = array<i64: 1, 4>}, {pipeline_mode = #tpu.pipeline_mode<synchronous>, transform_indices = @transform_7, window_bounds = array<i64: 1, 4>}, {pipeline_mode = #tpu.pipeline_mode<synchronous>, transform_indices = @transform_8, window_bounds = array<i64: 1, 4>}, {pipeline_mode = #tpu.pipeline_mode<synchronous>, transform_indices = @transform_9, window_bounds = array<i64: 72, 8>}, {pipeline_mode = #tpu.pipeline_mode<synchronous>, transform_indices = @transform_10, window_bounds = array<i64: 1, 8>}, {pipeline_mode = #tpu.pipeline_mode<synchronous>, transform_indices = @transform_11, window_bounds = array<i64: 1, 8>}, {pipeline_mode = #tpu.pipeline_mode<synchronous>, transform_indices = @transform_12, window_bounds = array<i64: 1, 8>}, {pipeline_mode = #tpu.pipeline_mode<synchronous>, transform_indices = @transform_13, window_bounds = array<i64: 72, 8>}, {pipeline_mode = #tpu.pipeline_mode<synchronous>, transform_indices = @transform_14, window_bounds = array<i64: 1, 8>}, {pipeline_mode = #tpu.pipeline_mode<synchronous>, transform_indices = @transform_15, window_bounds = array<i64: 1, 8>}, {pipeline_mode = #tpu.pipeline_mode<synchronous>, transform_indices = @transform_16, window_bounds = array<i64: 1, 8>}, {transform_indices = @transform_17, window_bounds = array<i64: 1, 64, 8>}]} {
    %cst = arith.constant 0.000000e+00 : f32
    %0 = vector.broadcast %cst : f32 to vector<10x10x8xf32>
    %c0 = arith.constant 0 : index
    %c0_0 = arith.constant 0 : index
    %c0_1 = arith.constant 0 : index
    %1 = vector.load %arg19[%c0, %c0_0, %c0_1] : memref<10x10x8xf32, #tpu.memory_space<vmem>>, vector<10x10x8xf32>
    tpu.vector_store %arg19[%c0, %c0_0, %c0_1], %0 {strides = array<i32>} : memref<10x10x8xf32, #tpu.memory_space<vmem>>, vector<10x10x8xf32>,
    %cst_2 = arith.constant 0.000000e+00 : f32
    %2 = vector.broadcast %cst_2 : f32 to vector<64x72xf32>
    %c0_3 = arith.constant 0 : index
    %c0_4 = arith.constant 0 : index
    %3 = vector.load %arg20[%c0_3, %c0_4] : memref<64x72xf32, #tpu.memory_space<vmem>>, vector<64x72xf32>
    tpu.vector_store %arg20[%c0_3, %c0_4], %2 {strides = array<i32>} : memref<64x72xf32, #tpu.memory_space<vmem>>, vector<64x72xf32>,
    %c0_5 = arith.constant 0 : index
    %c0_6 = arith.constant 0 : index
    %c0_7 = arith.constant 0 : index
    %c0_8 = arith.constant 0 : index
    %c0_9 = arith.constant 0 : index
    %4 = vector.load %arg1[%c0_5, %c0_6, %c0_7, %c0_8, %c0_9] : memref<1x8x2x8x8xf32, #tpu.memory_space<vmem>>, vector<1x8x1x8x8xf32>
    %5 = vector.shape_cast %4 : vector<1x8x1x8x8xf32> to vector<8x8x8xf32>
    %c0_10 = arith.constant 0 : index
    %c0_11 = arith.constant 0 : index
    %c1 = arith.constant 1 : index
    %c0_12 = arith.constant 0 : index
    %c0_13 = arith.constant 0 : index
    %6 = vector.load %arg1[%c0_10, %c0_11, %c1, %c0_12, %c0_13] : memref<1x8x2x8x8xf32, #tpu.memory_space<vmem>>, vector<1x8x1x8x8xf32>
    %7 = vector.shape_cast %6 : vector<1x8x1x8x8xf32> to vector<8x8x8xf32>
    %8 = vector.extract_strided_slice %5 {offsets = [0, 0, 0], sizes = [8, 8, 4], strides = [1, 1, 1]} : vector<8x8x8xf32> to vector<8x8x4xf32>
    %9 = vector.extract_strided_slice %5 {offsets = [0, 0, 4], sizes = [8, 8, 4], strides = [1, 1, 1]} : vector<8x8x8xf32> to vector<8x8x4xf32>
    %10 = arith.maximumf %8, %9 : vector<8x8x4xf32>
    %11 = vector.extract_strided_slice %7 {offsets = [0, 0, 0], sizes = [8, 8, 4], strides = [1, 1, 1]} : vector<8x8x8xf32> to vector<8x8x4xf32>
    %12 = vector.extract_strided_slice %7 {offsets = [0, 0, 4], sizes = [8, 8, 4], strides = [1, 1, 1]} : vector<8x8x8xf32> to vector<8x8x4xf32>
    %13 = arith.maximumf %11, %12 : vector<8x8x4xf32>
    %14 = arith.maximumf %10, %13 : vector<8x8x4xf32>
    %15 = vector.shape_cast %14 : vector<8x8x4xf32> to vector<64x4xf32>
    %16 = vector.shape_cast %15 : vector<64x4xf32> to vector<8x8x4xf32>
    %c1_14 = arith.constant 1 : index
    %c1_15 = arith.constant 1 : index
    %c0_16 = arith.constant 0 : index
    %17 = vector.load %arg19[%c1_14, %c1_15, %c0_16] : memref<10x10x8xf32, #tpu.memory_space<vmem>>, vector<8x8x4xf32>
    tpu.vector_store %arg19[%c1_14, %c1_15, %c0_16], %16 {strides = array<i32>} : memref<10x10x8xf32, #tpu.memory_space<vmem>>, vector<8x8x4xf32>,
    %c0_17 = arith.constant 0 : index
    %c0_18 = arith.constant 0 : index
    %c0_19 = arith.constant 0 : index
    %18 = vector.load %arg19[%c0_17, %c0_18, %c0_19] : memref<10x10x8xf32, #tpu.memory_space<vmem>>, vector<8x8x4xf32>
    %19 = vector.shape_cast %18 : vector<8x8x4xf32> to vector<64x4xf32>
    %c0_20 = arith.constant 0 : index
    %c0_21 = arith.constant 0 : index
    %20 = vector.load %arg20[%c0_20, %c0_21] : memref<64x72xf32, #tpu.memory_space<vmem>>, vector<64x4xf32>
    tpu.vector_store %arg20[%c0_20, %c0_21], %19 {strides = array<i32>} : memref<64x72xf32, #tpu.memory_space<vmem>>, vector<64x4xf32>,
    %c0_22 = arith.constant 0 : index
    %c1_23 = arith.constant 1 : index
    %c0_24 = arith.constant 0 : index
    %21 = vector.load %arg19[%c0_22, %c1_23, %c0_24] : memref<10x10x8xf32, #tpu.memory_space<vmem>>, vector<8x8x4xf32>
    %22 = vector.shape_cast %21 : vector<8x8x4xf32> to vector<64x4xf32>
    %c0_25 = arith.constant 0 : index
    %c8 = arith.constant 8 : index
    %23 = vector.load %arg20[%c0_25, %c8] : memref<64x72xf32, #tpu.memory_space<vmem>>, vector<64x4xf32>
    tpu.vector_store %arg20[%c0_25, %c8], %22 {strides = array<i32>} : memref<64x72xf32, #tpu.memory_space<vmem>>, vector<64x4xf32>,
    %c0_26 = arith.constant 0 : index
    %c2 = arith.constant 2 : index
    %c0_27 = arith.constant 0 : index
    %24 = vector.load %arg19[%c0_26, %c2, %c0_27] : memref<10x10x8xf32, #tpu.memory_space<vmem>>, vector<8x8x4xf32>
    %25 = vector.shape_cast %24 : vector<8x8x4xf32> to vector<64x4xf32>
    %c0_28 = arith.constant 0 : index
    %c16 = arith.constant 16 : index
    %26 = vector.load %arg20[%c0_28, %c16] : memref<64x72xf32, #tpu.memory_space<vmem>>, vector<64x4xf32>
    tpu.vector_store %arg20[%c0_28, %c16], %25 {strides = array<i32>} : memref<64x72xf32, #tpu.memory_space<vmem>>, vector<64x4xf32>,
    %c1_29 = arith.constant 1 : index
    %c0_30 = arith.constant 0 : index
    %c0_31 = arith.constant 0 : index
    %27 = vector.load %arg19[%c1_29, %c0_30, %c0_31] : memref<10x10x8xf32, #tpu.memory_space<vmem>>, vector<8x8x4xf32>
    %28 = vector.shape_cast %27 : vector<8x8x4xf32> to vector<64x4xf32>
    %c0_32 = arith.constant 0 : index
    %c24 = arith.constant 24 : index
    %29 = vector.load %arg20[%c0_32, %c24] : memref<64x72xf32, #tpu.memory_space<vmem>>, vector<64x4xf32>
    tpu.vector_store %arg20[%c0_32, %c24], %28 {strides = array<i32>} : memref<64x72xf32, #tpu.memory_space<vmem>>, vector<64x4xf32>,
    %c1_33 = arith.constant 1 : index
    %c1_34 = arith.constant 1 : index
    %c0_35 = arith.constant 0 : index
    %30 = vector.load %arg19[%c1_33, %c1_34, %c0_35] : memref<10x10x8xf32, #tpu.memory_space<vmem>>, vector<8x8x4xf32>
    %31 = vector.shape_cast %30 : vector<8x8x4xf32> to vector<64x4xf32>
    %c0_36 = arith.constant 0 : index
    %c32 = arith.constant 32 : index
    %32 = vector.load %arg20[%c0_36, %c32] : memref<64x72xf32, #tpu.memory_space<vmem>>, vector<64x4xf32>
    tpu.vector_store %arg20[%c0_36, %c32], %31 {strides = array<i32>} : memref<64x72xf32, #tpu.memory_space<vmem>>, vector<64x4xf32>,
    %c1_37 = arith.constant 1 : index
    %c2_38 = arith.constant 2 : index
    %c0_39 = arith.constant 0 : index
    %33 = vector.load %arg19[%c1_37, %c2_38, %c0_39] : memref<10x10x8xf32, #tpu.memory_space<vmem>>, vector<8x8x4xf32>
    %34 = vector.shape_cast %33 : vector<8x8x4xf32> to vector<64x4xf32>
    %c0_40 = arith.constant 0 : index
    %c40 = arith.constant 40 : index
    %35 = vector.load %arg20[%c0_40, %c40] : memref<64x72xf32, #tpu.memory_space<vmem>>, vector<64x4xf32>
    tpu.vector_store %arg20[%c0_40, %c40], %34 {strides = array<i32>} : memref<64x72xf32, #tpu.memory_space<vmem>>, vector<64x4xf32>,
    %c2_41 = arith.constant 2 : index
    %c0_42 = arith.constant 0 : index
    %c0_43 = arith.constant 0 : index
    %36 = vector.load %arg19[%c2_41, %c0_42, %c0_43] : memref<10x10x8xf32, #tpu.memory_space<vmem>>, vector<8x8x4xf32>
    %37 = vector.shape_cast %36 : vector<8x8x4xf32> to vector<64x4xf32>
    %c0_44 = arith.constant 0 : index
    %c48 = arith.constant 48 : index
    %38 = vector.load %arg20[%c0_44, %c48] : memref<64x72xf32, #tpu.memory_space<vmem>>, vector<64x4xf32>
    tpu.vector_store %arg20[%c0_44, %c48], %37 {strides = array<i32>} : memref<64x72xf32, #tpu.memory_space<vmem>>, vector<64x4xf32>,
    %c2_45 = arith.constant 2 : index
    %c1_46 = arith.constant 1 : index
    %c0_47 = arith.constant 0 : index
    %39 = vector.load %arg19[%c2_45, %c1_46, %c0_47] : memref<10x10x8xf32, #tpu.memory_space<vmem>>, vector<8x8x4xf32>
    %40 = vector.shape_cast %39 : vector<8x8x4xf32> to vector<64x4xf32>
    %c0_48 = arith.constant 0 : index
    %c56 = arith.constant 56 : index
    %41 = vector.load %arg20[%c0_48, %c56] : memref<64x72xf32, #tpu.memory_space<vmem>>, vector<64x4xf32>
    tpu.vector_store %arg20[%c0_48, %c56], %40 {strides = array<i32>} : memref<64x72xf32, #tpu.memory_space<vmem>>, vector<64x4xf32>,
    %c2_49 = arith.constant 2 : index
    %c2_50 = arith.constant 2 : index
    %c0_51 = arith.constant 0 : index
    %42 = vector.load %arg19[%c2_49, %c2_50, %c0_51] : memref<10x10x8xf32, #tpu.memory_space<vmem>>, vector<8x8x4xf32>
    %43 = vector.shape_cast %42 : vector<8x8x4xf32> to vector<64x4xf32>
    %c0_52 = arith.constant 0 : index
    %c64 = arith.constant 64 : index
    %44 = vector.load %arg20[%c0_52, %c64] : memref<64x72xf32, #tpu.memory_space<vmem>>, vector<64x4xf32>
    tpu.vector_store %arg20[%c0_52, %c64], %43 {strides = array<i32>} : memref<64x72xf32, #tpu.memory_space<vmem>>, vector<64x4xf32>,
    %c0_53 = arith.constant 0 : index
    %c0_54 = arith.constant 0 : index
    %45 = vector.load %arg20[%c0_53, %c0_54] : memref<64x72xf32, #tpu.memory_space<vmem>>, vector<64x72xf32>
    %46 = arith.truncf %45 : vector<64x72xf32> to vector<64x72xbf16>
    %c0_55 = arith.constant 0 : index
    %c0_56 = arith.constant 0 : index
    %47 = vector.load %arg2[%c0_55, %c0_56] : memref<72x4xbf16, #tpu.memory_space<vmem>>, vector<72x4xbf16>
    %cst_57 = arith.constant dense<0.000000e+00> : vector<64x4xf32>
    %48 = tpu.matmul %46, %47, %cst_57 {dimension_numbers = #tpu.dot_dimension_numbers<[1], [0], [0], [1], [0, 0, 1, 1], [], []>} : vector<64x72xbf16>, vector<72x4xbf16>, vector<64x4xf32> -> vector<64x4xf32>
    %c0_58 = arith.constant 0 : index
    %c0_59 = arith.constant 0 : index
    %49 = vector.load %arg3[%c0_58, %c0_59] : memref<1x4xf32, #tpu.memory_space<vmem>>, vector<1x4xf32>
    %50 = vector.broadcast %49 : vector<1x4xf32> to vector<64x4xf32>
    %51 = arith.addf %48, %50 : vector<64x4xf32>
    %52 = vector.extract_strided_slice %51 {offsets = [0, 0], sizes = [64, 2], strides = [1, 1]} : vector<64x4xf32> to vector<64x2xf32>
    %cst_60 = arith.constant dense<0.000000e+00> : vector<64xf32>
    %53 = vector.multi_reduction <add>, %52, %cst_60 [1] : vector<64x2xf32> to vector<64xf32>
    %54 = vector.shape_cast %53 : vector<64xf32> to vector<64x1xf32>
    %cst_61 = arith.constant dense<0.000000e+00> : vector<1xf32>
    %55 = vector.multi_reduction <add>, %54, %cst_61 [0] : vector<64x1xf32> to vector<1xf32>
    %56 = vector.shape_cast %55 : vector<1xf32> to vector<1x1xf32>
    %cst_62 = arith.constant 7.812500e-03 : f32
    %57 = vector.broadcast %cst_62 : f32 to vector<1x1xf32>
    %58 = arith.mulf %56, %57 : vector<1x1xf32>
    %59 = vector.broadcast %58 : vector<1x1xf32> to vector<64x2xf32>
    %60 = arith.subf %52, %59 : vector<64x2xf32>
    %61 = arith.mulf %60, %60 : vector<64x2xf32>
    %cst_63 = arith.constant dense<0.000000e+00> : vector<64xf32>
    %62 = vector.multi_reduction <add>, %61, %cst_63 [1] : vector<64x2xf32> to vector<64xf32>
    %63 = vector.shape_cast %62 : vector<64xf32> to vector<64x1xf32>
    %cst_64 = arith.constant dense<0.000000e+00> : vector<1xf32>
    %64 = vector.multi_reduction <add>, %63, %cst_64 [0] : vector<64x1xf32> to vector<1xf32>
    %65 = vector.shape_cast %64 : vector<1xf32> to vector<1x1xf32>
    %cst_65 = arith.constant 7.812500e-03 : f32
    %66 = vector.broadcast %cst_65 : f32 to vector<1x1xf32>
    %67 = arith.mulf %65, %66 : vector<1x1xf32>
    %cst_66 = arith.constant 9.99999974E-6 : f32
    %68 = vector.broadcast %cst_66 : f32 to vector<1x1xf32>
    %69 = arith.addf %67, %68 : vector<1x1xf32>
    %70 = math.rsqrt %69 : vector<1x1xf32>
    %71 = vector.extract_strided_slice %51 {offsets = [0, 2], sizes = [64, 2], strides = [1, 1]} : vector<64x4xf32> to vector<64x2xf32>
    %cst_67 = arith.constant dense<0.000000e+00> : vector<64xf32>
    %72 = vector.multi_reduction <add>, %71, %cst_67 [1] : vector<64x2xf32> to vector<64xf32>
    %73 = vector.shape_cast %72 : vector<64xf32> to vector<64x1xf32>
    %cst_68 = arith.constant dense<0.000000e+00> : vector<1xf32>
    %74 = vector.multi_reduction <add>, %73, %cst_68 [0] : vector<64x1xf32> to vector<1xf32>
    %75 = vector.shape_cast %74 : vector<1xf32> to vector<1x1xf32>
    %cst_69 = arith.constant 7.812500e-03 : f32
    %76 = vector.broadcast %cst_69 : f32 to vector<1x1xf32>
    %77 = arith.mulf %75, %76 : vector<1x1xf32>
    %78 = vector.broadcast %77 : vector<1x1xf32> to vector<64x2xf32>
    %79 = arith.subf %71, %78 : vector<64x2xf32>
    %80 = arith.mulf %79, %79 : vector<64x2xf32>
    %cst_70 = arith.constant dense<0.000000e+00> : vector<64xf32>
    %81 = vector.multi_reduction <add>, %80, %cst_70 [1] : vector<64x2xf32> to vector<64xf32>
    %82 = vector.shape_cast %81 : vector<64xf32> to vector<64x1xf32>
    %cst_71 = arith.constant dense<0.000000e+00> : vector<1xf32>
    %83 = vector.multi_reduction <add>, %82, %cst_71 [0] : vector<64x1xf32> to vector<1xf32>
    %84 = vector.shape_cast %83 : vector<1xf32> to vector<1x1xf32>
    %cst_72 = arith.constant 7.812500e-03 : f32
    %85 = vector.broadcast %cst_72 : f32 to vector<1x1xf32>
    %86 = arith.mulf %84, %85 : vector<1x1xf32>
    %cst_73 = arith.constant 9.99999974E-6 : f32
    %87 = vector.broadcast %cst_73 : f32 to vector<1x1xf32>
    %88 = arith.addf %86, %87 : vector<1x1xf32>
    %89 = math.rsqrt %88 : vector<1x1xf32>
    %90 = tpu.iota {dimensions = array<i32: 1>} : vector<1x4xi32>
    %c2_i32 = arith.constant 2 : i32
    %91 = vector.broadcast %c2_i32 : i32 to vector<1x4xi32>
    %92 = arith.cmpi slt, %90, %91 : vector<1x4xi32>
    %93 = vector.shape_cast %58 : vector<1x1xf32> to vector<1x1xf32>
    %94 = vector.broadcast %93 : vector<1x1xf32> to vector<1x4xf32>
    %95 = vector.shape_cast %77 : vector<1x1xf32> to vector<1x1xf32>
    %96 = vector.broadcast %95 : vector<1x1xf32> to vector<1x4xf32>
    %97 = arith.select %92, %94, %96 : vector<1x4xi1>, vector<1x4xf32>
    %98 = vector.shape_cast %70 : vector<1x1xf32> to vector<1x1xf32>
    %99 = vector.broadcast %98 : vector<1x1xf32> to vector<1x4xf32>
    %100 = vector.shape_cast %89 : vector<1x1xf32> to vector<1x1xf32>
    %101 = vector.broadcast %100 : vector<1x1xf32> to vector<1x4xf32>
    %102 = arith.select %92, %99, %101 : vector<1x4xi1>, vector<1x4xf32>
    %103 = vector.broadcast %97 : vector<1x4xf32> to vector<64x4xf32>
    %104 = arith.subf %51, %103 : vector<64x4xf32>
    %105 = vector.broadcast %102 : vector<1x4xf32> to vector<64x4xf32>
    %106 = arith.mulf %104, %105 : vector<64x4xf32>
    %c0_74 = arith.constant 0 : index
    %c0_75 = arith.constant 0 : index
    %107 = vector.load %arg4[%c0_74, %c0_75] : memref<1x4xf32, #tpu.memory_space<vmem>>, vector<1x4xf32>
    %108 = vector.broadcast %107 : vector<1x4xf32> to vector<64x4xf32>
    %109 = arith.mulf %106, %108 : vector<64x4xf32>
    %c0_76 = arith.constant 0 : index
    %c0_77 = arith.constant 0 : index
    %110 = vector.load %arg5[%c0_76, %c0_77] : memref<1x4xf32, #tpu.memory_space<vmem>>, vector<1x4xf32>
    %111 = vector.broadcast %110 : vector<1x4xf32> to vector<64x4xf32>
    %112 = arith.addf %109, %111 : vector<64x4xf32>
    %cst_78 = arith.constant 5.000000e-01 : f32
    %113 = vector.broadcast %cst_78 : f32 to vector<64x4xf32>
    %114 = arith.mulf %113, %112 : vector<64x4xf32>
    %cst_79 = arith.constant 0.707106769 : f32
    %115 = vector.broadcast %cst_79 : f32 to vector<64x4xf32>
    %116 = arith.mulf %112, %115 : vector<64x4xf32>
    %117 = math.erf %116 : vector<64x4xf32>
    %cst_80 = arith.constant 1.000000e+00 : f32
    %118 = vector.broadcast %cst_80 : f32 to vector<64x4xf32>
    %119 = arith.addf %118, %117 : vector<64x4xf32>
    %120 = arith.mulf %114, %119 : vector<64x4xf32>
    %121 = vector.shape_cast %120 : vector<64x4xf32> to vector<8x8x4xf32>
    %c1_81 = arith.constant 1 : index
    %c1_82 = arith.constant 1 : index
    %c0_83 = arith.constant 0 : index
    %122 = vector.load %arg19[%c1_81, %c1_82, %c0_83] : memref<10x10x8xf32, #tpu.memory_space<vmem>>, vector<8x8x4xf32>
    tpu.vector_store %arg19[%c1_81, %c1_82, %c0_83], %121 {strides = array<i32>} : memref<10x10x8xf32, #tpu.memory_space<vmem>>, vector<8x8x4xf32>,
    %c0_84 = arith.constant 0 : index
    %c0_85 = arith.constant 0 : index
    %c0_86 = arith.constant 0 : index
    %123 = vector.load %arg19[%c0_84, %c0_85, %c0_86] : memref<10x10x8xf32, #tpu.memory_space<vmem>>, vector<8x8x4xf32>
    %124 = vector.shape_cast %123 : vector<8x8x4xf32> to vector<64x4xf32>
    %c0_87 = arith.constant 0 : index
    %c0_88 = arith.constant 0 : index
    %125 = vector.load %arg20[%c0_87, %c0_88] : memref<64x72xf32, #tpu.memory_space<vmem>>, vector<64x4xf32>
    tpu.vector_store %arg20[%c0_87, %c0_88], %124 {strides = array<i32>} : memref<64x72xf32, #tpu.memory_space<vmem>>, vector<64x4xf32>,
    %c0_89 = arith.constant 0 : index
    %c1_90 = arith.constant 1 : index
    %c0_91 = arith.constant 0 : index
    %126 = vector.load %arg19[%c0_89, %c1_90, %c0_91] : memref<10x10x8xf32, #tpu.memory_space<vmem>>, vector<8x8x4xf32>
    %127 = vector.shape_cast %126 : vector<8x8x4xf32> to vector<64x4xf32>
    %c0_92 = arith.constant 0 : index
    %c8_93 = arith.constant 8 : index
    %128 = vector.load %arg20[%c0_92, %c8_93] : memref<64x72xf32, #tpu.memory_space<vmem>>, vector<64x4xf32>
    tpu.vector_store %arg20[%c0_92, %c8_93], %127 {strides = array<i32>} : memref<64x72xf32, #tpu.memory_space<vmem>>, vector<64x4xf32>,
    %c0_94 = arith.constant 0 : index
    %c2_95 = arith.constant 2 : index
    %c0_96 = arith.constant 0 : index
    %129 = vector.load %arg19[%c0_94, %c2_95, %c0_96] : memref<10x10x8xf32, #tpu.memory_space<vmem>>, vector<8x8x4xf32>
    %130 = vector.shape_cast %129 : vector<8x8x4xf32> to vector<64x4xf32>
    %c0_97 = arith.constant 0 : index
    %c16_98 = arith.constant 16 : index
    %131 = vector.load %arg20[%c0_97, %c16_98] : memref<64x72xf32, #tpu.memory_space<vmem>>, vector<64x4xf32>
    tpu.vector_store %arg20[%c0_97, %c16_98], %130 {strides = array<i32>} : memref<64x72xf32, #tpu.memory_space<vmem>>, vector<64x4xf32>,
    %c1_99 = arith.constant 1 : index
    %c0_100 = arith.constant 0 : index
    %c0_101 = arith.constant 0 : index
    %132 = vector.load %arg19[%c1_99, %c0_100, %c0_101] : memref<10x10x8xf32, #tpu.memory_space<vmem>>, vector<8x8x4xf32>
    %133 = vector.shape_cast %132 : vector<8x8x4xf32> to vector<64x4xf32>
    %c0_102 = arith.constant 0 : index
    %c24_103 = arith.constant 24 : index
    %134 = vector.load %arg20[%c0_102, %c24_103] : memref<64x72xf32, #tpu.memory_space<vmem>>, vector<64x4xf32>
    tpu.vector_store %arg20[%c0_102, %c24_103], %133 {strides = array<i32>} : memref<64x72xf32, #tpu.memory_space<vmem>>, vector<64x4xf32>,
    %c1_104 = arith.constant 1 : index
    %c1_105 = arith.constant 1 : index
    %c0_106 = arith.constant 0 : index
    %135 = vector.load %arg19[%c1_104, %c1_105, %c0_106] : memref<10x10x8xf32, #tpu.memory_space<vmem>>, vector<8x8x4xf32>
    %136 = vector.shape_cast %135 : vector<8x8x4xf32> to vector<64x4xf32>
    %c0_107 = arith.constant 0 : index
    %c32_108 = arith.constant 32 : index
    %137 = vector.load %arg20[%c0_107, %c32_108] : memref<64x72xf32, #tpu.memory_space<vmem>>, vector<64x4xf32>
    tpu.vector_store %arg20[%c0_107, %c32_108], %136 {strides = array<i32>} : memref<64x72xf32, #tpu.memory_space<vmem>>, vector<64x4xf32>,
    %c1_109 = arith.constant 1 : index
    %c2_110 = arith.constant 2 : index
    %c0_111 = arith.constant 0 : index
    %138 = vector.load %arg19[%c1_109, %c2_110, %c0_111] : memref<10x10x8xf32, #tpu.memory_space<vmem>>, vector<8x8x4xf32>
    %139 = vector.shape_cast %138 : vector<8x8x4xf32> to vector<64x4xf32>
    %c0_112 = arith.constant 0 : index
    %c40_113 = arith.constant 40 : index
    %140 = vector.load %arg20[%c0_112, %c40_113] : memref<64x72xf32, #tpu.memory_space<vmem>>, vector<64x4xf32>
    tpu.vector_store %arg20[%c0_112, %c40_113], %139 {strides = array<i32>} : memref<64x72xf32, #tpu.memory_space<vmem>>, vector<64x4xf32>,
    %c2_114 = arith.constant 2 : index
    %c0_115 = arith.constant 0 : index
    %c0_116 = arith.constant 0 : index
    %141 = vector.load %arg19[%c2_114, %c0_115, %c0_116] : memref<10x10x8xf32, #tpu.memory_space<vmem>>, vector<8x8x4xf32>
    %142 = vector.shape_cast %141 : vector<8x8x4xf32> to vector<64x4xf32>
    %c0_117 = arith.constant 0 : index
    %c48_118 = arith.constant 48 : index
    %143 = vector.load %arg20[%c0_117, %c48_118] : memref<64x72xf32, #tpu.memory_space<vmem>>, vector<64x4xf32>
    tpu.vector_store %arg20[%c0_117, %c48_118], %142 {strides = array<i32>} : memref<64x72xf32, #tpu.memory_space<vmem>>, vector<64x4xf32>,
    %c2_119 = arith.constant 2 : index
    %c1_120 = arith.constant 1 : index
    %c0_121 = arith.constant 0 : index
    %144 = vector.load %arg19[%c2_119, %c1_120, %c0_121] : memref<10x10x8xf32, #tpu.memory_space<vmem>>, vector<8x8x4xf32>
    %145 = vector.shape_cast %144 : vector<8x8x4xf32> to vector<64x4xf32>
    %c0_122 = arith.constant 0 : index
    %c56_123 = arith.constant 56 : index
    %146 = vector.load %arg20[%c0_122, %c56_123] : memref<64x72xf32, #tpu.memory_space<vmem>>, vector<64x4xf32>
    tpu.vector_store %arg20[%c0_122, %c56_123], %145 {strides = array<i32>} : memref<64x72xf32, #tpu.memory_space<vmem>>, vector<64x4xf32>,
    %c2_124 = arith.constant 2 : index
    %c2_125 = arith.constant 2 : index
    %c0_126 = arith.constant 0 : index
    %147 = vector.load %arg19[%c2_124, %c2_125, %c0_126] : memref<10x10x8xf32, #tpu.memory_space<vmem>>, vector<8x8x4xf32>
    %148 = vector.shape_cast %147 : vector<8x8x4xf32> to vector<64x4xf32>
    %c0_127 = arith.constant 0 : index
    %c64_128 = arith.constant 64 : index
    %149 = vector.load %arg20[%c0_127, %c64_128] : memref<64x72xf32, #tpu.memory_space<vmem>>, vector<64x4xf32>
    tpu.vector_store %arg20[%c0_127, %c64_128], %148 {strides = array<i32>} : memref<64x72xf32, #tpu.memory_space<vmem>>, vector<64x4xf32>,
    %c0_129 = arith.constant 0 : index
    %c0_130 = arith.constant 0 : index
    %150 = vector.load %arg20[%c0_129, %c0_130] : memref<64x72xf32, #tpu.memory_space<vmem>>, vector<64x72xf32>
    %151 = arith.truncf %150 : vector<64x72xf32> to vector<64x72xbf16>
    %c0_131 = arith.constant 0 : index
    %c0_132 = arith.constant 0 : index
    %152 = vector.load %arg6[%c0_131, %c0_132] : memref<72x4xbf16, #tpu.memory_space<vmem>>, vector<72x4xbf16>
    %cst_133 = arith.constant dense<0.000000e+00> : vector<64x4xf32>
    %153 = tpu.matmul %151, %152, %cst_133 {dimension_numbers = #tpu.dot_dimension_numbers<[1], [0], [0], [1], [0, 0, 1, 1], [], []>} : vector<64x72xbf16>, vector<72x4xbf16>, vector<64x4xf32> -> vector<64x4xf32>
    %c0_134 = arith.constant 0 : index
    %c0_135 = arith.constant 0 : index
    %154 = vector.load %arg7[%c0_134, %c0_135] : memref<1x4xf32, #tpu.memory_space<vmem>>, vector<1x4xf32>
    %155 = vector.broadcast %154 : vector<1x4xf32> to vector<64x4xf32>
    %156 = arith.addf %153, %155 : vector<64x4xf32>
    %157 = vector.extract_strided_slice %156 {offsets = [0, 0], sizes = [64, 2], strides = [1, 1]} : vector<64x4xf32> to vector<64x2xf32>
    %cst_136 = arith.constant dense<0.000000e+00> : vector<64xf32>
    %158 = vector.multi_reduction <add>, %157, %cst_136 [1] : vector<64x2xf32> to vector<64xf32>
    %159 = vector.shape_cast %158 : vector<64xf32> to vector<64x1xf32>
    %cst_137 = arith.constant dense<0.000000e+00> : vector<1xf32>
    %160 = vector.multi_reduction <add>, %159, %cst_137 [0] : vector<64x1xf32> to vector<1xf32>
    %161 = vector.shape_cast %160 : vector<1xf32> to vector<1x1xf32>
    %cst_138 = arith.constant 7.812500e-03 : f32
    %162 = vector.broadcast %cst_138 : f32 to vector<1x1xf32>
    %163 = arith.mulf %161, %162 : vector<1x1xf32>
    %164 = vector.broadcast %163 : vector<1x1xf32> to vector<64x2xf32>
    %165 = arith.subf %157, %164 : vector<64x2xf32>
    %166 = arith.mulf %165, %165 : vector<64x2xf32>
    %cst_139 = arith.constant dense<0.000000e+00> : vector<64xf32>
    %167 = vector.multi_reduction <add>, %166, %cst_139 [1] : vector<64x2xf32> to vector<64xf32>
    %168 = vector.shape_cast %167 : vector<64xf32> to vector<64x1xf32>
    %cst_140 = arith.constant dense<0.000000e+00> : vector<1xf32>
    %169 = vector.multi_reduction <add>, %168, %cst_140 [0] : vector<64x1xf32> to vector<1xf32>
    %170 = vector.shape_cast %169 : vector<1xf32> to vector<1x1xf32>
    %cst_141 = arith.constant 7.812500e-03 : f32
    %171 = vector.broadcast %cst_141 : f32 to vector<1x1xf32>
    %172 = arith.mulf %170, %171 : vector<1x1xf32>
    %cst_142 = arith.constant 9.99999974E-6 : f32
    %173 = vector.broadcast %cst_142 : f32 to vector<1x1xf32>
    %174 = arith.addf %172, %173 : vector<1x1xf32>
    %175 = math.rsqrt %174 : vector<1x1xf32>
    %176 = vector.extract_strided_slice %156 {offsets = [0, 2], sizes = [64, 2], strides = [1, 1]} : vector<64x4xf32> to vector<64x2xf32>
    %cst_143 = arith.constant dense<0.000000e+00> : vector<64xf32>
    %177 = vector.multi_reduction <add>, %176, %cst_143 [1] : vector<64x2xf32> to vector<64xf32>
    %178 = vector.shape_cast %177 : vector<64xf32> to vector<64x1xf32>
    %cst_144 = arith.constant dense<0.000000e+00> : vector<1xf32>
    %179 = vector.multi_reduction <add>, %178, %cst_144 [0] : vector<64x1xf32> to vector<1xf32>
    %180 = vector.shape_cast %179 : vector<1xf32> to vector<1x1xf32>
    %cst_145 = arith.constant 7.812500e-03 : f32
    %181 = vector.broadcast %cst_145 : f32 to vector<1x1xf32>
    %182 = arith.mulf %180, %181 : vector<1x1xf32>
    %183 = vector.broadcast %182 : vector<1x1xf32> to vector<64x2xf32>
    %184 = arith.subf %176, %183 : vector<64x2xf32>
    %185 = arith.mulf %184, %184 : vector<64x2xf32>
    %cst_146 = arith.constant dense<0.000000e+00> : vector<64xf32>
    %186 = vector.multi_reduction <add>, %185, %cst_146 [1] : vector<64x2xf32> to vector<64xf32>
    %187 = vector.shape_cast %186 : vector<64xf32> to vector<64x1xf32>
    %cst_147 = arith.constant dense<0.000000e+00> : vector<1xf32>
    %188 = vector.multi_reduction <add>, %187, %cst_147 [0] : vector<64x1xf32> to vector<1xf32>
    %189 = vector.shape_cast %188 : vector<1xf32> to vector<1x1xf32>
    %cst_148 = arith.constant 7.812500e-03 : f32
    %190 = vector.broadcast %cst_148 : f32 to vector<1x1xf32>
    %191 = arith.mulf %189, %190 : vector<1x1xf32>
    %cst_149 = arith.constant 9.99999974E-6 : f32
    %192 = vector.broadcast %cst_149 : f32 to vector<1x1xf32>
    %193 = arith.addf %191, %192 : vector<1x1xf32>
    %194 = math.rsqrt %193 : vector<1x1xf32>
    %195 = tpu.iota {dimensions = array<i32: 1>} : vector<1x4xi32>
    %c2_i32_150 = arith.constant 2 : i32
    %196 = vector.broadcast %c2_i32_150 : i32 to vector<1x4xi32>
    %197 = arith.cmpi slt, %195, %196 : vector<1x4xi32>
    %198 = vector.shape_cast %163 : vector<1x1xf32> to vector<1x1xf32>
    %199 = vector.broadcast %198 : vector<1x1xf32> to vector<1x4xf32>
    %200 = vector.shape_cast %182 : vector<1x1xf32> to vector<1x1xf32>
    %201 = vector.broadcast %200 : vector<1x1xf32> to vector<1x4xf32>
    %202 = arith.select %197, %199, %201 : vector<1x4xi1>, vector<1x4xf32>
    %203 = vector.shape_cast %175 : vector<1x1xf32> to vector<1x1xf32>
    %204 = vector.broadcast %203 : vector<1x1xf32> to vector<1x4xf32>
    %205 = vector.shape_cast %194 : vector<1x1xf32> to vector<1x1xf32>
    %206 = vector.broadcast %205 : vector<1x1xf32> to vector<1x4xf32>
    %207 = arith.select %197, %204, %206 : vector<1x4xi1>, vector<1x4xf32>
    %208 = vector.broadcast %202 : vector<1x4xf32> to vector<64x4xf32>
    %209 = arith.subf %156, %208 : vector<64x4xf32>
    %210 = vector.broadcast %207 : vector<1x4xf32> to vector<64x4xf32>
    %211 = arith.mulf %209, %210 : vector<64x4xf32>
    %c0_151 = arith.constant 0 : index
    %c0_152 = arith.constant 0 : index
    %212 = vector.load %arg8[%c0_151, %c0_152] : memref<1x4xf32, #tpu.memory_space<vmem>>, vector<1x4xf32>
    %213 = vector.broadcast %212 : vector<1x4xf32> to vector<64x4xf32>
    %214 = arith.mulf %211, %213 : vector<64x4xf32>
    %c0_153 = arith.constant 0 : index
    %c0_154 = arith.constant 0 : index
    %215 = vector.load %arg9[%c0_153, %c0_154] : memref<1x4xf32, #tpu.memory_space<vmem>>, vector<1x4xf32>
    %216 = vector.broadcast %215 : vector<1x4xf32> to vector<64x4xf32>
    %217 = arith.addf %214, %216 : vector<64x4xf32>
    %218 = arith.addf %217, %15 : vector<64x4xf32>
    %cst_155 = arith.constant 5.000000e-01 : f32
    %219 = vector.broadcast %cst_155 : f32 to vector<64x4xf32>
    %220 = arith.mulf %219, %218 : vector<64x4xf32>
    %cst_156 = arith.constant 0.707106769 : f32
    %221 = vector.broadcast %cst_156 : f32 to vector<64x4xf32>
    %222 = arith.mulf %218, %221 : vector<64x4xf32>
    %223 = math.erf %222 : vector<64x4xf32>
    %cst_157 = arith.constant 1.000000e+00 : f32
    %224 = vector.broadcast %cst_157 : f32 to vector<64x4xf32>
    %225 = arith.addf %224, %223 : vector<64x4xf32>
    %226 = arith.mulf %220, %225 : vector<64x4xf32>
    %227 = vector.shape_cast %226 : vector<64x4xf32> to vector<8x8x4xf32>
    %c1_158 = arith.constant 1 : index
    %c1_159 = arith.constant 1 : index
    %c0_160 = arith.constant 0 : index
    %228 = vector.load %arg19[%c1_158, %c1_159, %c0_160] : memref<10x10x8xf32, #tpu.memory_space<vmem>>, vector<8x8x4xf32>
    tpu.vector_store %arg19[%c1_158, %c1_159, %c0_160], %227 {strides = array<i32>} : memref<10x10x8xf32, #tpu.memory_space<vmem>>, vector<8x8x4xf32>,
    %c0_161 = arith.constant 0 : index
    %c0_162 = arith.constant 0 : index
    %c0_163 = arith.constant 0 : index
    %229 = vector.load %arg19[%c0_161, %c0_162, %c0_163] : memref<10x10x8xf32, #tpu.memory_space<vmem>>, vector<8x8x4xf32>
    %230 = vector.shape_cast %229 : vector<8x8x4xf32> to vector<64x4xf32>
    %c0_164 = arith.constant 0 : index
    %c0_165 = arith.constant 0 : index
    %231 = vector.load %arg20[%c0_164, %c0_165] : memref<64x72xf32, #tpu.memory_space<vmem>>, vector<64x4xf32>
    tpu.vector_store %arg20[%c0_164, %c0_165], %230 {strides = array<i32>} : memref<64x72xf32, #tpu.memory_space<vmem>>, vector<64x4xf32>,
    %c0_166 = arith.constant 0 : index
    %c1_167 = arith.constant 1 : index
    %c0_168 = arith.constant 0 : index
    %232 = vector.load %arg19[%c0_166, %c1_167, %c0_168] : memref<10x10x8xf32, #tpu.memory_space<vmem>>, vector<8x8x4xf32>
    %233 = vector.shape_cast %232 : vector<8x8x4xf32> to vector<64x4xf32>
    %c0_169 = arith.constant 0 : index
    %c8_170 = arith.constant 8 : index
    %234 = vector.load %arg20[%c0_169, %c8_170] : memref<64x72xf32, #tpu.memory_space<vmem>>, vector<64x4xf32>
    tpu.vector_store %arg20[%c0_169, %c8_170], %233 {strides = array<i32>} : memref<64x72xf32, #tpu.memory_space<vmem>>, vector<64x4xf32>,
    %c0_171 = arith.constant 0 : index
    %c2_172 = arith.constant 2 : index
    %c0_173 = arith.constant 0 : index
    %235 = vector.load %arg19[%c0_171, %c2_172, %c0_173] : memref<10x10x8xf32, #tpu.memory_space<vmem>>, vector<8x8x4xf32>
    %236 = vector.shape_cast %235 : vector<8x8x4xf32> to vector<64x4xf32>
    %c0_174 = arith.constant 0 : index
    %c16_175 = arith.constant 16 : index
    %237 = vector.load %arg20[%c0_174, %c16_175] : memref<64x72xf32, #tpu.memory_space<vmem>>, vector<64x4xf32>
    tpu.vector_store %arg20[%c0_174, %c16_175], %236 {strides = array<i32>} : memref<64x72xf32, #tpu.memory_space<vmem>>, vector<64x4xf32>,
    %c1_176 = arith.constant 1 : index
    %c0_177 = arith.constant 0 : index
    %c0_178 = arith.constant 0 : index
    %238 = vector.load %arg19[%c1_176, %c0_177, %c0_178] : memref<10x10x8xf32, #tpu.memory_space<vmem>>, vector<8x8x4xf32>
    %239 = vector.shape_cast %238 : vector<8x8x4xf32> to vector<64x4xf32>
    %c0_179 = arith.constant 0 : index
    %c24_180 = arith.constant 24 : index
    %240 = vector.load %arg20[%c0_179, %c24_180] : memref<64x72xf32, #tpu.memory_space<vmem>>, vector<64x4xf32>
    tpu.vector_store %arg20[%c0_179, %c24_180], %239 {strides = array<i32>} : memref<64x72xf32, #tpu.memory_space<vmem>>, vector<64x4xf32>,
    %c1_181 = arith.constant 1 : index
    %c1_182 = arith.constant 1 : index
    %c0_183 = arith.constant 0 : index
    %241 = vector.load %arg19[%c1_181, %c1_182, %c0_183] : memref<10x10x8xf32, #tpu.memory_space<vmem>>, vector<8x8x4xf32>
    %242 = vector.shape_cast %241 : vector<8x8x4xf32> to vector<64x4xf32>
    %c0_184 = arith.constant 0 : index
    %c32_185 = arith.constant 32 : index
    %243 = vector.load %arg20[%c0_184, %c32_185] : memref<64x72xf32, #tpu.memory_space<vmem>>, vector<64x4xf32>
    tpu.vector_store %arg20[%c0_184, %c32_185], %242 {strides = array<i32>} : memref<64x72xf32, #tpu.memory_space<vmem>>, vector<64x4xf32>,
    %c1_186 = arith.constant 1 : index
    %c2_187 = arith.constant 2 : index
    %c0_188 = arith.constant 0 : index
    %244 = vector.load %arg19[%c1_186, %c2_187, %c0_188] : memref<10x10x8xf32, #tpu.memory_space<vmem>>, vector<8x8x4xf32>
    %245 = vector.shape_cast %244 : vector<8x8x4xf32> to vector<64x4xf32>
    %c0_189 = arith.constant 0 : index
    %c40_190 = arith.constant 40 : index
    %246 = vector.load %arg20[%c0_189, %c40_190] : memref<64x72xf32, #tpu.memory_space<vmem>>, vector<64x4xf32>
    tpu.vector_store %arg20[%c0_189, %c40_190], %245 {strides = array<i32>} : memref<64x72xf32, #tpu.memory_space<vmem>>, vector<64x4xf32>,
    %c2_191 = arith.constant 2 : index
    %c0_192 = arith.constant 0 : index
    %c0_193 = arith.constant 0 : index
    %247 = vector.load %arg19[%c2_191, %c0_192, %c0_193] : memref<10x10x8xf32, #tpu.memory_space<vmem>>, vector<8x8x4xf32>
    %248 = vector.shape_cast %247 : vector<8x8x4xf32> to vector<64x4xf32>
    %c0_194 = arith.constant 0 : index
    %c48_195 = arith.constant 48 : index
    %249 = vector.load %arg20[%c0_194, %c48_195] : memref<64x72xf32, #tpu.memory_space<vmem>>, vector<64x4xf32>
    tpu.vector_store %arg20[%c0_194, %c48_195], %248 {strides = array<i32>} : memref<64x72xf32, #tpu.memory_space<vmem>>, vector<64x4xf32>,
    %c2_196 = arith.constant 2 : index
    %c1_197 = arith.constant 1 : index
    %c0_198 = arith.constant 0 : index
    %250 = vector.load %arg19[%c2_196, %c1_197, %c0_198] : memref<10x10x8xf32, #tpu.memory_space<vmem>>, vector<8x8x4xf32>
    %251 = vector.shape_cast %250 : vector<8x8x4xf32> to vector<64x4xf32>
    %c0_199 = arith.constant 0 : index
    %c56_200 = arith.constant 56 : index
    %252 = vector.load %arg20[%c0_199, %c56_200] : memref<64x72xf32, #tpu.memory_space<vmem>>, vector<64x4xf32>
    tpu.vector_store %arg20[%c0_199, %c56_200], %251 {strides = array<i32>} : memref<64x72xf32, #tpu.memory_space<vmem>>, vector<64x4xf32>,
    %c2_201 = arith.constant 2 : index
    %c2_202 = arith.constant 2 : index
    %c0_203 = arith.constant 0 : index
    %253 = vector.load %arg19[%c2_201, %c2_202, %c0_203] : memref<10x10x8xf32, #tpu.memory_space<vmem>>, vector<8x8x4xf32>
    %254 = vector.shape_cast %253 : vector<8x8x4xf32> to vector<64x4xf32>
    %c0_204 = arith.constant 0 : index
    %c64_205 = arith.constant 64 : index
    %255 = vector.load %arg20[%c0_204, %c64_205] : memref<64x72xf32, #tpu.memory_space<vmem>>, vector<64x4xf32>
    tpu.vector_store %arg20[%c0_204, %c64_205], %254 {strides = array<i32>} : memref<64x72xf32, #tpu.memory_space<vmem>>, vector<64x4xf32>,
    %c0_206 = arith.constant 0 : index
    %c0_207 = arith.constant 0 : index
    %256 = vector.load %arg20[%c0_206, %c0_207] : memref<64x72xf32, #tpu.memory_space<vmem>>, vector<64x72xf32>
    %257 = arith.truncf %256 : vector<64x72xf32> to vector<64x72xbf16>
    %c0_208 = arith.constant 0 : index
    %c0_209 = arith.constant 0 : index
    %258 = vector.load %arg10[%c0_208, %c0_209] : memref<72x8xbf16, #tpu.memory_space<vmem>>, vector<72x8xbf16>
    %cst_210 = arith.constant dense<0.000000e+00> : vector<64x8xf32>
    %259 = tpu.matmul %257, %258, %cst_210 {dimension_numbers = #tpu.dot_dimension_numbers<[1], [0], [0], [1], [0, 0, 1, 1], [], []>} : vector<64x72xbf16>, vector<72x8xbf16>, vector<64x8xf32> -> vector<64x8xf32>
    %c0_211 = arith.constant 0 : index
    %c0_212 = arith.constant 0 : index
    %260 = vector.load %arg11[%c0_211, %c0_212] : memref<1x8xf32, #tpu.memory_space<vmem>>, vector<1x8xf32>
    %261 = vector.broadcast %260 : vector<1x8xf32> to vector<64x8xf32>
    %262 = arith.addf %259, %261 : vector<64x8xf32>
    %263 = vector.extract_strided_slice %262 {offsets = [0, 0], sizes = [64, 4], strides = [1, 1]} : vector<64x8xf32> to vector<64x4xf32>
    %cst_213 = arith.constant dense<0.000000e+00> : vector<64xf32>
    %264 = vector.multi_reduction <add>, %263, %cst_213 [1] : vector<64x4xf32> to vector<64xf32>
    %265 = vector.shape_cast %264 : vector<64xf32> to vector<64x1xf32>
    %cst_214 = arith.constant dense<0.000000e+00> : vector<1xf32>
    %266 = vector.multi_reduction <add>, %265, %cst_214 [0] : vector<64x1xf32> to vector<1xf32>
    %267 = vector.shape_cast %266 : vector<1xf32> to vector<1x1xf32>
    %cst_215 = arith.constant 3.906250e-03 : f32
    %268 = vector.broadcast %cst_215 : f32 to vector<1x1xf32>
    %269 = arith.mulf %267, %268 : vector<1x1xf32>
    %270 = vector.broadcast %269 : vector<1x1xf32> to vector<64x4xf32>
    %271 = arith.subf %263, %270 : vector<64x4xf32>
    %272 = arith.mulf %271, %271 : vector<64x4xf32>
    %cst_216 = arith.constant dense<0.000000e+00> : vector<64xf32>
    %273 = vector.multi_reduction <add>, %272, %cst_216 [1] : vector<64x4xf32> to vector<64xf32>
    %274 = vector.shape_cast %273 : vector<64xf32> to vector<64x1xf32>
    %cst_217 = arith.constant dense<0.000000e+00> : vector<1xf32>
    %275 = vector.multi_reduction <add>, %274, %cst_217 [0] : vector<64x1xf32> to vector<1xf32>
    %276 = vector.shape_cast %275 : vector<1xf32> to vector<1x1xf32>
    %cst_218 = arith.constant 3.906250e-03 : f32
    %277 = vector.broadcast %cst_218 : f32 to vector<1x1xf32>
    %278 = arith.mulf %276, %277 : vector<1x1xf32>
    %cst_219 = arith.constant 9.99999974E-6 : f32
    %279 = vector.broadcast %cst_219 : f32 to vector<1x1xf32>
    %280 = arith.addf %278, %279 : vector<1x1xf32>
    %281 = math.rsqrt %280 : vector<1x1xf32>
    %282 = vector.extract_strided_slice %262 {offsets = [0, 4], sizes = [64, 4], strides = [1, 1]} : vector<64x8xf32> to vector<64x4xf32>
    %cst_220 = arith.constant dense<0.000000e+00> : vector<64xf32>
    %283 = vector.multi_reduction <add>, %282, %cst_220 [1] : vector<64x4xf32> to vector<64xf32>
    %284 = vector.shape_cast %283 : vector<64xf32> to vector<64x1xf32>
    %cst_221 = arith.constant dense<0.000000e+00> : vector<1xf32>
    %285 = vector.multi_reduction <add>, %284, %cst_221 [0] : vector<64x1xf32> to vector<1xf32>
    %286 = vector.shape_cast %285 : vector<1xf32> to vector<1x1xf32>
    %cst_222 = arith.constant 3.906250e-03 : f32
    %287 = vector.broadcast %cst_222 : f32 to vector<1x1xf32>
    %288 = arith.mulf %286, %287 : vector<1x1xf32>
    %289 = vector.broadcast %288 : vector<1x1xf32> to vector<64x4xf32>
    %290 = arith.subf %282, %289 : vector<64x4xf32>
    %291 = arith.mulf %290, %290 : vector<64x4xf32>
    %cst_223 = arith.constant dense<0.000000e+00> : vector<64xf32>
    %292 = vector.multi_reduction <add>, %291, %cst_223 [1] : vector<64x4xf32> to vector<64xf32>
    %293 = vector.shape_cast %292 : vector<64xf32> to vector<64x1xf32>
    %cst_224 = arith.constant dense<0.000000e+00> : vector<1xf32>
    %294 = vector.multi_reduction <add>, %293, %cst_224 [0] : vector<64x1xf32> to vector<1xf32>
    %295 = vector.shape_cast %294 : vector<1xf32> to vector<1x1xf32>
    %cst_225 = arith.constant 3.906250e-03 : f32
    %296 = vector.broadcast %cst_225 : f32 to vector<1x1xf32>
    %297 = arith.mulf %295, %296 : vector<1x1xf32>
    %cst_226 = arith.constant 9.99999974E-6 : f32
    %298 = vector.broadcast %cst_226 : f32 to vector<1x1xf32>
    %299 = arith.addf %297, %298 : vector<1x1xf32>
    %300 = math.rsqrt %299 : vector<1x1xf32>
    %301 = tpu.iota {dimensions = array<i32: 1>} : vector<1x8xi32>
    %c4_i32 = arith.constant 4 : i32
    %302 = vector.broadcast %c4_i32 : i32 to vector<1x8xi32>
    %303 = arith.cmpi slt, %301, %302 : vector<1x8xi32>
    %304 = vector.shape_cast %269 : vector<1x1xf32> to vector<1x1xf32>
    %305 = vector.broadcast %304 : vector<1x1xf32> to vector<1x8xf32>
    %306 = vector.shape_cast %288 : vector<1x1xf32> to vector<1x1xf32>
    %307 = vector.broadcast %306 : vector<1x1xf32> to vector<1x8xf32>
    %308 = arith.select %303, %305, %307 : vector<1x8xi1>, vector<1x8xf32>
    %309 = vector.shape_cast %281 : vector<1x1xf32> to vector<1x1xf32>
    %310 = vector.broadcast %309 : vector<1x1xf32> to vector<1x8xf32>
    %311 = vector.shape_cast %300 : vector<1x1xf32> to vector<1x1xf32>
    %312 = vector.broadcast %311 : vector<1x1xf32> to vector<1x8xf32>
    %313 = arith.select %303, %310, %312 : vector<1x8xi1>, vector<1x8xf32>
    %314 = vector.broadcast %308 : vector<1x8xf32> to vector<64x8xf32>
    %315 = arith.subf %262, %314 : vector<64x8xf32>
    %316 = vector.broadcast %313 : vector<1x8xf32> to vector<64x8xf32>
    %317 = arith.mulf %315, %316 : vector<64x8xf32>
    %c0_227 = arith.constant 0 : index
    %c0_228 = arith.constant 0 : index
    %318 = vector.load %arg12[%c0_227, %c0_228] : memref<1x8xf32, #tpu.memory_space<vmem>>, vector<1x8xf32>
    %319 = vector.broadcast %318 : vector<1x8xf32> to vector<64x8xf32>
    %320 = arith.mulf %317, %319 : vector<64x8xf32>
    %c0_229 = arith.constant 0 : index
    %c0_230 = arith.constant 0 : index
    %321 = vector.load %arg13[%c0_229, %c0_230] : memref<1x8xf32, #tpu.memory_space<vmem>>, vector<1x8xf32>
    %322 = vector.broadcast %321 : vector<1x8xf32> to vector<64x8xf32>
    %323 = arith.addf %320, %322 : vector<64x8xf32>
    %cst_231 = arith.constant 5.000000e-01 : f32
    %324 = vector.broadcast %cst_231 : f32 to vector<64x8xf32>
    %325 = arith.mulf %324, %323 : vector<64x8xf32>
    %cst_232 = arith.constant 0.707106769 : f32
    %326 = vector.broadcast %cst_232 : f32 to vector<64x8xf32>
    %327 = arith.mulf %323, %326 : vector<64x8xf32>
    %328 = math.erf %327 : vector<64x8xf32>
    %cst_233 = arith.constant 1.000000e+00 : f32
    %329 = vector.broadcast %cst_233 : f32 to vector<64x8xf32>
    %330 = arith.addf %329, %328 : vector<64x8xf32>
    %331 = arith.mulf %325, %330 : vector<64x8xf32>
    %332 = vector.shape_cast %331 : vector<64x8xf32> to vector<8x8x8xf32>
    %c1_234 = arith.constant 1 : index
    %c1_235 = arith.constant 1 : index
    %c0_236 = arith.constant 0 : index
    %333 = vector.load %arg19[%c1_234, %c1_235, %c0_236] : memref<10x10x8xf32, #tpu.memory_space<vmem>>, vector<8x8x8xf32>
    tpu.vector_store %arg19[%c1_234, %c1_235, %c0_236], %332 {strides = array<i32>} : memref<10x10x8xf32, #tpu.memory_space<vmem>>, vector<8x8x8xf32>,
    %c0_237 = arith.constant 0 : index
    %c0_238 = arith.constant 0 : index
    %c0_239 = arith.constant 0 : index
    %334 = vector.load %arg19[%c0_237, %c0_238, %c0_239] : memref<10x10x8xf32, #tpu.memory_space<vmem>>, vector<8x8x8xf32>
    %335 = vector.shape_cast %334 : vector<8x8x8xf32> to vector<64x8xf32>
    %c0_240 = arith.constant 0 : index
    %c0_241 = arith.constant 0 : index
    %336 = vector.load %arg20[%c0_240, %c0_241] : memref<64x72xf32, #tpu.memory_space<vmem>>, vector<64x8xf32>
    tpu.vector_store %arg20[%c0_240, %c0_241], %335 {strides = array<i32>} : memref<64x72xf32, #tpu.memory_space<vmem>>, vector<64x8xf32>,
    %c0_242 = arith.constant 0 : index
    %c1_243 = arith.constant 1 : index
    %c0_244 = arith.constant 0 : index
    %337 = vector.load %arg19[%c0_242, %c1_243, %c0_244] : memref<10x10x8xf32, #tpu.memory_space<vmem>>, vector<8x8x8xf32>
    %338 = vector.shape_cast %337 : vector<8x8x8xf32> to vector<64x8xf32>
    %c0_245 = arith.constant 0 : index
    %c8_246 = arith.constant 8 : index
    %339 = vector.load %arg20[%c0_245, %c8_246] : memref<64x72xf32, #tpu.memory_space<vmem>>, vector<64x8xf32>
    tpu.vector_store %arg20[%c0_245, %c8_246], %338 {strides = array<i32>} : memref<64x72xf32, #tpu.memory_space<vmem>>, vector<64x8xf32>,
    %c0_247 = arith.constant 0 : index
    %c2_248 = arith.constant 2 : index
    %c0_249 = arith.constant 0 : index
    %340 = vector.load %arg19[%c0_247, %c2_248, %c0_249] : memref<10x10x8xf32, #tpu.memory_space<vmem>>, vector<8x8x8xf32>
    %341 = vector.shape_cast %340 : vector<8x8x8xf32> to vector<64x8xf32>
    %c0_250 = arith.constant 0 : index
    %c16_251 = arith.constant 16 : index
    %342 = vector.load %arg20[%c0_250, %c16_251] : memref<64x72xf32, #tpu.memory_space<vmem>>, vector<64x8xf32>
    tpu.vector_store %arg20[%c0_250, %c16_251], %341 {strides = array<i32>} : memref<64x72xf32, #tpu.memory_space<vmem>>, vector<64x8xf32>,
    %c1_252 = arith.constant 1 : index
    %c0_253 = arith.constant 0 : index
    %c0_254 = arith.constant 0 : index
    %343 = vector.load %arg19[%c1_252, %c0_253, %c0_254] : memref<10x10x8xf32, #tpu.memory_space<vmem>>, vector<8x8x8xf32>
    %344 = vector.shape_cast %343 : vector<8x8x8xf32> to vector<64x8xf32>
    %c0_255 = arith.constant 0 : index
    %c24_256 = arith.constant 24 : index
    %345 = vector.load %arg20[%c0_255, %c24_256] : memref<64x72xf32, #tpu.memory_space<vmem>>, vector<64x8xf32>
    tpu.vector_store %arg20[%c0_255, %c24_256], %344 {strides = array<i32>} : memref<64x72xf32, #tpu.memory_space<vmem>>, vector<64x8xf32>,
    %c1_257 = arith.constant 1 : index
    %c1_258 = arith.constant 1 : index
    %c0_259 = arith.constant 0 : index
    %346 = vector.load %arg19[%c1_257, %c1_258, %c0_259] : memref<10x10x8xf32, #tpu.memory_space<vmem>>, vector<8x8x8xf32>
    %347 = vector.shape_cast %346 : vector<8x8x8xf32> to vector<64x8xf32>
    %c0_260 = arith.constant 0 : index
    %c32_261 = arith.constant 32 : index
    %348 = vector.load %arg20[%c0_260, %c32_261] : memref<64x72xf32, #tpu.memory_space<vmem>>, vector<64x8xf32>
    tpu.vector_store %arg20[%c0_260, %c32_261], %347 {strides = array<i32>} : memref<64x72xf32, #tpu.memory_space<vmem>>, vector<64x8xf32>,
    %c1_262 = arith.constant 1 : index
    %c2_263 = arith.constant 2 : index
    %c0_264 = arith.constant 0 : index
    %349 = vector.load %arg19[%c1_262, %c2_263, %c0_264] : memref<10x10x8xf32, #tpu.memory_space<vmem>>, vector<8x8x8xf32>
    %350 = vector.shape_cast %349 : vector<8x8x8xf32> to vector<64x8xf32>
    %c0_265 = arith.constant 0 : index
    %c40_266 = arith.constant 40 : index
    %351 = vector.load %arg20[%c0_265, %c40_266] : memref<64x72xf32, #tpu.memory_space<vmem>>, vector<64x8xf32>
    tpu.vector_store %arg20[%c0_265, %c40_266], %350 {strides = array<i32>} : memref<64x72xf32, #tpu.memory_space<vmem>>, vector<64x8xf32>,
    %c2_267 = arith.constant 2 : index
    %c0_268 = arith.constant 0 : index
    %c0_269 = arith.constant 0 : index
    %352 = vector.load %arg19[%c2_267, %c0_268, %c0_269] : memref<10x10x8xf32, #tpu.memory_space<vmem>>, vector<8x8x8xf32>
    %353 = vector.shape_cast %352 : vector<8x8x8xf32> to vector<64x8xf32>
    %c0_270 = arith.constant 0 : index
    %c48_271 = arith.constant 48 : index
    %354 = vector.load %arg20[%c0_270, %c48_271] : memref<64x72xf32, #tpu.memory_space<vmem>>, vector<64x8xf32>
    tpu.vector_store %arg20[%c0_270, %c48_271], %353 {strides = array<i32>} : memref<64x72xf32, #tpu.memory_space<vmem>>, vector<64x8xf32>,
    %c2_272 = arith.constant 2 : index
    %c1_273 = arith.constant 1 : index
    %c0_274 = arith.constant 0 : index
    %355 = vector.load %arg19[%c2_272, %c1_273, %c0_274] : memref<10x10x8xf32, #tpu.memory_space<vmem>>, vector<8x8x8xf32>
    %356 = vector.shape_cast %355 : vector<8x8x8xf32> to vector<64x8xf32>
    %c0_275 = arith.constant 0 : index
    %c56_276 = arith.constant 56 : index
    %357 = vector.load %arg20[%c0_275, %c56_276] : memref<64x72xf32, #tpu.memory_space<vmem>>, vector<64x8xf32>
    tpu.vector_store %arg20[%c0_275, %c56_276], %356 {strides = array<i32>} : memref<64x72xf32, #tpu.memory_space<vmem>>, vector<64x8xf32>,
    %c2_277 = arith.constant 2 : index
    %c2_278 = arith.constant 2 : index
    %c0_279 = arith.constant 0 : index
    %358 = vector.load %arg19[%c2_277, %c2_278, %c0_279] : memref<10x10x8xf32, #tpu.memory_space<vmem>>, vector<8x8x8xf32>
    %359 = vector.shape_cast %358 : vector<8x8x8xf32> to vector<64x8xf32>
    %c0_280 = arith.constant 0 : index
    %c64_281 = arith.constant 64 : index
    %360 = vector.load %arg20[%c0_280, %c64_281] : memref<64x72xf32, #tpu.memory_space<vmem>>, vector<64x8xf32>
    tpu.vector_store %arg20[%c0_280, %c64_281], %359 {strides = array<i32>} : memref<64x72xf32, #tpu.memory_space<vmem>>, vector<64x8xf32>,
    %c0_282 = arith.constant 0 : index
    %c0_283 = arith.constant 0 : index
    %361 = vector.load %arg20[%c0_282, %c0_283] : memref<64x72xf32, #tpu.memory_space<vmem>>, vector<64x72xf32>
    %362 = arith.truncf %361 : vector<64x72xf32> to vector<64x72xbf16>
    %c0_284 = arith.constant 0 : index
    %c0_285 = arith.constant 0 : index
    %363 = vector.load %arg14[%c0_284, %c0_285] : memref<72x8xbf16, #tpu.memory_space<vmem>>, vector<72x8xbf16>
    %cst_286 = arith.constant dense<0.000000e+00> : vector<64x8xf32>
    %364 = tpu.matmul %362, %363, %cst_286 {dimension_numbers = #tpu.dot_dimension_numbers<[1], [0], [0], [1], [0, 0, 1, 1], [], []>} : vector<64x72xbf16>, vector<72x8xbf16>, vector<64x8xf32> -> vector<64x8xf32>
    %c0_287 = arith.constant 0 : index
    %c0_288 = arith.constant 0 : index
    %365 = vector.load %arg15[%c0_287, %c0_288] : memref<1x8xf32, #tpu.memory_space<vmem>>, vector<1x8xf32>
    %366 = vector.broadcast %365 : vector<1x8xf32> to vector<64x8xf32>
    %367 = arith.addf %364, %366 : vector<64x8xf32>
    %368 = vector.extract_strided_slice %367 {offsets = [0, 0], sizes = [64, 4], strides = [1, 1]} : vector<64x8xf32> to vector<64x4xf32>
    %cst_289 = arith.constant dense<0.000000e+00> : vector<64xf32>
    %369 = vector.multi_reduction <add>, %368, %cst_289 [1] : vector<64x4xf32> to vector<64xf32>
    %370 = vector.shape_cast %369 : vector<64xf32> to vector<64x1xf32>
    %cst_290 = arith.constant dense<0.000000e+00> : vector<1xf32>
    %371 = vector.multi_reduction <add>, %370, %cst_290 [0] : vector<64x1xf32> to vector<1xf32>
    %372 = vector.shape_cast %371 : vector<1xf32> to vector<1x1xf32>
    %cst_291 = arith.constant 3.906250e-03 : f32
    %373 = vector.broadcast %cst_291 : f32 to vector<1x1xf32>
    %374 = arith.mulf %372, %373 : vector<1x1xf32>
    %375 = vector.broadcast %374 : vector<1x1xf32> to vector<64x4xf32>
    %376 = arith.subf %368, %375 : vector<64x4xf32>
    %377 = arith.mulf %376, %376 : vector<64x4xf32>
    %cst_292 = arith.constant dense<0.000000e+00> : vector<64xf32>
    %378 = vector.multi_reduction <add>, %377, %cst_292 [1] : vector<64x4xf32> to vector<64xf32>
    %379 = vector.shape_cast %378 : vector<64xf32> to vector<64x1xf32>
    %cst_293 = arith.constant dense<0.000000e+00> : vector<1xf32>
    %380 = vector.multi_reduction <add>, %379, %cst_293 [0] : vector<64x1xf32> to vector<1xf32>
    %381 = vector.shape_cast %380 : vector<1xf32> to vector<1x1xf32>
    %cst_294 = arith.constant 3.906250e-03 : f32
    %382 = vector.broadcast %cst_294 : f32 to vector<1x1xf32>
    %383 = arith.mulf %381, %382 : vector<1x1xf32>
    %cst_295 = arith.constant 9.99999974E-6 : f32
    %384 = vector.broadcast %cst_295 : f32 to vector<1x1xf32>
    %385 = arith.addf %383, %384 : vector<1x1xf32>
    %386 = math.rsqrt %385 : vector<1x1xf32>
    %387 = vector.extract_strided_slice %367 {offsets = [0, 4], sizes = [64, 4], strides = [1, 1]} : vector<64x8xf32> to vector<64x4xf32>
    %cst_296 = arith.constant dense<0.000000e+00> : vector<64xf32>
    %388 = vector.multi_reduction <add>, %387, %cst_296 [1] : vector<64x4xf32> to vector<64xf32>
    %389 = vector.shape_cast %388 : vector<64xf32> to vector<64x1xf32>
    %cst_297 = arith.constant dense<0.000000e+00> : vector<1xf32>
    %390 = vector.multi_reduction <add>, %389, %cst_297 [0] : vector<64x1xf32> to vector<1xf32>
    %391 = vector.shape_cast %390 : vector<1xf32> to vector<1x1xf32>
    %cst_298 = arith.constant 3.906250e-03 : f32
    %392 = vector.broadcast %cst_298 : f32 to vector<1x1xf32>
    %393 = arith.mulf %391, %392 : vector<1x1xf32>
    %394 = vector.broadcast %393 : vector<1x1xf32> to vector<64x4xf32>
    %395 = arith.subf %387, %394 : vector<64x4xf32>
    %396 = arith.mulf %395, %395 : vector<64x4xf32>
    %cst_299 = arith.constant dense<0.000000e+00> : vector<64xf32>
    %397 = vector.multi_reduction <add>, %396, %cst_299 [1] : vector<64x4xf32> to vector<64xf32>
    %398 = vector.shape_cast %397 : vector<64xf32> to vector<64x1xf32>
    %cst_300 = arith.constant dense<0.000000e+00> : vector<1xf32>
    %399 = vector.multi_reduction <add>, %398, %cst_300 [0] : vector<64x1xf32> to vector<1xf32>
    %400 = vector.shape_cast %399 : vector<1xf32> to vector<1x1xf32>
    %cst_301 = arith.constant 3.906250e-03 : f32
    %401 = vector.broadcast %cst_301 : f32 to vector<1x1xf32>
    %402 = arith.mulf %400, %401 : vector<1x1xf32>
    %cst_302 = arith.constant 9.99999974E-6 : f32
    %403 = vector.broadcast %cst_302 : f32 to vector<1x1xf32>
    %404 = arith.addf %402, %403 : vector<1x1xf32>
    %405 = math.rsqrt %404 : vector<1x1xf32>
    %406 = tpu.iota {dimensions = array<i32: 1>} : vector<1x8xi32>
    %c4_i32_303 = arith.constant 4 : i32
    %407 = vector.broadcast %c4_i32_303 : i32 to vector<1x8xi32>
    %408 = arith.cmpi slt, %406, %407 : vector<1x8xi32>
    %409 = vector.shape_cast %374 : vector<1x1xf32> to vector<1x1xf32>
    %410 = vector.broadcast %409 : vector<1x1xf32> to vector<1x8xf32>
    %411 = vector.shape_cast %393 : vector<1x1xf32> to vector<1x1xf32>
    %412 = vector.broadcast %411 : vector<1x1xf32> to vector<1x8xf32>
    %413 = arith.select %408, %410, %412 : vector<1x8xi1>, vector<1x8xf32>
    %414 = vector.shape_cast %386 : vector<1x1xf32> to vector<1x1xf32>
    %415 = vector.broadcast %414 : vector<1x1xf32> to vector<1x8xf32>
    %416 = vector.shape_cast %405 : vector<1x1xf32> to vector<1x1xf32>
    %417 = vector.broadcast %416 : vector<1x1xf32> to vector<1x8xf32>
    %418 = arith.select %408, %415, %417 : vector<1x8xi1>, vector<1x8xf32>
    %419 = vector.broadcast %413 : vector<1x8xf32> to vector<64x8xf32>
    %420 = arith.subf %367, %419 : vector<64x8xf32>
    %421 = vector.broadcast %418 : vector<1x8xf32> to vector<64x8xf32>
    %422 = arith.mulf %420, %421 : vector<64x8xf32>
    %c0_304 = arith.constant 0 : index
    %c0_305 = arith.constant 0 : index
    %423 = vector.load %arg16[%c0_304, %c0_305] : memref<1x8xf32, #tpu.memory_space<vmem>>, vector<1x8xf32>
    %424 = vector.broadcast %423 : vector<1x8xf32> to vector<64x8xf32>
    %425 = arith.mulf %422, %424 : vector<64x8xf32>
    %c0_306 = arith.constant 0 : index
    %c0_307 = arith.constant 0 : index
    %426 = vector.load %arg17[%c0_306, %c0_307] : memref<1x8xf32, #tpu.memory_space<vmem>>, vector<1x8xf32>
    %427 = vector.broadcast %426 : vector<1x8xf32> to vector<64x8xf32>
    %428 = arith.addf %425, %427 : vector<64x8xf32>
    %cst_308 = arith.constant 5.000000e-01 : f32
    %429 = vector.broadcast %cst_308 : f32 to vector<64x8xf32>
    %430 = arith.mulf %429, %428 : vector<64x8xf32>
    %cst_309 = arith.constant 0.707106769 : f32
    %431 = vector.broadcast %cst_309 : f32 to vector<64x8xf32>
    %432 = arith.mulf %428, %431 : vector<64x8xf32>
    %433 = math.erf %432 : vector<64x8xf32>
    %cst_310 = arith.constant 1.000000e+00 : f32
    %434 = vector.broadcast %cst_310 : f32 to vector<64x8xf32>
    %435 = arith.addf %434, %433 : vector<64x8xf32>
    %436 = arith.mulf %430, %435 : vector<64x8xf32>
    %c0_311 = arith.constant 0 : index
    %c0_312 = arith.constant 0 : index
    %c0_313 = arith.constant 0 : index
    %437 = vector.load %arg18[%c0_311, %c0_312, %c0_313] : memref<1x64x8xf32, #tpu.memory_space<vmem>>, vector<1x64x8xf32>
    %438 = vector.shape_cast %437 : vector<1x64x8xf32> to vector<64x8xf32>
    %439 = vector.shape_cast %436 : vector<64x8xf32> to vector<1x64x8xf32>
    tpu.vector_store %arg18[%c0_311, %c0_312, %c0_313], %439 {strides = array<i32>} : memref<1x64x8xf32, #tpu.memory_space<vmem>>, vector<1x64x8xf32>,
    return
  }
  func.func @transform_0(%arg0: i32) -> (i32, i32, i32, i32, i32) {
    %c0_i32 = arith.constant 0 : i32
    %c0_i32_0 = arith.constant 0 : i32
    %c0_i32_1 = arith.constant 0 : i32
    %c0_i32_2 = arith.constant 0 : i32
    %c0_i32_3 = arith.constant 0 : i32
    return %arg0, %c0_i32, %c0_i32_0, %c0_i32_1, %c0_i32_2 : i32, i32, i32, i32, i32
  }
  func.func @transform_1(%arg0: i32) -> (i32, i32) {
    %c0_i32 = arith.constant 0 : i32
    %c0_i32_0 = arith.constant 0 : i32
    %c0_i32_1 = arith.constant 0 : i32
    return %c0_i32, %c0_i32_0 : i32, i32
  }
  func.func @transform_2(%arg0: i32) -> (i32, i32) {
    %c0_i32 = arith.constant 0 : i32
    %c0_i32_0 = arith.constant 0 : i32
    %c0_i32_1 = arith.constant 0 : i32
    return %c0_i32, %c0_i32_0 : i32, i32
  }
  func.func @transform_3(%arg0: i32) -> (i32, i32) {
    %c0_i32 = arith.constant 0 : i32
    %c0_i32_0 = arith.constant 0 : i32
    %c0_i32_1 = arith.constant 0 : i32
    return %c0_i32, %c0_i32_0 : i32, i32
  }
  func.func @transform_4(%arg0: i32) -> (i32, i32) {
    %c0_i32 = arith.constant 0 : i32
    %c0_i32_0 = arith.constant 0 : i32
    %c0_i32_1 = arith.constant 0 : i32
    return %c0_i32, %c0_i32_0 : i32, i32
  }
  func.func @transform_5(%arg0: i32) -> (i32, i32) {
    %c0_i32 = arith.constant 0 : i32
    %c0_i32_0 = arith.constant 0 : i32
    %c0_i32_1 = arith.constant 0 : i32
    return %c0_i32, %c0_i32_0 : i32, i32
  }
  func.func @transform_6(%arg0: i32) -> (i32, i32) {
    %c0_i32 = arith.constant 0 : i32
    %c0_i32_0 = arith.constant 0 : i32
    %c0_i32_1 = arith.constant 0 : i32
    return %c0_i32, %c0_i32_0 : i32, i32
  }
  func.func @transform_7(%arg0: i32) -> (i32, i32) {
    %c0_i32 = arith.constant 0 : i32
    %c0_i32_0 = arith.constant 0 : i32
    %c0_i32_1 = arith.constant 0 : i32
    return %c0_i32, %c0_i32_0 : i32, i32
  }
  func.func @transform_8(%arg0: i32) -> (i32, i32) {
    %c0_i32 = arith.constant 0 : i32
    %c0_i32_0 = arith.constant 0 : i32
    %c0_i32_1 = arith.constant 0 : i32
    return %c0_i32, %c0_i32_0 : i32, i32
  }
  func.func @transform_9(%arg0: i32) -> (i32, i32) {
    %c0_i32 = arith.constant 0 : i32
    %c0_i32_0 = arith.constant 0 : i32
    %c0_i32_1 = arith.constant 0 : i32
    return %c0_i32, %c0_i32_0 : i32, i32
  }
  func.func @transform_10(%arg0: i32) -> (i32, i32) {
    %c0_i32 = arith.constant 0 : i32
    %c0_i32_0 = arith.constant 0 : i32
    %c0_i32_1 = arith.constant 0 : i32
    return %c0_i32, %c0_i32_0 : i32, i32
  }
  func.func @transform_11(%arg0: i32) -> (i32, i32) {
    %c0_i32 = arith.constant 0 : i32
    %c0_i32_0 = arith.constant 0 : i32
    %c0_i32_1 = arith.constant 0 : i32
    return %c0_i32, %c0_i32_0 : i32, i32
  }
  func.func @transform_12(%arg0: i32) -> (i32, i32) {
    %c0_i32 = arith.constant 0 : i32
    %c0_i32_0 = arith.constant 0 : i32
    %c0_i32_1 = arith.constant 0 : i32
    return %c0_i32, %c0_i32_0 : i32, i32
  }
  func.func @transform_13(%arg0: i32) -> (i32, i32) {
    %c0_i32 = arith.constant 0 : i32
    %c0_i32_0 = arith.constant 0 : i32
    %c0_i32_1 = arith.constant 0 : i32
    return %c0_i32, %c0_i32_0 : i32, i32
  }
  func.func @transform_14(%arg0: i32) -> (i32, i32) {
    %c0_i32 = arith.constant 0 : i32
    %c0_i32_0 = arith.constant 0 : i32
    %c0_i32_1 = arith.constant 0 : i32
    return %c0_i32, %c0_i32_0 : i32, i32
  }
  func.func @transform_15(%arg0: i32) -> (i32, i32) {
    %c0_i32 = arith.constant 0 : i32
    %c0_i32_0 = arith.constant 0 : i32
    %c0_i32_1 = arith.constant 0 : i32
    return %c0_i32, %c0_i32_0 : i32, i32
  }
  func.func @transform_16(%arg0: i32) -> (i32, i32) {
    %c0_i32 = arith.constant 0 : i32
    %c0_i32_0 = arith.constant 0 : i32
    %c0_i32_1 = arith.constant 0 : i32
    return %c0_i32, %c0_i32_0 : i32, i32
  }
  func.func @transform_17(%arg0: i32) -> (i32, i32, i32) {
    %c0_i32 = arith.constant 0 : i32
    %c0_i32_0 = arith.constant 0 : i32
    %c0_i32_1 = arith.constant 0 : i32
    return %arg0, %c0_i32, %c0_i32_0 : i32, i32, i32
  }
}

</mosaic_0001>

<llo_original>
// kernel: tpu_custom_call.1
$region0: #{tpu_custom_call.1}
  #allocation0 [shape = 'u32[]', space=smem, size = 0x4, offset = 0x4, fixed_abs, tag = 'smem constant byte address 0x4 - core index']
  #allocation1 [shape = 'u32[144,128]{1,0:T(1,128)}', space=vmem, size = 0x12000, scoped, tag = 'internal scratch']
  #allocation2 [shape = 'f32[10,10,8]{2,1,0:T(8,128)}', space=vmem, size = 0x14000, scoped, tag = 'scratch operand']
  #allocation3 [shape = 'f32[64,72]{1,0:T(8,128)}', space=vmem, size = 0x8000, scoped, tag = 'scratch operand']
  %s0 = inlined_call_operand.hbm [shape: f32[2,8,2,8,8], index: 0, kind: input, shape index: {}]
  %s1 = inlined_call_operand.vmem [shape: bf16[72,4], index: 1, kind: input, shape index: {}]
  %s2 = inlined_call_operand.vmem [shape: f32[1,4], index: 2, kind: input, shape index: {}]
  %s3 = inlined_call_operand.vmem [shape: f32[1,4], index: 3, kind: input, shape index: {}]
  %s4 = inlined_call_operand.vmem [shape: f32[1,4], index: 4, kind: input, shape index: {}]
  %s5 = inlined_call_operand.vmem [shape: bf16[72,4], index: 5, kind: input, shape index: {}]
  %s6 = inlined_call_operand.vmem [shape: f32[1,4], index: 6, kind: input, shape index: {}]
  %s7 = inlined_call_operand.vmem [shape: f32[1,4], index: 7, kind: input, shape index: {}]
  %s8 = inlined_call_operand.vmem [shape: f32[1,4], index: 8, kind: input, shape index: {}]
  %s9 = inlined_call_operand.vmem [shape: bf16[72,8], index: 9, kind: input, shape index: {}]
  %s10 = inlined_call_operand.vmem [shape: f32[1,8], index: 10, kind: input, shape index: {}]
  %s11 = inlined_call_operand.vmem [shape: f32[1,8], index: 11, kind: input, shape index: {}]
  %s12 = inlined_call_operand.vmem [shape: f32[1,8], index: 12, kind: input, shape index: {}]
  %s13 = inlined_call_operand.vmem [shape: bf16[72,8], index: 13, kind: input, shape index: {}]
  %s14 = inlined_call_operand.vmem [shape: f32[1,8], index: 14, kind: input, shape index: {}]
  %s15 = inlined_call_operand.vmem [shape: f32[1,8], index: 15, kind: input, shape index: {}]
  %s16 = inlined_call_operand.vmem [shape: f32[1,8], index: 16, kind: input, shape index: {}]
  %s17 = inlined_call_operand.vmem [shape: f32[2,64,8], index: 17, kind: output, shape index: {}]
  %s18 = sld [smem:[#allocation0]]
  $region105: #{tpu_custom_call.1} parent=0
    _
  %s20 = ssub.s32 1, %s18
  %s21 = scalar_select 0, %s20, %s18
  $region1: #{tpu_custom_call.1} parent=0
    #allocation4 [shape = 'u8[131072]{0}', space=vmem, size = 0x20000, scoped, tag = 'input window, operand 0']
    #allocation5 [shape = 's32[2]{0}', space=sflag, size = 0x8, scoped, tag = 'scoped memory for tpu_custom_call.1']
    %22 = vsyncpa [#allocation5], 0
    %s23 = scalar_lea.sflag [#allocation5], 1
    %24 = vsyncpa %s23, 0
    loop: start=0, step=1, limit=4
    $region2: #{tpu_custom_call.1} parent=1 // loop_pre_header
      _
    $region3: #{tpu_custom_call.1} parent=1 // loop_header
      %s26 = sphi 0, %s30
      %p27 = scmp.ge.s32.totalorder %s26, 4
      %s36 = sphi 0, %s38
      %s39 = sphi 0, %s36
      %s40 = sphi 0, %s39
      %s56 = sphi 0, %s40
      %s60 = sphi 0, %s60
      %s62 = sphi 0, %s60
      %s63 = sphi 0, %s62
      %s77 = sphi 0, %s63
      %s81 = sphi 0, %s81
      %s83 = sphi 0, %s81
      %s84 = sphi 0, %s83
      %s98 = sphi 0, %s84
      %s102 = sphi 0, %s102
      %s104 = sphi 0, %s102
      %s105 = sphi 0, %s104
      %s119 = sphi 0, %s105
      %s123 = sphi 0, %s123
      %s125 = sphi 0, %s123
      %s126 = sphi 0, %s125
      %s140 = sphi 0, %s126
      %s144 = sphi 0, %s144
      %s146 = sphi 0, %s144
      %s147 = sphi 0, %s146
      %s161 = sphi 0, %s147
      %s165 = sphi 0, %s165
      %s167 = sphi 0, %s165
      %s168 = sphi 0, %s167
      %s182 = sphi 0, %s168
      %s186 = sphi 0, %s186
      %s188 = sphi 0, %s186
      %s189 = sphi 0, %s188
      %s203 = sphi 0, %s189
      %s207 = sphi 0, %s207
      %s209 = sphi 0, %s207
      %s210 = sphi 0, %s209
      %s224 = sphi 0, %s210
      %s228 = sphi 0, %s228
      %s230 = sphi 0, %s228
      %s231 = sphi 0, %s230
      %s245 = sphi 0, %s231
      %s249 = sphi 0, %s249
      %s251 = sphi 0, %s249
      %s252 = sphi 0, %s251
      %s266 = sphi 0, %s252
      %s270 = sphi 0, %s270
      %s272 = sphi 0, %s270
      %s273 = sphi 0, %s272
      %s287 = sphi 0, %s273
      %s291 = sphi 0, %s291
      %s293 = sphi 0, %s291
      %s294 = sphi 0, %s293
      %s308 = sphi 0, %s294
      %s312 = sphi 0, %s312
      %s314 = sphi 0, %s312
      %s315 = sphi 0, %s314
      %s329 = sphi 0, %s315
      %s333 = sphi 0, %s333
      %s335 = sphi 0, %s333
      %s336 = sphi 0, %s335
      %s350 = sphi 0, %s336
      %s354 = sphi 0, %s354
      %s356 = sphi 0, %s354
      %s357 = sphi 0, %s356
      %s371 = sphi 0, %s357
      %s375 = sphi 0, %s375
      %s377 = sphi 0, %s375
      %s378 = sphi 0, %s377
      %s392 = sphi 0, %s378
      %s398 = sphi 0, %s400
      %s401 = sphi 0, %s398
      %s402 = sphi 0, %s401
      %s418 = sphi 0, %s402
    $region4: #{tpu_custom_call.1} parent=1 // loop_header_branch
      %29 = sbr.rel (%p27) target = $region8
    $region5: #{tpu_custom_call.1} parent=1 // loop_body
      %s31 = ssub.s32 %s26, 1
      %s32 = ssub.s32 %s26, 2
      %s33 = sadd.s32 %s26, 1
      %s34 = ssub.s32 %s26, %s33
      %p35 = scmp.eq.s32.totalorder %s34, 0
      %s37 = sadd.s32 %s36, 1
      %s38 = scalar_select %p35, %s36, %s37
      %p41 = pneg %p35
      %p42 = scmp.eq.s32.totalorder %s26, 1
      %p43 = por %p41, %p42
      %p44 = scmp.ne.s32.totalorder %s36, %s39
      %p45 = scmp.eq.s32.totalorder %s26, 0
      %p46 = por %p44, %p45
      %p47 = scmp.ne.s32.totalorder %s36, %s39
      %p48 = scmp.eq.s32.totalorder %s31, 1
      %p49 = por %p47, %p48
      %p50 = scmp.ne.s32.totalorder %s39, %s40
      %p51 = scmp.eq.s32.totalorder %s31, 0
      %p52 = por %p50, %p51
      %p53 = scmp.ne.s32.totalorder %s39, %s40
      %p54 = scmp.eq.s32.totalorder %s32, 1
      %p55 = por %p53, %p54
      %p57 = scmp.ne.s32.totalorder %s40, %s56
      %p58 = scmp.eq.s32.totalorder %s32, 0
      %p59 = por %p57, %p58
      %s61 = sadd.s32 %s60, 1
      %p64 = scmp.eq.s32.totalorder %s26, 1
      %p65 = scmp.ne.s32.totalorder %s60, %s62
      %p66 = scmp.eq.s32.totalorder %s26, 0
      %p67 = por %p65, %p66
      %p68 = scmp.ne.s32.totalorder %s60, %s62
      %p69 = scmp.eq.s32.totalorder %s31, 1
      %p70 = por %p68, %p69
      %p71 = scmp.ne.s32.totalorder %s62, %s63
      %p72 = scmp.eq.s32.totalorder %s31, 0
      %p73 = por %p71, %p72
      %p74 = scmp.ne.s32.totalorder %s62, %s63
      %p75 = scmp.eq.s32.totalorder %s32, 1
      %p76 = por %p74, %p75
      %p78 = scmp.ne.s32.totalorder %s63, %s77
      %p79 = scmp.eq.s32.totalorder %s32, 0
      %p80 = por %p78, %p79
      %s82 = sadd.s32 %s81, 1
      %p85 = scmp.eq.s32.totalorder %s26, 1
      %p86 = scmp.ne.s32.totalorder %s81, %s83
      %p87 = scmp.eq.s32.totalorder %s26, 0
      %p88 = por %p86, %p87
      %p89 = scmp.ne.s32.totalorder %s81, %s83
      %p90 = scmp.eq.s32.totalorder %s31, 1
      %p91 = por %p89, %p90
      %p92 = scmp.ne.s32.totalorder %s83, %s84
      %p93 = scmp.eq.s32.totalorder %s31, 0
      %p94 = por %p92, %p93
      %p95 = scmp.ne.s32.totalorder %s83, %s84
      %p96 = scmp.eq.s32.totalorder %s32, 1
      %p97 = por %p95, %p96
      %p99 = scmp.ne.s32.totalorder %s84, %s98
      %p100 = scmp.eq.s32.totalorder %s32, 0
      %p101 = por %p99, %p100
      %s103 = sadd.s32 %s102, 1
      %p106 = scmp.eq.s32.totalorder %s26, 1
      %p107 = scmp.ne.s32.totalorder %s102, %s104
      %p108 = scmp.eq.s32.totalorder %s26, 0
      %p109 = por %p107, %p108
      %p110 = scmp.ne.s32.totalorder %s102, %s104
      %p111 = scmp.eq.s32.totalorder %s31, 1
      %p112 = por %p110, %p111
      %p113 = scmp.ne.s32.totalorder %s104, %s105
      %p114 = scmp.eq.s32.totalorder %s31, 0
      %p115 = por %p113, %p114
      %p116 = scmp.ne.s32.totalorder %s104, %s105
      %p117 = scmp.eq.s32.totalorder %s32, 1
      %p118 = por %p116, %p117
      %p120 = scmp.ne.s32.totalorder %s105, %s119
      %p121 = scmp.eq.s32.totalorder %s32, 0
      %p122 = por %p120, %p121
      %s124 = sadd.s32 %s123, 1
      %p127 = scmp.eq.s32.totalorder %s26, 1
      %p128 = scmp.ne.s32.totalorder %s123, %s125
      %p129 = scmp.eq.s32.totalorder %s26, 0
      %p130 = por %p128, %p129
      %p131 = scmp.ne.s32.totalorder %s123, %s125
      %p132 = scmp.eq.s32.totalorder %s31, 1
      %p133 = por %p131, %p132
      %p134 = scmp.ne.s32.totalorder %s125, %s126
      %p135 = scmp.eq.s32.totalorder %s31, 0
      %p136 = por %p134, %p135
      %p137 = scmp.ne.s32.totalorder %s125, %s126
      %p138 = scmp.eq.s32.totalorder %s32, 1
      %p139 = por %p137, %p138
      %p141 = scmp.ne.s32.totalorder %s126, %s140
      %p142 = scmp.eq.s32.totalorder %s32, 0
      %p143 = por %p141, %p142
      %s145 = sadd.s32 %s144, 1
      %p148 = scmp.eq.s32.totalorder %s26, 1
      %p149 = scmp.ne.s32.totalorder %s144, %s146
      %p150 = scmp.eq.s32.totalorder %s26, 0
      %p151 = por %p149, %p150
      %p152 = scmp.ne.s32.totalorder %s144, %s146
      %p153 = scmp.eq.s32.totalorder %s31, 1
      %p154 = por %p152, %p153
      %p155 = scmp.ne.s32.totalorder %s146, %s147
      %p156 = scmp.eq.s32.totalorder %s31, 0
      %p157 = por %p155, %p156
      %p158 = scmp.ne.s32.totalorder %s146, %s147
      %p159 = scmp.eq.s32.totalorder %s32, 1
      %p160 = por %p158, %p159
      %p162 = scmp.ne.s32.totalorder %s147, %s161
      %p163 = scmp.eq.s32.totalorder %s32, 0
      %p164 = por %p162, %p163
      %s166 = sadd.s32 %s165, 1
      %p169 = scmp.eq.s32.totalorder %s26, 1
      %p170 = scmp.ne.s32.totalorder %s165, %s167
      %p171 = scmp.eq.s32.totalorder %s26, 0
      %p172 = por %p170, %p171
      %p173 = scmp.ne.s32.totalorder %s165, %s167
      %p174 = scmp.eq.s32.totalorder %s31, 1
      %p175 = por %p173, %p174
      %p176 = scmp.ne.s32.totalorder %s167, %s168
      %p177 = scmp.eq.s32.totalorder %s31, 0
      %p178 = por %p176, %p177
      %p179 = scmp.ne.s32.totalorder %s167, %s168
      %p180 = scmp.eq.s32.totalorder %s32, 1
      %p181 = por %p179, %p180
      %p183 = scmp.ne.s32.totalorder %s168, %s182
      %p184 = scmp.eq.s32.totalorder %s32, 0
      %p185 = por %p183, %p184
      %s187 = sadd.s32 %s186, 1
      %p190 = scmp.eq.s32.totalorder %s26, 1
      %p191 = scmp.ne.s32.totalorder %s186, %s188
      %p192 = scmp.eq.s32.totalorder %s26, 0
      %p193 = por %p191, %p192
      %p194 = scmp.ne.s32.totalorder %s186, %s188
      %p195 = scmp.eq.s32.totalorder %s31, 1
      %p196 = por %p194, %p195
      %p197 = scmp.ne.s32.totalorder %s188, %s189
      %p198 = scmp.eq.s32.totalorder %s31, 0
      %p199 = por %p197, %p198
      %p200 = scmp.ne.s32.totalorder %s188, %s189
      %p201 = scmp.eq.s32.totalorder %s32, 1
      %p202 = por %p200, %p201
      %p204 = scmp.ne.s32.totalorder %s189, %s203
      %p205 = scmp.eq.s32.totalorder %s32, 0
      %p206 = por %p204, %p205
      %s208 = sadd.s32 %s207, 1
      %p211 = scmp.eq.s32.totalorder %s26, 1
      %p212 = scmp.ne.s32.totalorder %s207, %s209
      %p213 = scmp.eq.s32.totalorder %s26, 0
      %p214 = por %p212, %p213
      %p215 = scmp.ne.s32.totalorder %s207, %s209
      %p216 = scmp.eq.s32.totalorder %s31, 1
      %p217 = por %p215, %p216
      %p218 = scmp.ne.s32.totalorder %s209, %s210
      %p219 = scmp.eq.s32.totalorder %s31, 0
      %p220 = por %p218, %p219
      %p221 = scmp.ne.s32.totalorder %s209, %s210
      %p222 = scmp.eq.s32.totalorder %s32, 1
      %p223 = por %p221, %p222
      %p225 = scmp.ne.s32.totalorder %s210, %s224
      %p226 = scmp.eq.s32.totalorder %s32, 0
      %p227 = por %p225, %p226
      %s229 = sadd.s32 %s228, 1
      %p232 = scmp.eq.s32.totalorder %s26, 1
      %p233 = scmp.ne.s32.totalorder %s228, %s230
      %p234 = scmp.eq.s32.totalorder %s26, 0
      %p235 = por %p233, %p234
      %p236 = scmp.ne.s32.totalorder %s228, %s230
      %p237 = scmp.eq.s32.totalorder %s31, 1
      %p238 = por %p236, %p237
      %p239 = scmp.ne.s32.totalorder %s230, %s231
      %p240 = scmp.eq.s32.totalorder %s31, 0
      %p241 = por %p239, %p240
      %p242 = scmp.ne.s32.totalorder %s230, %s231
      %p243 = scmp.eq.s32.totalorder %s32, 1
      %p244 = por %p242, %p243
      %p246 = scmp.ne.s32.totalorder %s231, %s245
      %p247 = scmp.eq.s32.totalorder %s32, 0
      %p248 = por %p246, %p247
      %s250 = sadd.s32 %s249, 1
      %p253 = scmp.eq.s32.totalorder %s26, 1
      %p254 = scmp.ne.s32.totalorder %s249, %s251
      %p255 = scmp.eq.s32.totalorder %s26, 0
      %p256 = por %p254, %p255
      %p257 = scmp.ne.s32.totalorder %s249, %s251
      %p258 = scmp.eq.s32.totalorder %s31, 1
      %p259 = por %p257, %p258
      %p260 = scmp.ne.s32.totalorder %s251, %s252
      %p261 = scmp.eq.s32.totalorder %s31, 0
      %p262 = por %p260, %p261
      %p263 = scmp.ne.s32.totalorder %s251, %s252
      %p264 = scmp.eq.s32.totalorder %s32, 1
      %p265 = por %p263, %p264
      %p267 = scmp.ne.s32.totalorder %s252, %s266
      %p268 = scmp.eq.s32.totalorder %s32, 0
      %p269 = por %p267, %p268
      %s271 = sadd.s32 %s270, 1
      %p274 = scmp.eq.s32.totalorder %s26, 1
      %p275 = scmp.ne.s32.totalorder %s270, %s272
      %p276 = scmp.eq.s32.totalorder %s26, 0
      %p277 = por %p275, %p276
      %p278 = scmp.ne.s32.totalorder %s270, %s272
      %p279 = scmp.eq.s32.totalorder %s31, 1
      %p280 = por %p278, %p279
      %p281 = scmp.ne.s32.totalorder %s272, %s273
      %p282 = scmp.eq.s32.totalorder %s31, 0
      %p283 = por %p281, %p282
      %p284 = scmp.ne.s32.totalorder %s272, %s273
      %p285 = scmp.eq.s32.totalorder %s32, 1
      %p286 = por %p284, %p285
      %p288 = scmp.ne.s32.totalorder %s273, %s287
      %p289 = scmp.eq.s32.totalorder %s32, 0
      %p290 = por %p288, %p289
      %s292 = sadd.s32 %s291, 1
      %p295 = scmp.eq.s32.totalorder %s26, 1
      %p296 = scmp.ne.s32.totalorder %s291, %s293
      %p297 = scmp.eq.s32.totalorder %s26, 0
      %p298 = por %p296, %p297
      %p299 = scmp.ne.s32.totalorder %s291, %s293
      %p300 = scmp.eq.s32.totalorder %s31, 1
      %p301 = por %p299, %p300
      %p302 = scmp.ne.s32.totalorder %s293, %s294
      %p303 = scmp.eq.s32.totalorder %s31, 0
      %p304 = por %p302, %p303
      %p305 = scmp.ne.s32.totalorder %s293, %s294
      %p306 = scmp.eq.s32.totalorder %s32, 1
      %p307 = por %p305, %p306
      %p309 = scmp.ne.s32.totalorder %s294, %s308
      %p310 = scmp.eq.s32.totalorder %s32, 0
      %p311 = por %p309, %p310
      %s313 = sadd.s32 %s312, 1
      %p316 = scmp.eq.s32.totalorder %s26, 1
      %p317 = scmp.ne.s32.totalorder %s312, %s314
      %p318 = scmp.eq.s32.totalorder %s26, 0
      %p319 = por %p317, %p318
      %p320 = scmp.ne.s32.totalorder %s312, %s314
      %p321 = scmp.eq.s32.totalorder %s31, 1
      %p322 = por %p320, %p321
      %p323 = scmp.ne.s32.totalorder %s314, %s315
      %p324 = scmp.eq.s32.totalorder %s31, 0
      %p325 = por %p323, %p324
      %p326 = scmp.ne.s32.totalorder %s314, %s315
      %p327 = scmp.eq.s32.totalorder %s32, 1
      %p328 = por %p326, %p327
      %p330 = scmp.ne.s32.totalorder %s315, %s329
      %p331 = scmp.eq.s32.totalorder %s32, 0
      %p332 = por %p330, %p331
      %s334 = sadd.s32 %s333, 1
      %p337 = scmp.eq.s32.totalorder %s26, 1
      %p338 = scmp.ne.s32.totalorder %s333, %s335
      %p339 = scmp.eq.s32.totalorder %s26, 0
      %p340 = por %p338, %p339
      %p341 = scmp.ne.s32.totalorder %s333, %s335
      %p342 = scmp.eq.s32.totalorder %s31, 1
      %p343 = por %p341, %p342
      %p344 = scmp.ne.s32.totalorder %s335, %s336
      %p345 = scmp.eq.s32.totalorder %s31, 0
      %p346 = por %p344, %p345
      %p347 = scmp.ne.s32.totalorder %s335, %s336
      %p348 = scmp.eq.s32.totalorder %s32, 1
      %p349 = por %p347, %p348
      %p351 = scmp.ne.s32.totalorder %s336, %s350
      %p352 = scmp.eq.s32.totalorder %s32, 0
      %p353 = por %p351, %p352
      %s355 = sadd.s32 %s354, 1
      %p358 = scmp.eq.s32.totalorder %s26, 1
      %p359 = scmp.ne.s32.totalorder %s354, %s356
      %p360 = scmp.eq.s32.totalorder %s26, 0
      %p361 = por %p359, %p360
      %p362 = scmp.ne.s32.totalorder %s354, %s356
      %p363 = scmp.eq.s32.totalorder %s31, 1
      %p364 = por %p362, %p363
      %p365 = scmp.ne.s32.totalorder %s356, %s357
      %p366 = scmp.eq.s32.totalorder %s31, 0
      %p367 = por %p365, %p366
      %p368 = scmp.ne.s32.totalorder %s356, %s357
      %p369 = scmp.eq.s32.totalorder %s32, 1
      %p370 = por %p368, %p369
      %p372 = scmp.ne.s32.totalorder %s357, %s371
      %p373 = scmp.eq.s32.totalorder %s32, 0
      %p374 = por %p372, %p373
      %s376 = sadd.s32 %s375, 1
      %p379 = scmp.eq.s32.totalorder %s26, 1
      %p380 = scmp.ne.s32.totalorder %s375, %s377
      %p381 = scmp.eq.s32.totalorder %s26, 0
      %p382 = por %p380, %p381
      %p383 = scmp.ne.s32.totalorder %s375, %s377
      %p384 = scmp.eq.s32.totalorder %s31, 1
      %p385 = por %p383, %p384
      %p386 = scmp.ne.s32.totalorder %s377, %s378
      %p387 = scmp.eq.s32.totalorder %s31, 0
      %p388 = por %p386, %p387
      %p389 = scmp.ne.s32.totalorder %s377, %s378
      %p390 = scmp.eq.s32.totalorder %s32, 1
      %p391 = por %p389, %p390
      %p393 = scmp.ne.s32.totalorder %s378, %s392
      %p394 = scmp.eq.s32.totalorder %s32, 0
      %p395 = por %p393, %p394
      %s396 = ssub.s32 %s26, %s33
      %p397 = scmp.eq.s32.totalorder %s396, 0
      %s399 = sadd.s32 %s398, 1
      %s400 = scalar_select %p397, %s398, %s399
      %p403 = pneg %p397
      %p404 = scmp.eq.s32.totalorder %s26, 1
      %p405 = por %p403, %p404
      %p406 = scmp.ne.s32.totalorder %s398, %s401
      %p407 = scmp.eq.s32.totalorder %s26, 0
      %p408 = por %p406, %p407
      %p409 = scmp.ne.s32.totalorder %s398, %s401
      %p410 = scmp.eq.s32.totalorder %s31, 1
      %p411 = por %p409, %p410
      %p412 = scmp.ne.s32.totalorder %s401, %s402
      %p413 = scmp.eq.s32.totalorder %s31, 0
      %p414 = por %p412, %p413
      %p415 = scmp.ne.s32.totalorder %s401, %s402
      %p416 = scmp.eq.s32.totalorder %s32, 1
      %p417 = por %p415, %p416
      %p419 = scmp.ne.s32.totalorder %s402, %s418
      %p420 = scmp.eq.s32.totalorder %s32, 0
      %p421 = por %p419, %p420
      %p422 = scmp.le.s32.totalorder 1, %s26
      %p423 = scmp.lt.s32.totalorder %s26, 3
      %p424 = pnand %p422, %p423
      %p425 = pneg %p424
      // Predicated region
      $region9: #{tpu_custom_call.1} parent=5 // pred_check
        _
      $region10: #{tpu_custom_call.1} parent=5 // pred_check_branch
        %427 = sbr.rel (%p424) target = $region12
      $region11: #{tpu_custom_call.1} parent=5 // pred_region
        %s428 = ssub.s32 %s26, 1
        // Predicated region
        $region13: #{tpu_custom_call.1} parent=11 // pred_check
          %p429 = pneg %p73
        $region14: #{tpu_custom_call.1} parent=11 // pred_check_branch
          %431 = sbr.rel (%p429) target = $region16
        $region15: #{tpu_custom_call.1} parent=11 // pred_region
          _
        $region16: #{tpu_custom_call.1} parent=11 // pred_fallthru
          _
        // Predicated region
        $region17: #{tpu_custom_call.1} parent=11 // pred_check
          %p432 = pneg %p94
        $region18: #{tpu_custom_call.1} parent=11 // pred_check_branch
          %434 = sbr.rel (%p432) target = $region20
        $region19: #{tpu_custom_call.1} parent=11 // pred_region
          _
        $region20: #{tpu_custom_call.1} parent=11 // pred_fallthru
          _
        // Predicated region
        $region21: #{tpu_custom_call.1} parent=11 // pred_check
          %p435 = pneg %p115
        $region22: #{tpu_custom_call.1} parent=11 // pred_check_branch
          %437 = sbr.rel (%p435) target = $region24
        $region23: #{tpu_custom_call.1} parent=11 // pred_region
          _
        $region24: #{tpu_custom_call.1} parent=11 // pred_fallthru
          _
        // Predicated region
        $region25: #{tpu_custom_call.1} parent=11 // pred_check
          %p438 = pneg %p136
        $region26: #{tpu_custom_call.1} parent=11 // pred_check_branch
          %440 = sbr.rel (%p438) target = $region28
        $region27: #{tpu_custom_call.1} parent=11 // pred_region
          _
        $region28: #{tpu_custom_call.1} parent=11 // pred_fallthru
          _
        // Predicated region
        $region29: #{tpu_custom_call.1} parent=11 // pred_check
          %p441 = pneg %p157
        $region30: #{tpu_custom_call.1} parent=11 // pred_check_branch
          %443 = sbr.rel (%p441) target = $region32
        $region31: #{tpu_custom_call.1} parent=11 // pred_region
          _
        $region32: #{tpu_custom_call.1} parent=11 // pred_fallthru
          _
        // Predicated region
        $region33: #{tpu_custom_call.1} parent=11 // pred_check
          %p444 = pneg %p178
        $region34: #{tpu_custom_call.1} parent=11 // pred_check_branch
          %446 = sbr.rel (%p444) target = $region36
        $region35: #{tpu_custom_call.1} parent=11 // pred_region
          _
        $region36: #{tpu_custom_call.1} parent=11 // pred_fallthru
          _
        // Predicated region
        $region37: #{tpu_custom_call.1} parent=11 // pred_check
          %p447 = pneg %p199
        $region38: #{tpu_custom_call.1} parent=11 // pred_check_branch
          %449 = sbr.rel (%p447) target = $region40
        $region39: #{tpu_custom_call.1} parent=11 // pred_region
          _
        $region40: #{tpu_custom_call.1} parent=11 // pred_fallthru
          _
        // Predicated region
        $region41: #{tpu_custom_call.1} parent=11 // pred_check
          %p450 = pneg %p220
        $region42: #{tpu_custom_call.1} parent=11 // pred_check_branch
          %452 = sbr.rel (%p450) target = $region44
        $region43: #{tpu_custom_call.1} parent=11 // pred_region
          _
        $region44: #{tpu_custom_call.1} parent=11 // pred_fallthru
          _
        // Predicated region
        $region45: #{tpu_custom_call.1} parent=11 // pred_check
          %p453 = pneg %p241
        $region46: #{tpu_custom_call.1} parent=11 // pred_check_branch
          %455 = sbr.rel (%p453) target = $region48
        $region47: #{tpu_custom_call.1} parent=11 // pred_region
          _
        $region48: #{tpu_custom_call.1} parent=11 // pred_fallthru
          _
        // Predicated region
        $region49: #{tpu_custom_call.1} parent=11 // pred_check
          %p456 = pneg %p262
        $region50: #{tpu_custom_call.1} parent=11 // pred_check_branch
          %458 = sbr.rel (%p456) target = $region52
        $region51: #{tpu_custom_call.1} parent=11 // pred_region
          _
        $region52: #{tpu_custom_call.1} parent=11 // pred_fallthru
          _
        // Predicated region
        $region53: #{tpu_custom_call.1} parent=11 // pred_check
          %p459 = pneg %p283
        $region54: #{tpu_custom_call.1} parent=11 // pred_check_branch
          %461 = sbr.rel (%p459) target = $region56
        $region55: #{tpu_custom_call.1} parent=11 // pred_region
          _
        $region56: #{tpu_custom_call.1} parent=11 // pred_fallthru
          _
        // Predicated region
        $region57: #{tpu_custom_call.1} parent=11 // pred_check
          %p462 = pneg %p304
        $region58: #{tpu_custom_call.1} parent=11 // pred_check_branch
          %464 = sbr.rel (%p462) target = $region60
        $region59: #{tpu_custom_call.1} parent=11 // pred_region
          _
        $region60: #{tpu_custom_call.1} parent=11 // pred_fallthru
          _
        // Predicated region
        $region61: #{tpu_custom_call.1} parent=11 // pred_check
          %p465 = pneg %p325
        $region62: #{tpu_custom_call.1} parent=11 // pred_check_branch
          %467 = sbr.rel (%p465) target = $region64
        $region63: #{tpu_custom_call.1} parent=11 // pred_region
          _
        $region64: #{tpu_custom_call.1} parent=11 // pred_fallthru
          _
        // Predicated region
        $region65: #{tpu_custom_call.1} parent=11 // pred_check
          %p468 = pneg %p346
        $region66: #{tpu_custom_call.1} parent=11 // pred_check_branch
          %470 = sbr.rel (%p468) target = $region68
        $region67: #{tpu_custom_call.1} parent=11 // pred_region
          _
        $region68: #{tpu_custom_call.1} parent=11 // pred_fallthru
          _
        // Predicated region
        $region69: #{tpu_custom_call.1} parent=11 // pred_check
          %p471 = pneg %p367
        $region70: #{tpu_custom_call.1} parent=11 // pred_check_branch
          %473 = sbr.rel (%p471) target = $region72
        $region71: #{tpu_custom_call.1} parent=11 // pred_region
          _
        $region72: #{tpu_custom_call.1} parent=11 // pred_fallthru
          _
        // Predicated region
        $region73: #{tpu_custom_call.1} parent=11 // pred_check
          %p474 = pneg %p388
        $region74: #{tpu_custom_call.1} parent=11 // pred_check_branch
          %476 = sbr.rel (%p474) target = $region76
        $region75: #{tpu_custom_call.1} parent=11 // pred_region
          _
        $region76: #{tpu_custom_call.1} parent=11 // pred_fallthru
          _
      $region12: #{tpu_custom_call.1} parent=5 // pred_fallthru
        _
      %p477 = scmp.lt.s32.totalorder %s26, 2
      // Predicated region
      $region77: #{tpu_custom_call.1} parent=5 // pred_check
        %p478 = pneg %p477
      $region78: #{tpu_custom_call.1} parent=5 // pred_check_branch
        %480 = sbr.rel (%p478) target = $region80
      $region79: #{tpu_custom_call.1} parent=5 // pred_region
        // Predicated region
        $region81: #{tpu_custom_call.1} parent=79 // pred_check
          %p481 = pneg %p46
        $region82: #{tpu_custom_call.1} parent=79 // pred_check_branch
          %483 = sbr.rel (%p481) target = $region84
        $region83: #{tpu_custom_call.1} parent=79 // pred_region
          %s484 = sand.u32 %s36, 1
          %s485 = scalar_lea.sflag [#allocation5], %s484
          %s486 = sand.u32 %s36, 1
          %s487 = smul.addr %s486, 128
          %s488 = scalar_lea.vmem [#allocation4], %s487
          %s490 = ssub.s32 2048, 2048
          %491 = vsyncadd %s485, %s490
          %s492 = smul.addr %s26, 16
          %s493 = smul.addr %s492, 128
          %s494 = scalar_lea.hbm %s0, %s493
          %s495 = sshll.u32 %s488, 4
          %s496 = int_to_ptr.vmem [resolvable:$true] %s495
          %501 = dma.hbm_to_vmem [thread:$0]  %s494, 2048, %s496, %s485, 128, 128, 8
        $region84: #{tpu_custom_call.1} parent=79 // pred_fallthru
          _
      $region80: #{tpu_custom_call.1} parent=5 // pred_fallthru
        _
      %p502 = scmp.le.s32.totalorder 1, %s26
      %p503 = scmp.lt.s32.totalorder %s26, 3
      %p504 = pnand %p502, %p503
      %p505 = pneg %p504
      // Predicated region
      $region85: #{tpu_custom_call.1} parent=5 // pred_check
        _
      $region86: #{tpu_custom_call.1} parent=5 // pred_check_branch
        %507 = sbr.rel (%p504) target = $region88
      $region87: #{tpu_custom_call.1} parent=5 // pred_region
        %s508 = ssub.s32 %s26, 1
        %s509 = sand.u32 %s39, 1
        %s510 = scalar_lea.sflag [#allocation5], %s509
        %s511 = sand.u32 %s39, 1
        %s512 = smul.addr %s511, 128
        %s513 = scalar_lea.vmem [#allocation4], %s512
        // Predicated region
        $region89: #{tpu_custom_call.1} parent=87 // pred_check
          %p514 = pneg %p52
        $region90: #{tpu_custom_call.1} parent=87 // pred_check_branch
          %516 = sbr.rel (%p514) target = $region92
        $region91: #{tpu_custom_call.1} parent=87 // pred_region
          %517 = dma.done %s510, 2048
        $region92: #{tpu_custom_call.1} parent=87 // pred_fallthru
          _
        %s518 = sand.u32 %s39, 1
        %s519 = scalar_lea.sflag [#allocation5], %s518
        %s520 = sand.u32 %s39, 1
        %s521 = smul.addr %s520, 128
        %s522 = scalar_lea.vmem [#allocation4], %s521
        %p523 = pneg %p52
        %p524 = pneg %p49
        %p525 = pneg %p73
        %p526 = pneg %p70
        %p527 = pneg %p94
        %p528 = pneg %p91
        %p529 = pneg %p115
        %p530 = pneg %p112
        %p531 = pneg %p136
        %p532 = pneg %p133
        %p533 = pneg %p157
        %p534 = pneg %p154
        %p535 = pneg %p178
        %p536 = pneg %p175
        %p537 = pneg %p199
        %p538 = pneg %p196
        %p539 = pneg %p220
        %p540 = pneg %p217
        %p541 = pneg %p241
        %p542 = pneg %p238
        %p543 = pneg %p262
        %p544 = pneg %p259
        %p545 = pneg %p283
        %p546 = pneg %p280
        %p547 = pneg %p304
        %p548 = pneg %p301
        %p549 = pneg %p325
        %p550 = pneg %p322
        %p551 = pneg %p346
        %p552 = pneg %p343
        %p553 = pneg %p367
        %p554 = pneg %p364
        %p555 = pneg %p388
        %p556 = pneg %p385
        %p557 = pneg %p414
        %p558 = pneg %p411
        %p559 = scmp.lt.s32.totalorder %s31, 1
        %s560 = scalar_select %p559, %s31, 1
        %s561 = smul.addr %s560, 8
        %s562 = smul.addr %s561, 8
        %s563 = scalar_lea.vmem %s17, %s562
        %p564 = scmp.lt.s32.totalorder %s31, 1
        %s565 = scalar_select %p564, %s31, 1
        %s566 = smul.addr %s565, 8
        %s567 = smul.addr %s566, 8
        %s568 = scalar_lea.vmem %s17, %s567
        %vm570 = vcmask 64512
        %571 = vst.msk [vmem:[#allocation2] sm:$0xff] %vm570, 0.0
        %vm572 = vcmask 58368
        %573 = vst.msk [vmem:[#allocation2 + $0x8] sm:$0x3] %vm572, 0.0
        %574 = vst.msk [vmem:[#allocation2 + $0x10] sm:$0xff] %vm570, 0.0
        %575 = vst.msk [vmem:[#allocation2 + $0x18] sm:$0x3] %vm572, 0.0
        %576 = vst.msk [vmem:[#allocation2 + $0x20] sm:$0xff] %vm570, 0.0
        %577 = vst.msk [vmem:[#allocation2 + $0x28] sm:$0x3] %vm572, 0.0
        %578 = vst.msk [vmem:[#allocation2 + $0x30] sm:$0xff] %vm570, 0.0
        %579 = vst.msk [vmem:[#allocation2 + $0x38] sm:$0x3] %vm572, 0.0
        %580 = vst.msk [vmem:[#allocation2 + $0x40] sm:$0xff] %vm570, 0.0
        %581 = vst.msk [vmem:[#allocation2 + $0x48] sm:$0x3] %vm572, 0.0
        %582 = vst.msk [vmem:[#allocation2 + $0x50] sm:$0xff] %vm570, 0.0
        %583 = vst.msk [vmem:[#allocation2 + $0x58] sm:$0x3] %vm572, 0.0
        %584 = vst.msk [vmem:[#allocation2 + $0x60] sm:$0xff] %vm570, 0.0
        %585 = vst.msk [vmem:[#allocation2 + $0x68] sm:$0x3] %vm572, 0.0
        %586 = vst.msk [vmem:[#allocation2 + $0x70] sm:$0xff] %vm570, 0.0
        %587 = vst.msk [vmem:[#allocation2 + $0x78] sm:$0x3] %vm572, 0.0
        %588 = vst.msk [vmem:[#allocation2 + $0x80] sm:$0xff] %vm570, 0.0
        %589 = vst.msk [vmem:[#allocation2 + $0x88] sm:$0x3] %vm572, 0.0
        %590 = vst.msk [vmem:[#allocation2 + $0x90] sm:$0xff] %vm570, 0.0
        %591 = vst.msk [vmem:[#allocation2 + $0x98] sm:$0x3] %vm572, 0.0
        %vm592 = vcmask 588800
        %593 = vst.msk [vmem:[#allocation3] sm:$0xff] %vm592, 0.0
        %594 = vst.msk [vmem:[#allocation3 + $0x8] sm:$0xff] %vm592, 0.0
        %595 = vst.msk [vmem:[#allocation3 + $0x10] sm:$0xff] %vm592, 0.0
        %596 = vst.msk [vmem:[#allocation3 + $0x18] sm:$0xff] %vm592, 0.0
        %597 = vst.msk [vmem:[#allocation3 + $0x20] sm:$0xff] %vm592, 0.0
        %598 = vst.msk [vmem:[#allocation3 + $0x28] sm:$0xff] %vm592, 0.0
        %599 = vst.msk [vmem:[#allocation3 + $0x30] sm:$0xff] %vm592, 0.0
        %600 = vst.msk [vmem:[#allocation3 + $0x38] sm:$0xff] %vm592, 0.0
        %v601 = vld [vmem:[%s513] sm:$0xff]
        %v602 = vld [vmem:[%s513 + $0x10] sm:$0xff]
        %v603 = vld [vmem:[%s513 + $0x20] sm:$0xff]
        %v604 = vld [vmem:[%s513 + $0x30] sm:$0xff]
        %v605 = vld [vmem:[%s513 + $0x40] sm:$0xff]
        %v606 = vld [vmem:[%s513 + $0x50] sm:$0xff]
        %v607 = vld [vmem:[%s513 + $0x60] sm:$0xff]
        %v608 = vld [vmem:[%s513 + $0x70] sm:$0xff]
        %s609 = scalar_lea.vmem %s513, 8 [#allocation4]
        %v610 = vld [vmem:[%s609] sm:$0xff]
        %v611 = vld [vmem:[%s609 + $0x10] sm:$0xff]
        %v612 = vld [vmem:[%s609 + $0x20] sm:$0xff]
        %v613 = vld [vmem:[%s609 + $0x30] sm:$0xff]
        %v614 = vld [vmem:[%s609 + $0x40] sm:$0xff]
        %v615 = vld [vmem:[%s609 + $0x50] sm:$0xff]
        %v616 = vld [vmem:[%s609 + $0x60] sm:$0xff]
        %v617 = vld [vmem:[%s609 + $0x70] sm:$0xff]
        %626 = vrot.lane.b32.xlu0 %v601, 124
        %v627 = vpop.permute.xlu0 %626
        %628 = vrot.lane.b32.xlu0 %v602, 124
        %v629 = vpop.permute.xlu0 %628
        %630 = vrot.lane.b32.xlu0 %v603, 124
        %v631 = vpop.permute.xlu0 %630
        %632 = vrot.lane.b32.xlu0 %v604, 124
        %v633 = vpop.permute.xlu0 %632
        %634 = vrot.lane.b32.xlu0 %v605, 124
        %v635 = vpop.permute.xlu0 %634
        %636 = vrot.lane.b32.xlu0 %v606, 124
        %v637 = vpop.permute.xlu0 %636
        %638 = vrot.lane.b32.xlu0 %v607, 124
        %v639 = vpop.permute.xlu0 %638
        %640 = vrot.lane.b32.xlu0 %v608, 124
        %v641 = vpop.permute.xlu0 %640
        %v650 = vmax.f32 %v601, %v627
        %v651 = vmax.f32 %v602, %v629
        %v652 = vmax.f32 %v603, %v631
        %v653 = vmax.f32 %v604, %v633
        %v654 = vmax.f32 %v605, %v635
        %v655 = vmax.f32 %v606, %v637
        %v656 = vmax.f32 %v607, %v639
        %v657 = vmax.f32 %v608, %v641
        %666 = vrot.lane.b32.xlu0 %v610, 124
        %v667 = vpop.permute.xlu0 %666
        %668 = vrot.lane.b32.xlu0 %v611, 124
        %v669 = vpop.permute.xlu0 %668
        %670 = vrot.lane.b32.xlu0 %v612, 124
        %v671 = vpop.permute.xlu0 %670
        %672 = vrot.lane.b32.xlu0 %v613, 124
        %v673 = vpop.permute.xlu0 %672
        %674 = vrot.lane.b32.xlu0 %v614, 124
        %v675 = vpop.permute.xlu0 %674
        %676 = vrot.lane.b32.xlu0 %v615, 124
        %v677 = vpop.permute.xlu0 %676
        %678 = vrot.lane.b32.xlu0 %v616, 124
        %v679 = vpop.permute.xlu0 %678
        %680 = vrot.lane.b32.xlu0 %v617, 124
        %v681 = vpop.permute.xlu0 %680
        %v690 = vmax.f32 %v610, %v667
        %v691 = vmax.f32 %v611, %v669
        %v692 = vmax.f32 %v612, %v671
        %v693 = vmax.f32 %v613, %v673
        %v694 = vmax.f32 %v614, %v675
        %v695 = vmax.f32 %v615, %v677
        %v696 = vmax.f32 %v616, %v679
        %v697 = vmax.f32 %v617, %v681
        %v698 = vmax.f32 %v650, %v690
        %v699 = vmax.f32 %v651, %v691
        %v700 = vmax.f32 %v652, %v692
        %v701 = vmax.f32 %v653, %v693
        %v702 = vmax.f32 %v654, %v694
        %v703 = vmax.f32 %v655, %v695
        %v704 = vmax.f32 %v656, %v696
        %v705 = vmax.f32 %v657, %v697
        %s706 = scalar_lea.vmem [#allocation2], 16
        %vm707 = vcmask 31744
        %708 = vst.msk [vmem:[%s706 + $0x1] sm:$0xff] %vm707, %v698
        %709 = vst.msk [vmem:[%s706 + $0x11] sm:$0xff] %vm707, %v699
        %710 = vst.msk [vmem:[%s706 + $0x21] sm:$0xff] %vm707, %v700
        %711 = vst.msk [vmem:[%s706 + $0x31] sm:$0xff] %vm707, %v701
        %712 = vst.msk [vmem:[%s706 + $0x41] sm:$0xff] %vm707, %v702
        %713 = vst.msk [vmem:[%s706 + $0x51] sm:$0xff] %vm707, %v703
        %714 = vst.msk [vmem:[%s706 + $0x61] sm:$0xff] %vm707, %v704
        %715 = vst.msk [vmem:[%s706 + $0x71] sm:$0xff] %vm707, %v705
        %v716 = vld [vmem:[#allocation2] sm:$0xff]
        %v717 = vld [vmem:[#allocation2 + $0x10] sm:$0xff]
        %v718 = vld [vmem:[#allocation2 + $0x20] sm:$0xff]
        %v719 = vld [vmem:[#allocation2 + $0x30] sm:$0xff]
        %v720 = vld [vmem:[#allocation2 + $0x40] sm:$0xff]
        %v721 = vld [vmem:[#allocation2 + $0x50] sm:$0xff]
        %v722 = vld [vmem:[#allocation2 + $0x60] sm:$0xff]
        %v723 = vld [vmem:[#allocation2 + $0x70] sm:$0xff]
        %724 = vst.msk [vmem:[#allocation3] sm:$0xff] %vm707, %v716
        %725 = vst.msk [vmem:[#allocation3 + $0x8] sm:$0xff] %vm707, %v717
        %726 = vst.msk [vmem:[#allocation3 + $0x10] sm:$0xff] %vm707, %v718
        %727 = vst.msk [vmem:[#allocation3 + $0x18] sm:$0xff] %vm707, %v719
        %728 = vst.msk [vmem:[#allocation3 + $0x20] sm:$0xff] %vm707, %v720
        %729 = vst.msk [vmem:[#allocation3 + $0x28] sm:$0xff] %vm707, %v721
        %730 = vst.msk [vmem:[#allocation3 + $0x30] sm:$0xff] %vm707, %v722
        %731 = vst.msk [vmem:[#allocation3 + $0x38] sm:$0xff] %vm707, %v723
        %v732 = vld [vmem:[#allocation2 + $0x1] sm:$0xff]
        %v733 = vld [vmem:[#allocation2 + $0x11] sm:$0xff]
        %v734 = vld [vmem:[#allocation2 + $0x21] sm:$0xff]
        %v735 = vld [vmem:[#allocation2 + $0x31] sm:$0xff]
        %v736 = vld [vmem:[#allocation2 + $0x41] sm:$0xff]
        %v737 = vld [vmem:[#allocation2 + $0x51] sm:$0xff]
        %v738 = vld [vmem:[#allocation2 + $0x61] sm:$0xff]
        %v739 = vld [vmem:[#allocation2 + $0x71] sm:$0xff]
        %748 = vrot.lane.b32.xlu0 %v732, 8
        %v749 = vpop.permute.xlu0 %748
        %750 = vrot.lane.b32.xlu0 %v733, 8
        %v751 = vpop.permute.xlu0 %750
        %752 = vrot.lane.b32.xlu0 %v734, 8
        %v753 = vpop.permute.xlu0 %752
        %754 = vrot.lane.b32.xlu0 %v735, 8
        %v755 = vpop.permute.xlu0 %754
        %756 = vrot.lane.b32.xlu0 %v736, 8
        %v757 = vpop.permute.xlu0 %756
        %758 = vrot.lane.b32.xlu0 %v737, 8
        %v759 = vpop.permute.xlu0 %758
        %760 = vrot.lane.b32.xlu0 %v738, 8
        %v761 = vpop.permute.xlu0 %760
        %762 = vrot.lane.b32.xlu0 %v739, 8
        %v763 = vpop.permute.xlu0 %762
        %vm772 = vcmask 97344
        %773 = vst.msk [vmem:[#allocation3] sm:$0xff] %vm772, %v749
        %774 = vst.msk [vmem:[#allocation3 + $0x8] sm:$0xff] %vm772, %v751
        %775 = vst.msk [vmem:[#allocation3 + $0x10] sm:$0xff] %vm772, %v753
        %776 = vst.msk [vmem:[#allocation3 + $0x18] sm:$0xff] %vm772, %v755
        %777 = vst.msk [vmem:[#allocation3 + $0x20] sm:$0xff] %vm772, %v757
        %778 = vst.msk [vmem:[#allocation3 + $0x28] sm:$0xff] %vm772, %v759
        %779 = vst.msk [vmem:[#allocation3 + $0x30] sm:$0xff] %vm772, %v761
        %780 = vst.msk [vmem:[#allocation3 + $0x38] sm:$0xff] %vm772, %v763
        %v781 = vld [vmem:[#allocation2 + $0x2] sm:$0xff]
        %v782 = vld [vmem:[#allocation2 + $0x12] sm:$0xff]
        %v783 = vld [vmem:[#allocation2 + $0x22] sm:$0xff]
        %v784 = vld [vmem:[#allocation2 + $0x32] sm:$0xff]
        %v785 = vld [vmem:[#allocation2 + $0x42] sm:$0xff]
        %v786 = vld [vmem:[#allocation2 + $0x52] sm:$0xff]
        %v787 = vld [vmem:[#allocation2 + $0x62] sm:$0xff]
        %v788 = vld [vmem:[#allocation2 + $0x72] sm:$0xff]
        %797 = vrot.lane.b32.xlu0 %v781, 16
        %v798 = vpop.permute.xlu0 %797
        %799 = vrot.lane.b32.xlu0 %v782, 16
        %v800 = vpop.permute.xlu0 %799
        %801 = vrot.lane.b32.xlu0 %v783, 16
        %v802 = vpop.permute.xlu0 %801
        %803 = vrot.lane.b32.xlu0 %v784, 16
        %v804 = vpop.permute.xlu0 %803
        %805 = vrot.lane.b32.xlu0 %v785, 16
        %v806 = vpop.permute.xlu0 %805
        %807 = vrot.lane.b32.xlu0 %v786, 16
        %v808 = vpop.permute.xlu0 %807
        %809 = vrot.lane.b32.xlu0 %v787, 16
        %v810 = vpop.permute.xlu0 %809
        %811 = vrot.lane.b32.xlu0 %v788, 16
        %v812 = vpop.permute.xlu0 %811
        %vm821 = vcmask 162944
        %822 = vst.msk [vmem:[#allocation3] sm:$0xff] %vm821, %v798
        %823 = vst.msk [vmem:[#allocation3 + $0x8] sm:$0xff] %vm821, %v800
        %824 = vst.msk [vmem:[#allocation3 + $0x10] sm:$0xff] %vm821, %v802
        %825 = vst.msk [vmem:[#allocation3 + $0x18] sm:$0xff] %vm821, %v804
        %826 = vst.msk [vmem:[#allocation3 + $0x20] sm:$0xff] %vm821, %v806
        %827 = vst.msk [vmem:[#allocation3 + $0x28] sm:$0xff] %vm821, %v808
        %828 = vst.msk [vmem:[#allocation3 + $0x30] sm:$0xff] %vm821, %v810
        %829 = vst.msk [vmem:[#allocation3 + $0x38] sm:$0xff] %vm821, %v812
        %v830 = vld [vmem:[%s706] sm:$0xff]
        %v831 = vld [vmem:[%s706 + $0x10] sm:$0xff]
        %v832 = vld [vmem:[%s706 + $0x20] sm:$0xff]
        %v833 = vld [vmem:[%s706 + $0x30] sm:$0xff]
        %v834 = vld [vmem:[%s706 + $0x40] sm:$0xff]
        %v835 = vld [vmem:[%s706 + $0x50] sm:$0xff]
        %v836 = vld [vmem:[%s706 + $0x60] sm:$0xff]
        %v837 = vld [vmem:[%s706 + $0x70] sm:$0xff]
        %846 = vrot.lane.b32.xlu0 %v830, 24
        %v847 = vpop.permute.xlu0 %846
        %848 = vrot.lane.b32.xlu0 %v831, 24
        %v849 = vpop.permute.xlu0 %848
        %850 = vrot.lane.b32.xlu0 %v832, 24
        %v851 = vpop.permute.xlu0 %850
        %852 = vrot.lane.b32.xlu0 %v833, 24
        %v853 = vpop.permute.xlu0 %852
        %854 = vrot.lane.b32.xlu0 %v834, 24
        %v855 = vpop.permute.xlu0 %854
        %856 = vrot.lane.b32.xlu0 %v835, 24
        %v857 = vpop.permute.xlu0 %856
        %858 = vrot.lane.b32.xlu0 %v836, 24
        %v859 = vpop.permute.xlu0 %858
        %860 = vrot.lane.b32.xlu0 %v837, 24
        %v861 = vpop.permute.xlu0 %860
        %vm870 = vcmask 228544
        %871 = vst.msk [vmem:[#allocation3] sm:$0xff] %vm870, %v847
        %872 = vst.msk [vmem:[#allocation3 + $0x8] sm:$0xff] %vm870, %v849
        %873 = vst.msk [vmem:[#allocation3 + $0x10] sm:$0xff] %vm870, %v851
        %874 = vst.msk [vmem:[#allocation3 + $0x18] sm:$0xff] %vm870, %v853
        %875 = vst.msk [vmem:[#allocation3 + $0x20] sm:$0xff] %vm870, %v855
        %876 = vst.msk [vmem:[#allocation3 + $0x28] sm:$0xff] %vm870, %v857
        %877 = vst.msk [vmem:[#allocation3 + $0x30] sm:$0xff] %vm870, %v859
        %878 = vst.msk [vmem:[#allocation3 + $0x38] sm:$0xff] %vm870, %v861
        %v879 = vld [vmem:[%s706 + $0x1] sm:$0xff]
        %v880 = vld [vmem:[%s706 + $0x11] sm:$0xff]
        %v881 = vld [vmem:[%s706 + $0x21] sm:$0xff]
        %v882 = vld [vmem:[%s706 + $0x31] sm:$0xff]
        %v883 = vld [vmem:[%s706 + $0x41] sm:$0xff]
        %v884 = vld [vmem:[%s706 + $0x51] sm:$0xff]
        %v885 = vld [vmem:[%s706 + $0x61] sm:$0xff]
        %v886 = vld [vmem:[%s706 + $0x71] sm:$0xff]
        %895 = vrot.lane.b32.xlu0 %v879, 32
        %v896 = vpop.permute.xlu0 %895
        %897 = vrot.lane.b32.xlu0 %v880, 32
        %v898 = vpop.permute.xlu0 %897
        %899 = vrot.lane.b32.xlu0 %v881, 32
        %v900 = vpop.permute.xlu0 %899
        %901 = vrot.lane.b32.xlu0 %v882, 32
        %v902 = vpop.permute.xlu0 %901
        %903 = vrot.lane.b32.xlu0 %v883, 32
        %v904 = vpop.permute.xlu0 %903
        %905 = vrot.lane.b32.xlu0 %v884, 32
        %v906 = vpop.permute.xlu0 %905
        %907 = vrot.lane.b32.xlu0 %v885, 32
        %v908 = vpop.permute.xlu0 %907
        %909 = vrot.lane.b32.xlu0 %v886, 32
        %v910 = vpop.permute.xlu0 %909
        %vm919 = vcmask 294144
        %920 = vst.msk [vmem:[#allocation3] sm:$0xff] %vm919, %v896
        %921 = vst.msk [vmem:[#allocation3 + $0x8] sm:$0xff] %vm919, %v898
        %922 = vst.msk [vmem:[#allocation3 + $0x10] sm:$0xff] %vm919, %v900
        %923 = vst.msk [vmem:[#allocation3 + $0x18] sm:$0xff] %vm919, %v902
        %924 = vst.msk [vmem:[#allocation3 + $0x20] sm:$0xff] %vm919, %v904
        %925 = vst.msk [vmem:[#allocation3 + $0x28] sm:$0xff] %vm919, %v906
        %926 = vst.msk [vmem:[#allocation3 + $0x30] sm:$0xff] %vm919, %v908
        %927 = vst.msk [vmem:[#allocation3 + $0x38] sm:$0xff] %vm919, %v910
        %v928 = vld [vmem:[%s706 + $0x2] sm:$0xff]
        %v929 = vld [vmem:[%s706 + $0x12] sm:$0xff]
        %v930 = vld [vmem:[%s706 + $0x22] sm:$0xff]
        %v931 = vld [vmem:[%s706 + $0x32] sm:$0xff]
        %v932 = vld [vmem:[%s706 + $0x42] sm:$0xff]
        %v933 = vld [vmem:[%s706 + $0x52] sm:$0xff]
        %v934 = vld [vmem:[%s706 + $0x62] sm:$0xff]
        %v935 = vld [vmem:[%s706 + $0x72] sm:$0xff]
        %944 = vrot.lane.b32.xlu0 %v928, 40
        %v945 = vpop.permute.xlu0 %944
        %946 = vrot.lane.b32.xlu0 %v929, 40
        %v947 = vpop.permute.xlu0 %946
        %948 = vrot.lane.b32.xlu0 %v930, 40
        %v949 = vpop.permute.xlu0 %948
        %950 = vrot.lane.b32.xlu0 %v931, 40
        %v951 = vpop.permute.xlu0 %950
        %952 = vrot.lane.b32.xlu0 %v932, 40
        %v953 = vpop.permute.xlu0 %952
        %954 = vrot.lane.b32.xlu0 %v933, 40
        %v955 = vpop.permute.xlu0 %954
        %956 = vrot.lane.b32.xlu0 %v934, 40
        %v957 = vpop.permute.xlu0 %956
        %958 = vrot.lane.b32.xlu0 %v935, 40
        %v959 = vpop.permute.xlu0 %958
        %vm968 = vcmask 359744
        %969 = vst.msk [vmem:[#allocation3] sm:$0xff] %vm968, %v945
        %970 = vst.msk [vmem:[#allocation3 + $0x8] sm:$0xff] %vm968, %v947
        %971 = vst.msk [vmem:[#allocation3 + $0x10] sm:$0xff] %vm968, %v949
        %972 = vst.msk [vmem:[#allocation3 + $0x18] sm:$0xff] %vm968, %v951
        %973 = vst.msk [vmem:[#allocation3 + $0x20] sm:$0xff] %vm968, %v953
        %974 = vst.msk [vmem:[#allocation3 + $0x28] sm:$0xff] %vm968, %v955
        %975 = vst.msk [vmem:[#allocation3 + $0x30] sm:$0xff] %vm968, %v957
        %976 = vst.msk [vmem:[#allocation3 + $0x38] sm:$0xff] %vm968, %v959
        %s977 = scalar_lea.vmem [#allocation2], 32
        %v978 = vld [vmem:[%s977] sm:$0xff]
        %v979 = vld [vmem:[%s977 + $0x10] sm:$0xff]
        %v980 = vld [vmem:[%s977 + $0x20] sm:$0xff]
        %v981 = vld [vmem:[%s977 + $0x30] sm:$0xff]
        %v982 = vld [vmem:[%s977 + $0x40] sm:$0xff]
        %v983 = vld [vmem:[%s977 + $0x50] sm:$0xff]
        %v984 = vld [vmem:[%s977 + $0x60] sm:$0xff]
        %v985 = vld [vmem:[%s977 + $0x70] sm:$0xff]
        %994 = vrot.lane.b32.xlu0 %v978, 48
        %v995 = vpop.permute.xlu0 %994
        %996 = vrot.lane.b32.xlu0 %v979, 48
        %v997 = vpop.permute.xlu0 %996
        %998 = vrot.lane.b32.xlu0 %v980, 48
        %v999 = vpop.permute.xlu0 %998
        %1000 = vrot.lane.b32.xlu0 %v981, 48
        %v1001 = vpop.permute.xlu0 %1000
        %1002 = vrot.lane.b32.xlu0 %v982, 48
        %v1003 = vpop.permute.xlu0 %1002
        %1004 = vrot.lane.b32.xlu0 %v983, 48
        %v1005 = vpop.permute.xlu0 %1004
        %1006 = vrot.lane.b32.xlu0 %v984, 48
        %v1007 = vpop.permute.xlu0 %1006
        %1008 = vrot.lane.b32.xlu0 %v985, 48
        %v1009 = vpop.permute.xlu0 %1008
        %vm1018 = vcmask 425344
        %1019 = vst.msk [vmem:[#allocation3] sm:$0xff] %vm1018, %v995
        %1020 = vst.msk [vmem:[#allocation3 + $0x8] sm:$0xff] %vm1018, %v997
        %1021 = vst.msk [vmem:[#allocation3 + $0x10] sm:$0xff] %vm1018, %v999
        %1022 = vst.msk [vmem:[#allocation3 + $0x18] sm:$0xff] %vm1018, %v1001
        %1023 = vst.msk [vmem:[#allocation3 + $0x20] sm:$0xff] %vm1018, %v1003
        %1024 = vst.msk [vmem:[#allocation3 + $0x28] sm:$0xff] %vm1018, %v1005
        %1025 = vst.msk [vmem:[#allocation3 + $0x30] sm:$0xff] %vm1018, %v1007
        %1026 = vst.msk [vmem:[#allocation3 + $0x38] sm:$0xff] %vm1018, %v1009
        %v1027 = vld [vmem:[%s977 + $0x1] sm:$0xff]
        %v1028 = vld [vmem:[%s977 + $0x11] sm:$0xff]
        %v1029 = vld [vmem:[%s977 + $0x21] sm:$0xff]
        %v1030 = vld [vmem:[%s977 + $0x31] sm:$0xff]
        %v1031 = vld [vmem:[%s977 + $0x41] sm:$0xff]
        %v1032 = vld [vmem:[%s977 + $0x51] sm:$0xff]
        %v1033 = vld [vmem:[%s977 + $0x61] sm:$0xff]
        %v1034 = vld [vmem:[%s977 + $0x71] sm:$0xff]
        %1043 = vrot.lane.b32.xlu0 %v1027, 56
        %v1044 = vpop.permute.xlu0 %1043
        %1045 = vrot.lane.b32.xlu0 %v1028, 56
        %v1046 = vpop.permute.xlu0 %1045
        %1047 = vrot.lane.b32.xlu0 %v1029, 56
        %v1048 = vpop.permute.xlu0 %1047
        %1049 = vrot.lane.b32.xlu0 %v1030, 56
        %v1050 = vpop.permute.xlu0 %1049
        %1051 = vrot.lane.b32.xlu0 %v1031, 56
        %v1052 = vpop.permute.xlu0 %1051
        %1053 = vrot.lane.b32.xlu0 %v1032, 56
        %v1054 = vpop.permute.xlu0 %1053
        %1055 = vrot.lane.b32.xlu0 %v1033, 56
        %v1056 = vpop.permute.xlu0 %1055
        %1057 = vrot.lane.b32.xlu0 %v1034, 56
        %v1058 = vpop.permute.xlu0 %1057
        %vm1067 = vcmask 490944
        %1068 = vst.msk [vmem:[#allocation3] sm:$0xff] %vm1067, %v1044
        %1069 = vst.msk [vmem:[#allocation3 + $0x8] sm:$0xff] %vm1067, %v1046
        %1070 = vst.msk [vmem:[#allocation3 + $0x10] sm:$0xff] %vm1067, %v1048
        %1071 = vst.msk [vmem:[#allocation3 + $0x18] sm:$0xff] %vm1067, %v1050
        %1072 = vst.msk [vmem:[#allocation3 + $0x20] sm:$0xff] %vm1067, %v1052
        %1073 = vst.msk [vmem:[#allocation3 + $0x28] sm:$0xff] %vm1067, %v1054
        %1074 = vst.msk [vmem:[#allocation3 + $0x30] sm:$0xff] %vm1067, %v1056
        %1075 = vst.msk [vmem:[#allocation3 + $0x38] sm:$0xff] %vm1067, %v1058
        %v1076 = vld [vmem:[%s977 + $0x2] sm:$0xff]
        %v1077 = vld [vmem:[%s977 + $0x12] sm:$0xff]
        %v1078 = vld [vmem:[%s977 + $0x22] sm:$0xff]
        %v1079 = vld [vmem:[%s977 + $0x32] sm:$0xff]
        %v1080 = vld [vmem:[%s977 + $0x42] sm:$0xff]
        %v1081 = vld [vmem:[%s977 + $0x52] sm:$0xff]
        %v1082 = vld [vmem:[%s977 + $0x62] sm:$0xff]
        %v1083 = vld [vmem:[%s977 + $0x72] sm:$0xff]
        %1092 = vrot.lane.b32.xlu0 %v1076, 64
        %v1093 = vpop.permute.xlu0 %1092
        %1094 = vrot.lane.b32.xlu0 %v1077, 64
        %v1095 = vpop.permute.xlu0 %1094
        %1096 = vrot.lane.b32.xlu0 %v1078, 64
        %v1097 = vpop.permute.xlu0 %1096
        %1098 = vrot.lane.b32.xlu0 %v1079, 64
        %v1099 = vpop.permute.xlu0 %1098
        %1100 = vrot.lane.b32.xlu0 %v1080, 64
        %v1101 = vpop.permute.xlu0 %1100
        %1102 = vrot.lane.b32.xlu0 %v1081, 64
        %v1103 = vpop.permute.xlu0 %1102
        %1104 = vrot.lane.b32.xlu0 %v1082, 64
        %v1105 = vpop.permute.xlu0 %1104
        %1106 = vrot.lane.b32.xlu0 %v1083, 64
        %v1107 = vpop.permute.xlu0 %1106
        %vm1116 = vcmask 556544
        %1117 = vst.msk [vmem:[#allocation3] sm:$0xff] %vm1116, %v1093
        %1118 = vst.msk [vmem:[#allocation3 + $0x8] sm:$0xff] %vm1116, %v1095
        %1119 = vst.msk [vmem:[#allocation3 + $0x10] sm:$0xff] %vm1116, %v1097
        %1120 = vst.msk [vmem:[#allocation3 + $0x18] sm:$0xff] %vm1116, %v1099
        %1121 = vst.msk [vmem:[#allocation3 + $0x20] sm:$0xff] %vm1116, %v1101
        %1122 = vst.msk [vmem:[#allocation3 + $0x28] sm:$0xff] %vm1116, %v1103
        %1123 = vst.msk [vmem:[#allocation3 + $0x30] sm:$0xff] %vm1116, %v1105
        %1124 = vst.msk [vmem:[#allocation3 + $0x38] sm:$0xff] %vm1116, %v1107
        %v1125 = vld [vmem:[#allocation3] sm:$0xff]
        %v1126 = vld [vmem:[#allocation3 + $0x8] sm:$0xff]
        %v1127 = vld [vmem:[#allocation3 + $0x10] sm:$0xff]
        %v1128 = vld [vmem:[#allocation3 + $0x18] sm:$0xff]
        %v1129 = vld [vmem:[#allocation3 + $0x20] sm:$0xff]
        %v1130 = vld [vmem:[#allocation3 + $0x28] sm:$0xff]
        %v1131 = vld [vmem:[#allocation3 + $0x30] sm:$0xff]
        %v1132 = vld [vmem:[#allocation3 + $0x38] sm:$0xff]
        %v1133 = vpack.c.bf16 %v1126, %v1125
        %v1134 = vpack.c.bf16 %v1128, %v1127
        %v1135 = vpack.c.bf16 %v1130, %v1129
        %v1136 = vpack.c.bf16 %v1132, %v1131
        %v1137 = vld [vmem:[%s1] sm:$0xf]
        %v1138 = vld [vmem:[%s1 + $0x4] sm:$0xf]
        %v1139 = vld [vmem:[%s1 + $0x8] sm:$0xf]
        %v1140 = vld [vmem:[%s1 + $0xc] sm:$0xf]
        %v1141 = vld [vmem:[%s1 + $0x10] sm:$0xf]
        %v1142 = vld [vmem:[%s1 + $0x14] sm:$0xf]
        %v1143 = vld [vmem:[%s1 + $0x18] sm:$0xf]
        %v1144 = vld [vmem:[%s1 + $0x1c] sm:$0xf]
        %v1145 = vld [vmem:[%s1 + $0x20] sm:$0xf]
        %v1146 = vld [vmem:[%s2] sm:$0x1]
        %v1148 = vlaneseq
        %v1149 = vshrl.u32 %v1148, 7
        %v1150 = vsub.s32 0, %v1149
        %v1151 = vrot.slane %v1146, %v1150
        %v1162 = vunpack.c.l.b16 %v1137
        %v1163 = vunpack.c.l.b16 %v1138
        %v1164 = vunpack.c.l.b16 %v1139
        %v1165 = vunpack.c.l.b16 %v1140
        %v1166 = vunpack.c.l.b16 %v1141
        %v1167 = vunpack.c.l.b16 %v1142
        %v1168 = vunpack.c.l.b16 %v1143
        %v1169 = vunpack.c.l.b16 %v1144
        %v1170 = vunpack.c.l.b16 %v1145
        %v1171 = vpack.c.b16 %v1163, %v1162
        %v1172 = vpack.c.b16 %v1165, %v1164
        %v1173 = vpack.c.b16 %v1167, %v1166
        %v1174 = vpack.c.b16 %v1169, %v1168
        %v1175 = vpack.c.b16 %v1170, %v1170
        %v1181 = vsel %vm592, %v1133, 0
        %v1184 = vsel %vm592, %v1134, 0
        %v1187 = vsel %vm592, %v1135, 0
        %v1190 = vsel %vm592, %v1136, 0
        %vm1192 = vcmask 1043456
        %v1194 = vsel %vm1192, %v1175, 0
        %1196 = vmatprep.subr.bf16.mxu0 0
        %1197 = vmatpush1.bf16.msra.mxu0 0
        %1198 = vmatprep.subr.bf16.mxu0 0
        %1199 = vmatpush1.bf16.msra.mxu0 0
        %1200 = vmatprep.subr.bf16.mxu0 0
        %1201 = vmatpush1.bf16.msra.mxu0 0
        %1202 = vmatprep.subr.bf16.mxu0 0
        %1203 = vmatpush1.bf16.msra.mxu0 %v1194
        %1204 = vmatprep.subr.bf16.mxu0 0
        %1205 = vmatpush1.bf16.msra.mxu0 %v1174
        %1206 = vmatprep.subr.bf16.mxu0 0
        %1207 = vmatpush1.bf16.msra.mxu0 %v1173
        %1208 = vmatprep.subr.bf16.mxu0 0
        %1209 = vmatpush1.bf16.msra.mxu0 %v1172
        %1210 = vmatprep.subr.bf16.mxu0 0
        %1211 = vmatpush1.bf16.msra.mxu0 %v1171
        %1212 = vmatprep.subr.bf16.mxu0 0
        %1213 = vmatpush2.bf16.msra.mxu0 0
        %1214 = vmatprep.subr.bf16.mxu0 0
        %1215 = vmatpush2.bf16.msra.mxu0 0
        %1216 = vmatprep.subr.bf16.mxu0 0
        %1217 = vmatpush2.bf16.msra.mxu0 0
        %1218 = vmatprep.subr.bf16.mxu0 0
        %1219 = vmatpush2.bf16.msra.mxu0 0
        %1220 = vmatprep.subr.bf16.mxu0 0
        %1221 = vmatpush2.bf16.msra.mxu0 0
        %1222 = vmatprep.subr.bf16.mxu0 0
        %1223 = vmatpush2.bf16.msra.mxu0 0
        %1224 = vmatprep.subr.bf16.mxu0 0
        %1225 = vmatpush2.bf16.msra.mxu0 0
        %1226 = vmatprep.subr.bf16.mxu0 0
        %1227 = vmatpush2.bf16.msra.mxu0 0
        %1228 = vmatprep.mubr.bf16.mxu0 0
        %1229 = vmatmul.mubr.bf16.gmra.mxu0 %v1181
        %v1230 = vpop.f32.mrf.mxu0
        %v1231 = vadd.f32 %v1151, %v1230
        %v1232 = vpop.f32.mrf.mxu0
        %v1233 = vpop.f32.mrf.mxu0
        %v1234 = vadd.f32 %v1151, %v1233
        %v1235 = vpop.f32.mrf.mxu0
        %1236 = vmatprep.mubr.bf16.mxu0 0
        %1237 = vmatmul.mubr.bf16.gmra.mxu0 %v1184
        %v1238 = vpop.f32.mrf.mxu0
        %v1239 = vadd.f32 %v1151, %v1238
        %v1240 = vpop.f32.mrf.mxu0
        %v1241 = vpop.f32.mrf.mxu0
        %v1242 = vadd.f32 %v1151, %v1241
        %v1243 = vpop.f32.mrf.mxu0
        %1244 = vmatprep.mubr.bf16.mxu0 0
        %1245 = vmatmul.mubr.bf16.gmra.mxu0 %v1187
        %v1246 = vpop.f32.mrf.mxu0
        %v1247 = vadd.f32 %v1151, %v1246
        %v1248 = vpop.f32.mrf.mxu0
        %v1249 = vpop.f32.mrf.mxu0
        %v1250 = vadd.f32 %v1151, %v1249
        %v1251 = vpop.f32.mrf.mxu0
        %1252 = vmatprep.mubr.bf16.mxu0 0
        %1253 = vmatmul.mubr.bf16.gmra.mxu0 %v1190
        %v1254 = vpop.f32.mrf.mxu0
        %v1255 = vadd.f32 %v1151, %v1254
        %v1256 = vpop.f32.mrf.mxu0
        %v1257 = vpop.f32.mrf.mxu0
        %v1258 = vadd.f32 %v1151, %v1257
        %v1259 = vpop.f32.mrf.mxu0
        %1260 = vdwg.mxu0
        %vm1261 = vcmask 15360
        %v1262 = vsel %vm1261, %v1231, 0.0
        %1263 = vadd.xlane.f32.xlu0 %v1262
        %v1264 = vpop.xlane.xlu0 %1263
        %v1265 = vsel %vm1261, %v1234, 0.0
        %1266 = vadd.xlane.f32.xlu0 %v1265
        %v1267 = vpop.xlane.xlu0 %1266
        %v1268 = vsel %vm1261, %v1239, 0.0
        %1269 = vadd.xlane.f32.xlu0 %v1268
        %v1270 = vpop.xlane.xlu0 %1269
        %v1271 = vsel %vm1261, %v1242, 0.0
        %1272 = vadd.xlane.f32.xlu0 %v1271
        %v1273 = vpop.xlane.xlu0 %1272
        %v1274 = vsel %vm1261, %v1247, 0.0
        %1275 = vadd.xlane.f32.xlu0 %v1274
        %v1276 = vpop.xlane.xlu0 %1275
        %v1277 = vsel %vm1261, %v1250, 0.0
        %1278 = vadd.xlane.f32.xlu0 %v1277
        %v1279 = vpop.xlane.xlu0 %1278
        %v1280 = vsel %vm1261, %v1255, 0.0
        %1281 = vadd.xlane.f32.xlu0 %v1280
        %v1282 = vpop.xlane.xlu0 %1281
        %v1283 = vsel %vm1261, %v1258, 0.0
        %1284 = vadd.xlane.f32.xlu0 %v1283
        %v1285 = vpop.xlane.xlu0 %1284
        %v1286 = vadd.f32 %v1264, %v1267
        %v1287 = vadd.f32 %v1286, %v1270
        %v1288 = vadd.f32 %v1287, %v1273
        %v1289 = vadd.f32 %v1288, %v1276
        %v1290 = vadd.f32 %v1289, %v1279
        %v1291 = vadd.f32 %v1290, %v1282
        %v1292 = vadd.f32 %v1291, %v1285
        %v1293 = vrot.slane %v1292, 4
        %v1294 = vadd.f32 %v1292, %v1293
        %v1295 = vrot.slane %v1294, 2
        %v1296 = vadd.f32 %v1294, %v1295
        %v1297 = vrot.slane %v1296, 1
        %v1298 = vadd.f32 %v1296, %v1297
        %v1299 = vmul.f32 %v1298, 0.0078125
        %v1300 = vsub.f32 %v1231, %v1299
        %v1301 = vsub.f32 %v1234, %v1299
        %v1302 = vsub.f32 %v1239, %v1299
        %v1303 = vsub.f32 %v1242, %v1299
        %v1304 = vsub.f32 %v1247, %v1299
        %v1305 = vsub.f32 %v1250, %v1299
        %v1306 = vsub.f32 %v1255, %v1299
        %v1307 = vsub.f32 %v1258, %v1299
        %v1308 = vmul.f32 %v1300, %v1300
        %v1309 = vmul.f32 %v1301, %v1301
        %v1310 = vmul.f32 %v1302, %v1302
        %v1311 = vmul.f32 %v1303, %v1303
        %v1312 = vmul.f32 %v1304, %v1304
        %v1313 = vmul.f32 %v1305, %v1305
        %v1314 = vmul.f32 %v1306, %v1306
        %v1315 = vmul.f32 %v1307, %v1307
        %v1316 = vsel %vm1261, %v1308, 0.0
        %1317 = vadd.xlane.f32.xlu0 %v1316
        %v1318 = vpop.xlane.xlu0 %1317
        %v1319 = vsel %vm1261, %v1309, 0.0
        %1320 = vadd.xlane.f32.xlu0 %v1319
        %v1321 = vpop.xlane.xlu0 %1320
        %v1322 = vsel %vm1261, %v1310, 0.0
        %1323 = vadd.xlane.f32.xlu0 %v1322
        %v1324 = vpop.xlane.xlu0 %1323
        %v1325 = vsel %vm1261, %v1311, 0.0
        %1326 = vadd.xlane.f32.xlu0 %v1325
        %v1327 = vpop.xlane.xlu0 %1326
        %v1328 = vsel %vm1261, %v1312, 0.0
        %1329 = vadd.xlane.f32.xlu0 %v1328
        %v1330 = vpop.xlane.xlu0 %1329
        %v1331 = vsel %vm1261, %v1313, 0.0
        %1332 = vadd.xlane.f32.xlu0 %v1331
        %v1333 = vpop.xlane.xlu0 %1332
        %v1334 = vsel %vm1261, %v1314, 0.0
        %1335 = vadd.xlane.f32.xlu0 %v1334
        %v1336 = vpop.xlane.xlu0 %1335
        %v1337 = vsel %vm1261, %v1315, 0.0
        %1338 = vadd.xlane.f32.xlu0 %v1337
        %v1339 = vpop.xlane.xlu0 %1338
        %v1340 = vadd.f32 %v1318, %v1321
        %v1341 = vadd.f32 %v1340, %v1324
        %v1342 = vadd.f32 %v1341, %v1327
        %v1343 = vadd.f32 %v1342, %v1330
        %v1344 = vadd.f32 %v1343, %v1333
        %v1345 = vadd.f32 %v1344, %v1336
        %v1346 = vadd.f32 %v1345, %v1339
        %v1347 = vrot.slane %v1346, 4
        %v1348 = vadd.f32 %v1346, %v1347
        %v1349 = vrot.slane %v1348, 2
        %v1350 = vadd.f32 %v1348, %v1349
        %v1351 = vrot.slane %v1350, 1
        %v1352 = vadd.f32 %v1350, %v1351
        %v1353 = vmul.f32 %v1352, 0.0078125
        %v1354 = vadd.f32 %v1353, 1e-05
        %v1355 = vrsqrt.pop %v1354
        %1364 = vrot.lane.b32.xlu0 %v1231, 126
        %v1365 = vpop.permute.xlu0 %1364
        %1366 = vrot.lane.b32.xlu0 %v1234, 126
        %v1367 = vpop.permute.xlu0 %1366
        %1368 = vrot.lane.b32.xlu0 %v1239, 126
        %v1369 = vpop.permute.xlu0 %1368
        %1370 = vrot.lane.b32.xlu0 %v1242, 126
        %v1371 = vpop.permute.xlu0 %1370
        %1372 = vrot.lane.b32.xlu0 %v1247, 126
        %v1373 = vpop.permute.xlu0 %1372
        %1374 = vrot.lane.b32.xlu0 %v1250, 126
        %v1375 = vpop.permute.xlu0 %1374
        %1376 = vrot.lane.b32.xlu0 %v1255, 126
        %v1377 = vpop.permute.xlu0 %1376
        %1378 = vrot.lane.b32.xlu0 %v1258, 126
        %v1379 = vpop.permute.xlu0 %1378
        %v1388 = vsel %vm1261, %v1365, 0.0
        %1389 = vadd.xlane.f32.xlu0 %v1388
        %v1390 = vpop.xlane.xlu0 %1389
        %v1391 = vsel %vm1261, %v1367, 0.0
        %1392 = vadd.xlane.f32.xlu0 %v1391
        %v1393 = vpop.xlane.xlu0 %1392
        %v1394 = vsel %vm1261, %v1369, 0.0
        %1395 = vadd.xlane.f32.xlu0 %v1394
        %v1396 = vpop.xlane.xlu0 %1395
        %v1397 = vsel %vm1261, %v1371, 0.0
        %1398 = vadd.xlane.f32.xlu0 %v1397
        %v1399 = vpop.xlane.xlu0 %1398
        %v1400 = vsel %vm1261, %v1373, 0.0
        %1401 = vadd.xlane.f32.xlu0 %v1400
        %v1402 = vpop.xlane.xlu0 %1401
        %v1403 = vsel %vm1261, %v1375, 0.0
        %1404 = vadd.xlane.f32.xlu0 %v1403
        %v1405 = vpop.xlane.xlu0 %1404
        %v1406 = vsel %vm1261, %v1377, 0.0
        %1407 = vadd.xlane.f32.xlu0 %v1406
        %v1408 = vpop.xlane.xlu0 %1407
        %v1409 = vsel %vm1261, %v1379, 0.0
        %1410 = vadd.xlane.f32.xlu0 %v1409
        %v1411 = vpop.xlane.xlu0 %1410
        %v1412 = vadd.f32 %v1390, %v1393
        %v1413 = vadd.f32 %v1412, %v1396
        %v1414 = vadd.f32 %v1413, %v1399
        %v1415 = vadd.f32 %v1414, %v1402
        %v1416 = vadd.f32 %v1415, %v1405
        %v1417 = vadd.f32 %v1416, %v1408
        %v1418 = vadd.f32 %v1417, %v1411
        %v1419 = vrot.slane %v1418, 4
        %v1420 = vadd.f32 %v1418, %v1419
        %v1421 = vrot.slane %v1420, 2
        %v1422 = vadd.f32 %v1420, %v1421
        %v1423 = vrot.slane %v1422, 1
        %v1424 = vadd.f32 %v1422, %v1423
        %v1425 = vmul.f32 %v1424, 0.0078125
        %v1426 = vsub.f32 %v1231, %v1425
        %v1427 = vsub.f32 %v1234, %v1425
        %v1428 = vsub.f32 %v1239, %v1425
        %v1429 = vsub.f32 %v1242, %v1425
        %v1430 = vsub.f32 %v1247, %v1425
        %v1431 = vsub.f32 %v1250, %v1425
        %v1432 = vsub.f32 %v1255, %v1425
        %v1433 = vsub.f32 %v1258, %v1425
        %v1434 = vmul.f32 %v1426, %v1426
        %v1435 = vmul.f32 %v1427, %v1427
        %v1436 = vmul.f32 %v1428, %v1428
        %v1437 = vmul.f32 %v1429, %v1429
        %v1438 = vmul.f32 %v1430, %v1430
        %v1439 = vmul.f32 %v1431, %v1431
        %v1440 = vmul.f32 %v1432, %v1432
        %v1441 = vmul.f32 %v1433, %v1433
        %1450 = vrot.lane.b32.xlu0 %v1434, 126
        %v1451 = vpop.permute.xlu0 %1450
        %1452 = vrot.lane.b32.xlu0 %v1435, 126
        %v1453 = vpop.permute.xlu0 %1452
        %1454 = vrot.lane.b32.xlu0 %v1436, 126
        %v1455 = vpop.permute.xlu0 %1454
        %1456 = vrot.lane.b32.xlu0 %v1437, 126
        %v1457 = vpop.permute.xlu0 %1456
        %1458 = vrot.lane.b32.xlu0 %v1438, 126
        %v1459 = vpop.permute.xlu0 %1458
        %1460 = vrot.lane.b32.xlu0 %v1439, 126
        %v1461 = vpop.permute.xlu0 %1460
        %1462 = vrot.lane.b32.xlu0 %v1440, 126
        %v1463 = vpop.permute.xlu0 %1462
        %1464 = vrot.lane.b32.xlu0 %v1441, 126
        %v1465 = vpop.permute.xlu0 %1464
        %v1474 = vsel %vm1261, %v1451, 0.0
        %1475 = vadd.xlane.f32.xlu0 %v1474
        %v1476 = vpop.xlane.xlu0 %1475
        %v1477 = vsel %vm1261, %v1453, 0.0
        %1478 = vadd.xlane.f32.xlu0 %v1477
        %v1479 = vpop.xlane.xlu0 %1478
        %v1480 = vsel %vm1261, %v1455, 0.0
        %1481 = vadd.xlane.f32.xlu0 %v1480
        %v1482 = vpop.xlane.xlu0 %1481
        %v1483 = vsel %vm1261, %v1457, 0.0
        %1484 = vadd.xlane.f32.xlu0 %v1483
        %v1485 = vpop.xlane.xlu0 %1484
        %v1486 = vsel %vm1261, %v1459, 0.0
        %1487 = vadd.xlane.f32.xlu0 %v1486
        %v1488 = vpop.xlane.xlu0 %1487
        %v1489 = vsel %vm1261, %v1461, 0.0
        %1490 = vadd.xlane.f32.xlu0 %v1489
        %v1491 = vpop.xlane.xlu0 %1490
        %v1492 = vsel %vm1261, %v1463, 0.0
        %1493 = vadd.xlane.f32.xlu0 %v1492
        %v1494 = vpop.xlane.xlu0 %1493
        %v1495 = vsel %vm1261, %v1465, 0.0
        %1496 = vadd.xlane.f32.xlu0 %v1495
        %v1497 = vpop.xlane.xlu0 %1496
        %v1498 = vadd.f32 %v1476, %v1479
        %v1499 = vadd.f32 %v1498, %v1482
        %v1500 = vadd.f32 %v1499, %v1485
        %v1501 = vadd.f32 %v1500, %v1488
        %v1502 = vadd.f32 %v1501, %v1491
        %v1503 = vadd.f32 %v1502, %v1494
        %v1504 = vadd.f32 %v1503, %v1497
        %v1505 = vrot.slane %v1504, 4
        %v1506 = vadd.f32 %v1504, %v1505
        %v1507 = vrot.slane %v1506, 2
        %v1508 = vadd.f32 %v1506, %v1507
        %v1509 = vrot.slane %v1508, 1
        %v1510 = vadd.f32 %v1508, %v1509
        %v1511 = vmul.f32 %v1510, 0.0078125
        %v1512 = vadd.f32 %v1511, 1e-05
        %v1513 = vrsqrt.pop %v1512
        %v1514 = vlaneseq
        %v1515 = vand.u32 %v1514, 127
        %vm1516 = vcmp.lt.s32.totalorder %v1515, 2
        %v1517 = vsel %vm1516, %v1299, %v1425
        %v1518 = vsel %vm1516, %v1355, %v1513
        %v1519 = vsub.f32 %v1231, %v1517
        %v1520 = vsub.f32 %v1234, %v1517
        %v1521 = vsub.f32 %v1239, %v1517
        %v1522 = vsub.f32 %v1242, %v1517
        %v1523 = vsub.f32 %v1247, %v1517
        %v1524 = vsub.f32 %v1250, %v1517
        %v1525 = vsub.f32 %v1255, %v1517
        %v1526 = vsub.f32 %v1258, %v1517
        %v1527 = vmul.f32 %v1519, %v1518
        %v1528 = vmul.f32 %v1520, %v1518
        %v1529 = vmul.f32 %v1521, %v1518
        %v1530 = vmul.f32 %v1522, %v1518
        %v1531 = vmul.f32 %v1523, %v1518
        %v1532 = vmul.f32 %v1524, %v1518
        %v1533 = vmul.f32 %v1525, %v1518
        %v1534 = vmul.f32 %v1526, %v1518
        %v1535 = vld [vmem:[%s3] sm:$0x1]
        %v1537 = vlaneseq
        %v1538 = vshrl.u32 %v1537, 7
        %v1539 = vsub.s32 0, %v1538
        %v1540 = vrot.slane %v1535, %v1539
        %v1542 = vmul.f32 %v1527, %v1540
        %v1543 = vmul.f32 %v1528, %v1540
        %v1544 = vmul.f32 %v1529, %v1540
        %v1545 = vmul.f32 %v1530, %v1540
        %v1546 = vmul.f32 %v1531, %v1540
        %v1547 = vmul.f32 %v1532, %v1540
        %v1548 = vmul.f32 %v1533, %v1540
        %v1549 = vmul.f32 %v1534, %v1540
        %v1550 = vld [vmem:[%s4] sm:$0x1]
        %v1552 = vlaneseq
        %v1553 = vshrl.u32 %v1552, 7
        %v1554 = vsub.s32 0, %v1553
        %v1555 = vrot.slane %v1550, %v1554
        %v1557 = vadd.f32 %v1542, %v1555
        %v1558 = vadd.f32 %v1543, %v1555
        %v1559 = vadd.f32 %v1544, %v1555
        %v1560 = vadd.f32 %v1545, %v1555
        %v1561 = vadd.f32 %v1546, %v1555
        %v1562 = vadd.f32 %v1547, %v1555
        %v1563 = vadd.f32 %v1548, %v1555
        %v1564 = vadd.f32 %v1549, %v1555
        %v1565 = vmul.f32 %v1557, 0.5
        %v1566 = vmul.f32 %v1558, 0.5
        %v1567 = vmul.f32 %v1559, 0.5
        %v1568 = vmul.f32 %v1560, 0.5
        %v1569 = vmul.f32 %v1561, 0.5
        %v1570 = vmul.f32 %v1562, 0.5
        %v1571 = vmul.f32 %v1563, 0.5
        %v1572 = vmul.f32 %v1564, 0.5
        %v1573 = vmul.f32 %v1557, 0.70710677
        %v1574 = vmul.f32 %v1558, 0.70710677
        %v1575 = vmul.f32 %v1559, 0.70710677
        %v1576 = vmul.f32 %v1560, 0.70710677
        %v1577 = vmul.f32 %v1561, 0.70710677
        %v1578 = vmul.f32 %v1562, 0.70710677
        %v1579 = vmul.f32 %v1563, 0.70710677
        %v1580 = vmul.f32 %v1564, 0.70710677
        %v1581 = verf.f32.pop %v1573
        %v1582 = verf.f32.pop %v1574
        %v1583 = verf.f32.pop %v1575
        %v1584 = verf.f32.pop %v1576
        %v1585 = verf.f32.pop %v1577
        %v1586 = verf.f32.pop %v1578
        %v1587 = verf.f32.pop %v1579
        %v1588 = verf.f32.pop %v1580
        %v1589 = vadd.f32 %v1581, 1.0
        %v1590 = vadd.f32 %v1582, 1.0
        %v1591 = vadd.f32 %v1583, 1.0
        %v1592 = vadd.f32 %v1584, 1.0
        %v1593 = vadd.f32 %v1585, 1.0
        %v1594 = vadd.f32 %v1586, 1.0
        %v1595 = vadd.f32 %v1587, 1.0
        %v1596 = vadd.f32 %v1588, 1.0
        %v1597 = vmul.f32 %v1565, %v1589
        %v1598 = vmul.f32 %v1566, %v1590
        %v1599 = vmul.f32 %v1567, %v1591
        %v1600 = vmul.f32 %v1568, %v1592
        %v1601 = vmul.f32 %v1569, %v1593
        %v1602 = vmul.f32 %v1570, %v1594
        %v1603 = vmul.f32 %v1571, %v1595
        %v1604 = vmul.f32 %v1572, %v1596
        %1605 = vst.msk [vmem:[%s706 + $0x1] sm:$0xff] %vm707, %v1597
        %1606 = vst.msk [vmem:[%s706 + $0x11] sm:$0xff] %vm707, %v1598
        %1607 = vst.msk [vmem:[%s706 + $0x21] sm:$0xff] %vm707, %v1599
        %1608 = vst.msk [vmem:[%s706 + $0x31] sm:$0xff] %vm707, %v1600
        %1609 = vst.msk [vmem:[%s706 + $0x41] sm:$0xff] %vm707, %v1601
        %1610 = vst.msk [vmem:[%s706 + $0x51] sm:$0xff] %vm707, %v1602
        %1611 = vst.msk [vmem:[%s706 + $0x61] sm:$0xff] %vm707, %v1603
        %1612 = vst.msk [vmem:[%s706 + $0x71] sm:$0xff] %vm707, %v1604
        %v1613 = vld [vmem:[#allocation2] sm:$0xff]
        %v1614 = vld [vmem:[#allocation2 + $0x10] sm:$0xff]
        %v1615 = vld [vmem:[#allocation2 + $0x20] sm:$0xff]
        %v1616 = vld [vmem:[#allocation2 + $0x30] sm:$0xff]
        %v1617 = vld [vmem:[#allocation2 + $0x40] sm:$0xff]
        %v1618 = vld [vmem:[#allocation2 + $0x50] sm:$0xff]
        %v1619 = vld [vmem:[#allocation2 + $0x60] sm:$0xff]
        %v1620 = vld [vmem:[#allocation2 + $0x70] sm:$0xff]
        %1621 = vst.msk [vmem:[#allocation3] sm:$0xff] %vm707, %v1613
        %1622 = vst.msk [vmem:[#allocation3 + $0x8] sm:$0xff] %vm707, %v1614
        %1623 = vst.msk [vmem:[#allocation3 + $0x10] sm:$0xff] %vm707, %v1615
        %1624 = vst.msk [vmem:[#allocation3 + $0x18] sm:$0xff] %vm707, %v1616
        %1625 = vst.msk [vmem:[#allocation3 + $0x20] sm:$0xff] %vm707, %v1617
        %1626 = vst.msk [vmem:[#allocation3 + $0x28] sm:$0xff] %vm707, %v1618
        %1627 = vst.msk [vmem:[#allocation3 + $0x30] sm:$0xff] %vm707, %v1619
        %1628 = vst.msk [vmem:[#allocation3 + $0x38] sm:$0xff] %vm707, %v1620
        %v1629 = vld [vmem:[#allocation2 + $0x1] sm:$0xff]
        %v1630 = vld [vmem:[#allocation2 + $0x11] sm:$0xff]
        %v1631 = vld [vmem:[#allocation2 + $0x21] sm:$0xff]
        %v1632 = vld [vmem:[#allocation2 + $0x31] sm:$0xff]
        %v1633 = vld [vmem:[#allocation2 + $0x41] sm:$0xff]
        %v1634 = vld [vmem:[#allocation2 + $0x51] sm:$0xff]
        %v1635 = vld [vmem:[#allocation2 + $0x61] sm:$0xff]
        %v1636 = vld [vmem:[#allocation2 + $0x71] sm:$0xff]
        %1645 = vrot.lane.b32.xlu0 %v1629, 8
        %v1646 = vpop.permute.xlu0 %1645
        %1647 = vrot.lane.b32.xlu0 %v1630, 8
        %v1648 = vpop.permute.xlu0 %1647
        %1649 = vrot.lane.b32.xlu0 %v1631, 8
        %v1650 = vpop.permute.xlu0 %1649
        %1651 = vrot.lane.b32.xlu0 %v1632, 8
        %v1652 = vpop.permute.xlu0 %1651
        %1653 = vrot.lane.b32.xlu0 %v1633, 8
        %v1654 = vpop.permute.xlu0 %1653
        %1655 = vrot.lane.b32.xlu0 %v1634, 8
        %v1656 = vpop.permute.xlu0 %1655
        %1657 = vrot.lane.b32.xlu0 %v1635, 8
        %v1658 = vpop.permute.xlu0 %1657
        %1659 = vrot.lane.b32.xlu0 %v1636, 8
        %v1660 = vpop.permute.xlu0 %1659
        %1669 = vst.msk [vmem:[#allocation3] sm:$0xff] %vm772, %v1646
        %1670 = vst.msk [vmem:[#allocation3 + $0x8] sm:$0xff] %vm772, %v1648
        %1671 = vst.msk [vmem:[#allocation3 + $0x10] sm:$0xff] %vm772, %v1650
        %1672 = vst.msk [vmem:[#allocation3 + $0x18] sm:$0xff] %vm772, %v1652
        %1673 = vst.msk [vmem:[#allocation3 + $0x20] sm:$0xff] %vm772, %v1654
        %1674 = vst.msk [vmem:[#allocation3 + $0x28] sm:$0xff] %vm772, %v1656
        %1675 = vst.msk [vmem:[#allocation3 + $0x30] sm:$0xff] %vm772, %v1658
        %1676 = vst.msk [vmem:[#allocation3 + $0x38] sm:$0xff] %vm772, %v1660
        %v1677 = vld [vmem:[#allocation2 + $0x2] sm:$0xff]
        %v1678 = vld [vmem:[#allocation2 + $0x12] sm:$0xff]
        %v1679 = vld [vmem:[#allocation2 + $0x22] sm:$0xff]
        %v1680 = vld [vmem:[#allocation2 + $0x32] sm:$0xff]
        %v1681 = vld [vmem:[#allocation2 + $0x42] sm:$0xff]
        %v1682 = vld [vmem:[#allocation2 + $0x52] sm:$0xff]
        %v1683 = vld [vmem:[#allocation2 + $0x62] sm:$0xff]
        %v1684 = vld [vmem:[#allocation2 + $0x72] sm:$0xff]
        %1693 = vrot.lane.b32.xlu0 %v1677, 16
        %v1694 = vpop.permute.xlu0 %1693
        %1695 = vrot.lane.b32.xlu0 %v1678, 16
        %v1696 = vpop.permute.xlu0 %1695
        %1697 = vrot.lane.b32.xlu0 %v1679, 16
        %v1698 = vpop.permute.xlu0 %1697
        %1699 = vrot.lane.b32.xlu0 %v1680, 16
        %v1700 = vpop.permute.xlu0 %1699
        %1701 = vrot.lane.b32.xlu0 %v1681, 16
        %v1702 = vpop.permute.xlu0 %1701
        %1703 = vrot.lane.b32.xlu0 %v1682, 16
        %v1704 = vpop.permute.xlu0 %1703
        %1705 = vrot.lane.b32.xlu0 %v1683, 16
        %v1706 = vpop.permute.xlu0 %1705
        %1707 = vrot.lane.b32.xlu0 %v1684, 16
        %v1708 = vpop.permute.xlu0 %1707
        %1717 = vst.msk [vmem:[#allocation3] sm:$0xff] %vm821, %v1694
        %1718 = vst.msk [vmem:[#allocation3 + $0x8] sm:$0xff] %vm821, %v1696
        %1719 = vst.msk [vmem:[#allocation3 + $0x10] sm:$0xff] %vm821, %v1698
        %1720 = vst.msk [vmem:[#allocation3 + $0x18] sm:$0xff] %vm821, %v1700
        %1721 = vst.msk [vmem:[#allocation3 + $0x20] sm:$0xff] %vm821, %v1702
        %1722 = vst.msk [vmem:[#allocation3 + $0x28] sm:$0xff] %vm821, %v1704
        %1723 = vst.msk [vmem:[#allocation3 + $0x30] sm:$0xff] %vm821, %v1706
        %1724 = vst.msk [vmem:[#allocation3 + $0x38] sm:$0xff] %vm821, %v1708
        %v1725 = vld [vmem:[%s706] sm:$0xff]
        %v1726 = vld [vmem:[%s706 + $0x10] sm:$0xff]
        %v1727 = vld [vmem:[%s706 + $0x20] sm:$0xff]
        %v1728 = vld [vmem:[%s706 + $0x30] sm:$0xff]
        %v1729 = vld [vmem:[%s706 + $0x40] sm:$0xff]
        %v1730 = vld [vmem:[%s706 + $0x50] sm:$0xff]
        %v1731 = vld [vmem:[%s706 + $0x60] sm:$0xff]
        %v1732 = vld [vmem:[%s706 + $0x70] sm:$0xff]
        %1741 = vrot.lane.b32.xlu0 %v1725, 24
        %v1742 = vpop.permute.xlu0 %1741
        %1743 = vrot.lane.b32.xlu0 %v1726, 24
        %v1744 = vpop.permute.xlu0 %1743
        %1745 = vrot.lane.b32.xlu0 %v1727, 24
        %v1746 = vpop.permute.xlu0 %1745
        %1747 = vrot.lane.b32.xlu0 %v1728, 24
        %v1748 = vpop.permute.xlu0 %1747
        %1749 = vrot.lane.b32.xlu0 %v1729, 24
        %v1750 = vpop.permute.xlu0 %1749
        %1751 = vrot.lane.b32.xlu0 %v1730, 24
        %v1752 = vpop.permute.xlu0 %1751
        %1753 = vrot.lane.b32.xlu0 %v1731, 24
        %v1754 = vpop.permute.xlu0 %1753
        %1755 = vrot.lane.b32.xlu0 %v1732, 24
        %v1756 = vpop.permute.xlu0 %1755
        %1765 = vst.msk [vmem:[#allocation3] sm:$0xff] %vm870, %v1742
        %1766 = vst.msk [vmem:[#allocation3 + $0x8] sm:$0xff] %vm870, %v1744
        %1767 = vst.msk [vmem:[#allocation3 + $0x10] sm:$0xff] %vm870, %v1746
        %1768 = vst.msk [vmem:[#allocation3 + $0x18] sm:$0xff] %vm870, %v1748
        %1769 = vst.msk [vmem:[#allocation3 + $0x20] sm:$0xff] %vm870, %v1750
        %1770 = vst.msk [vmem:[#allocation3 + $0x28] sm:$0xff] %vm870, %v1752
        %1771 = vst.msk [vmem:[#allocation3 + $0x30] sm:$0xff] %vm870, %v1754
        %1772 = vst.msk [vmem:[#allocation3 + $0x38] sm:$0xff] %vm870, %v1756
        %v1773 = vld [vmem:[%s706 + $0x1] sm:$0xff]
        %v1774 = vld [vmem:[%s706 + $0x11] sm:$0xff]
        %v1775 = vld [vmem:[%s706 + $0x21] sm:$0xff]
        %v1776 = vld [vmem:[%s706 + $0x31] sm:$0xff]
        %v1777 = vld [vmem:[%s706 + $0x41] sm:$0xff]
        %v1778 = vld [vmem:[%s706 + $0x51] sm:$0xff]
        %v1779 = vld [vmem:[%s706 + $0x61] sm:$0xff]
        %v1780 = vld [vmem:[%s706 + $0x71] sm:$0xff]
        %1789 = vrot.lane.b32.xlu0 %v1773, 32
        %v1790 = vpop.permute.xlu0 %1789
        %1791 = vrot.lane.b32.xlu0 %v1774, 32
        %v1792 = vpop.permute.xlu0 %1791
        %1793 = vrot.lane.b32.xlu0 %v1775, 32
        %v1794 = vpop.permute.xlu0 %1793
        %1795 = vrot.lane.b32.xlu0 %v1776, 32
        %v1796 = vpop.permute.xlu0 %1795
        %1797 = vrot.lane.b32.xlu0 %v1777, 32
        %v1798 = vpop.permute.xlu0 %1797
        %1799 = vrot.lane.b32.xlu0 %v1778, 32
        %v1800 = vpop.permute.xlu0 %1799
        %1801 = vrot.lane.b32.xlu0 %v1779, 32
        %v1802 = vpop.permute.xlu0 %1801
        %1803 = vrot.lane.b32.xlu0 %v1780, 32
        %v1804 = vpop.permute.xlu0 %1803
        %1813 = vst.msk [vmem:[#allocation3] sm:$0xff] %vm919, %v1790
        %1814 = vst.msk [vmem:[#allocation3 + $0x8] sm:$0xff] %vm919, %v1792
        %1815 = vst.msk [vmem:[#allocation3 + $0x10] sm:$0xff] %vm919, %v1794
        %1816 = vst.msk [vmem:[#allocation3 + $0x18] sm:$0xff] %vm919, %v1796
        %1817 = vst.msk [vmem:[#allocation3 + $0x20] sm:$0xff] %vm919, %v1798
        %1818 = vst.msk [vmem:[#allocation3 + $0x28] sm:$0xff] %vm919, %v1800
        %1819 = vst.msk [vmem:[#allocation3 + $0x30] sm:$0xff] %vm919, %v1802
        %1820 = vst.msk [vmem:[#allocation3 + $0x38] sm:$0xff] %vm919, %v1804
        %v1821 = vld [vmem:[%s706 + $0x2] sm:$0xff]
        %v1822 = vld [vmem:[%s706 + $0x12] sm:$0xff]
        %v1823 = vld [vmem:[%s706 + $0x22] sm:$0xff]
        %v1824 = vld [vmem:[%s706 + $0x32] sm:$0xff]
        %v1825 = vld [vmem:[%s706 + $0x42] sm:$0xff]
        %v1826 = vld [vmem:[%s706 + $0x52] sm:$0xff]
        %v1827 = vld [vmem:[%s706 + $0x62] sm:$0xff]
        %v1828 = vld [vmem:[%s706 + $0x72] sm:$0xff]
        %1837 = vrot.lane.b32.xlu0 %v1821, 40
        %v1838 = vpop.permute.xlu0 %1837
        %1839 = vrot.lane.b32.xlu0 %v1822, 40
        %v1840 = vpop.permute.xlu0 %1839
        %1841 = vrot.lane.b32.xlu0 %v1823, 40
        %v1842 = vpop.permute.xlu0 %1841
        %1843 = vrot.lane.b32.xlu0 %v1824, 40
        %v1844 = vpop.permute.xlu0 %1843
        %1845 = vrot.lane.b32.xlu0 %v1825, 40
        %v1846 = vpop.permute.xlu0 %1845
        %1847 = vrot.lane.b32.xlu0 %v1826, 40
        %v1848 = vpop.permute.xlu0 %1847
        %1849 = vrot.lane.b32.xlu0 %v1827, 40
        %v1850 = vpop.permute.xlu0 %1849
        %1851 = vrot.lane.b32.xlu0 %v1828, 40
        %v1852 = vpop.permute.xlu0 %1851
        %1861 = vst.msk [vmem:[#allocation3] sm:$0xff] %vm968, %v1838
        %1862 = vst.msk [vmem:[#allocation3 + $0x8] sm:$0xff] %vm968, %v1840
        %1863 = vst.msk [vmem:[#allocation3 + $0x10] sm:$0xff] %vm968, %v1842
        %1864 = vst.msk [vmem:[#allocation3 + $0x18] sm:$0xff] %vm968, %v1844
        %1865 = vst.msk [vmem:[#allocation3 + $0x20] sm:$0xff] %vm968, %v1846
        %1866 = vst.msk [vmem:[#allocation3 + $0x28] sm:$0xff] %vm968, %v1848
        %1867 = vst.msk [vmem:[#allocation3 + $0x30] sm:$0xff] %vm968, %v1850
        %1868 = vst.msk [vmem:[#allocation3 + $0x38] sm:$0xff] %vm968, %v1852
        %v1869 = vld [vmem:[%s977] sm:$0xff]
        %v1870 = vld [vmem:[%s977 + $0x10] sm:$0xff]
        %v1871 = vld [vmem:[%s977 + $0x20] sm:$0xff]
        %v1872 = vld [vmem:[%s977 + $0x30] sm:$0xff]
        %v1873 = vld [vmem:[%s977 + $0x40] sm:$0xff]
        %v1874 = vld [vmem:[%s977 + $0x50] sm:$0xff]
        %v1875 = vld [vmem:[%s977 + $0x60] sm:$0xff]
        %v1876 = vld [vmem:[%s977 + $0x70] sm:$0xff]
        %1885 = vrot.lane.b32.xlu0 %v1869, 48
        %v1886 = vpop.permute.xlu0 %1885
        %1887 = vrot.lane.b32.xlu0 %v1870, 48
        %v1888 = vpop.permute.xlu0 %1887
        %1889 = vrot.lane.b32.xlu0 %v1871, 48
        %v1890 = vpop.permute.xlu0 %1889
        %1891 = vrot.lane.b32.xlu0 %v1872, 48
        %v1892 = vpop.permute.xlu0 %1891
        %1893 = vrot.lane.b32.xlu0 %v1873, 48
        %v1894 = vpop.permute.xlu0 %1893
        %1895 = vrot.lane.b32.xlu0 %v1874, 48
        %v1896 = vpop.permute.xlu0 %1895
        %1897 = vrot.lane.b32.xlu0 %v1875, 48
        %v1898 = vpop.permute.xlu0 %1897
        %1899 = vrot.lane.b32.xlu0 %v1876, 48
        %v1900 = vpop.permute.xlu0 %1899
        %1909 = vst.msk [vmem:[#allocation3] sm:$0xff] %vm1018, %v1886
        %1910 = vst.msk [vmem:[#allocation3 + $0x8] sm:$0xff] %vm1018, %v1888
        %1911 = vst.msk [vmem:[#allocation3 + $0x10] sm:$0xff] %vm1018, %v1890
        %1912 = vst.msk [vmem:[#allocation3 + $0x18] sm:$0xff] %vm1018, %v1892
        %1913 = vst.msk [vmem:[#allocation3 + $0x20] sm:$0xff] %vm1018, %v1894
        %1914 = vst.msk [vmem:[#allocation3 + $0x28] sm:$0xff] %vm1018, %v1896
        %1915 = vst.msk [vmem:[#allocation3 + $0x30] sm:$0xff] %vm1018, %v1898
        %1916 = vst.msk [vmem:[#allocation3 + $0x38] sm:$0xff] %vm1018, %v1900
        %v1917 = vld [vmem:[%s977 + $0x1] sm:$0xff]
        %v1918 = vld [vmem:[%s977 + $0x11] sm:$0xff]
        %v1919 = vld [vmem:[%s977 + $0x21] sm:$0xff]
        %v1920 = vld [vmem:[%s977 + $0x31] sm:$0xff]
        %v1921 = vld [vmem:[%s977 + $0x41] sm:$0xff]
        %v1922 = vld [vmem:[%s977 + $0x51] sm:$0xff]
        %v1923 = vld [vmem:[%s977 + $0x61] sm:$0xff]
        %v1924 = vld [vmem:[%s977 + $0x71] sm:$0xff]
        %1933 = vrot.lane.b32.xlu0 %v1917, 56
        %v1934 = vpop.permute.xlu0 %1933
        %1935 = vrot.lane.b32.xlu0 %v1918, 56
        %v1936 = vpop.permute.xlu0 %1935
        %1937 = vrot.lane.b32.xlu0 %v1919, 56
        %v1938 = vpop.permute.xlu0 %1937
        %1939 = vrot.lane.b32.xlu0 %v1920, 56
        %v1940 = vpop.permute.xlu0 %1939
        %1941 = vrot.lane.b32.xlu0 %v1921, 56
        %v1942 = vpop.permute.xlu0 %1941
        %1943 = vrot.lane.b32.xlu0 %v1922, 56
        %v1944 = vpop.permute.xlu0 %1943
        %1945 = vrot.lane.b32.xlu0 %v1923, 56
        %v1946 = vpop.permute.xlu0 %1945
        %1947 = vrot.lane.b32.xlu0 %v1924, 56
        %v1948 = vpop.permute.xlu0 %1947
        %1957 = vst.msk [vmem:[#allocation3] sm:$0xff] %vm1067, %v1934
        %1958 = vst.msk [vmem:[#allocation3 + $0x8] sm:$0xff] %vm1067, %v1936
        %1959 = vst.msk [vmem:[#allocation3 + $0x10] sm:$0xff] %vm1067, %v1938
        %1960 = vst.msk [vmem:[#allocation3 + $0x18] sm:$0xff] %vm1067, %v1940
        %1961 = vst.msk [vmem:[#allocation3 + $0x20] sm:$0xff] %vm1067, %v1942
        %1962 = vst.msk [vmem:[#allocation3 + $0x28] sm:$0xff] %vm1067, %v1944
        %1963 = vst.msk [vmem:[#allocation3 + $0x30] sm:$0xff] %vm1067, %v1946
        %1964 = vst.msk [vmem:[#allocation3 + $0x38] sm:$0xff] %vm1067, %v1948
        %v1965 = vld [vmem:[%s977 + $0x2] sm:$0xff]
        %v1966 = vld [vmem:[%s977 + $0x12] sm:$0xff]
        %v1967 = vld [vmem:[%s977 + $0x22] sm:$0xff]
        %v1968 = vld [vmem:[%s977 + $0x32] sm:$0xff]
        %v1969 = vld [vmem:[%s977 + $0x42] sm:$0xff]
        %v1970 = vld [vmem:[%s977 + $0x52] sm:$0xff]
        %v1971 = vld [vmem:[%s977 + $0x62] sm:$0xff]
        %v1972 = vld [vmem:[%s977 + $0x72] sm:$0xff]
        %1981 = vrot.lane.b32.xlu0 %v1965, 64
        %v1982 = vpop.permute.xlu0 %1981
        %1983 = vrot.lane.b32.xlu0 %v1966, 64
        %v1984 = vpop.permute.xlu0 %1983
        %1985 = vrot.lane.b32.xlu0 %v1967, 64
        %v1986 = vpop.permute.xlu0 %1985
        %1987 = vrot.lane.b32.xlu0 %v1968, 64
        %v1988 = vpop.permute.xlu0 %1987
        %1989 = vrot.lane.b32.xlu0 %v1969, 64
        %v1990 = vpop.permute.xlu0 %1989
        %1991 = vrot.lane.b32.xlu0 %v1970, 64
        %v1992 = vpop.permute.xlu0 %1991
        %1993 = vrot.lane.b32.xlu0 %v1971, 64
        %v1994 = vpop.permute.xlu0 %1993
        %1995 = vrot.lane.b32.xlu0 %v1972, 64
        %v1996 = vpop.permute.xlu0 %1995
        %2005 = vst.msk [vmem:[#allocation3] sm:$0xff] %vm1116, %v1982
        %2006 = vst.msk [vmem:[#allocation3 + $0x8] sm:$0xff] %vm1116, %v1984
        %2007 = vst.msk [vmem:[#allocation3 + $0x10] sm:$0xff] %vm1116, %v1986
        %2008 = vst.msk [vmem:[#allocation3 + $0x18] sm:$0xff] %vm1116, %v1988
        %2009 = vst.msk [vmem:[#allocation3 + $0x20] sm:$0xff] %vm1116, %v1990
        %2010 = vst.msk [vmem:[#allocation3 + $0x28] sm:$0xff] %vm1116, %v1992
        %2011 = vst.msk [vmem:[#allocation3 + $0x30] sm:$0xff] %vm1116, %v1994
        %2012 = vst.msk [vmem:[#allocation3 + $0x38] sm:$0xff] %vm1116, %v1996
        %v2013 = vld [vmem:[#allocation3] sm:$0xff]
        %v2014 = vld [vmem:[#allocation3 + $0x8] sm:$0xff]
        %v2015 = vld [vmem:[#allocation3 + $0x10] sm:$0xff]
        %v2016 = vld [vmem:[#allocation3 + $0x18] sm:$0xff]
        %v2017 = vld [vmem:[#allocation3 + $0x20] sm:$0xff]
        %v2018 = vld [vmem:[#allocation3 + $0x28] sm:$0xff]
        %v2019 = vld [vmem:[#allocation3 + $0x30] sm:$0xff]
        %v2020 = vld [vmem:[#allocation3 + $0x38] sm:$0xff]
        %v2021 = vpack.c.bf16 %v2014, %v2013
        %v2022 = vpack.c.bf16 %v2016, %v2015
        %v2023 = vpack.c.bf16 %v2018, %v2017
        %v2024 = vpack.c.bf16 %v2020, %v2019
        %v2025 = vld [vmem:[%s5] sm:$0xf]
        %v2026 = vld [vmem:[%s5 + $0x4] sm:$0xf]
        %v2027 = vld [vmem:[%s5 + $0x8] sm:$0xf]
        %v2028 = vld [vmem:[%s5 + $0xc] sm:$0xf]
        %v2029 = vld [vmem:[%s5 + $0x10] sm:$0xf]
        %v2030 = vld [vmem:[%s5 + $0x14] sm:$0xf]
        %v2031 = vld [vmem:[%s5 + $0x18] sm:$0xf]
        %v2032 = vld [vmem:[%s5 + $0x1c] sm:$0xf]
        %v2033 = vld [vmem:[%s5 + $0x20] sm:$0xf]
        %v2034 = vld [vmem:[%s6] sm:$0x1]
        %v2036 = vlaneseq
        %v2037 = vshrl.u32 %v2036, 7
        %v2038 = vsub.s32 0, %v2037
        %v2039 = vrot.slane %v2034, %v2038
        %v2050 = vunpack.c.l.b16 %v2025
        %v2051 = vunpack.c.l.b16 %v2026
        %v2052 = vunpack.c.l.b16 %v2027
        %v2053 = vunpack.c.l.b16 %v2028
        %v2054 = vunpack.c.l.b16 %v2029
        %v2055 = vunpack.c.l.b16 %v2030
        %v2056 = vunpack.c.l.b16 %v2031
        %v2057 = vunpack.c.l.b16 %v2032
        %v2058 = vunpack.c.l.b16 %v2033
        %v2059 = vpack.c.b16 %v2051, %v2050
        %v2060 = vpack.c.b16 %v2053, %v2052
        %v2061 = vpack.c.b16 %v2055, %v2054
        %v2062 = vpack.c.b16 %v2057, %v2056
        %v2063 = vpack.c.b16 %v2058, %v2058
        %v2069 = vsel %vm592, %v2021, 0
        %v2072 = vsel %vm592, %v2022, 0
        %v2075 = vsel %vm592, %v2023, 0
        %v2078 = vsel %vm592, %v2024, 0
        %v2081 = vsel %vm1192, %v2063, 0
        %2083 = vmatprep.subr.bf16.mxu0 0
        %2084 = vmatpush1.bf16.msra.mxu0 0
        %2085 = vmatprep.subr.bf16.mxu0 0
        %2086 = vmatpush1.bf16.msra.mxu0 0
        %2087 = vmatprep.subr.bf16.mxu0 0
        %2088 = vmatpush1.bf16.msra.mxu0 0
        %2089 = vmatprep.subr.bf16.mxu0 0
        %2090 = vmatpush1.bf16.msra.mxu0 %v2081
        %2091 = vmatprep.subr.bf16.mxu0 0
        %2092 = vmatpush1.bf16.msra.mxu0 %v2062
        %2093 = vmatprep.subr.bf16.mxu0 0
        %2094 = vmatpush1.bf16.msra.mxu0 %v2061
        %2095 = vmatprep.subr.bf16.mxu0 0
        %2096 = vmatpush1.bf16.msra.mxu0 %v2060
        %2097 = vmatprep.subr.bf16.mxu0 0
        %2098 = vmatpush1.bf16.msra.mxu0 %v2059
        %2099 = vmatprep.subr.bf16.mxu0 0
        %2100 = vmatpush2.bf16.msra.mxu0 0
        %2101 = vmatprep.subr.bf16.mxu0 0
        %2102 = vmatpush2.bf16.msra.mxu0 0
        %2103 = vmatprep.subr.bf16.mxu0 0
        %2104 = vmatpush2.bf16.msra.mxu0 0
        %2105 = vmatprep.subr.bf16.mxu0 0
        %2106 = vmatpush2.bf16.msra.mxu0 0
        %2107 = vmatprep.subr.bf16.mxu0 0
        %2108 = vmatpush2.bf16.msra.mxu0 0
        %2109 = vmatprep.subr.bf16.mxu0 0
        %2110 = vmatpush2.bf16.msra.mxu0 0
        %2111 = vmatprep.subr.bf16.mxu0 0
        %2112 = vmatpush2.bf16.msra.mxu0 0
        %2113 = vmatprep.subr.bf16.mxu0 0
        %2114 = vmatpush2.bf16.msra.mxu0 0
        %2115 = vmatprep.mubr.bf16.mxu0 0
        %2116 = vmatmul.mubr.bf16.gmra.mxu0 %v2069
        %v2117 = vpop.f32.mrf.mxu0
        %v2118 = vadd.f32 %v2039, %v2117
        %v2119 = vpop.f32.mrf.mxu0
        %v2120 = vpop.f32.mrf.mxu0
        %v2121 = vadd.f32 %v2039, %v2120
        %v2122 = vpop.f32.mrf.mxu0
        %2123 = vmatprep.mubr.bf16.mxu0 0
        %2124 = vmatmul.mubr.bf16.gmra.mxu0 %v2072
        %v2125 = vpop.f32.mrf.mxu0
        %v2126 = vadd.f32 %v2039, %v2125
        %v2127 = vpop.f32.mrf.mxu0
        %v2128 = vpop.f32.mrf.mxu0
        %v2129 = vadd.f32 %v2039, %v2128
        %v2130 = vpop.f32.mrf.mxu0
        %2131 = vmatprep.mubr.bf16.mxu0 0
        %2132 = vmatmul.mubr.bf16.gmra.mxu0 %v2075
        %v2133 = vpop.f32.mrf.mxu0
        %v2134 = vadd.f32 %v2039, %v2133
        %v2135 = vpop.f32.mrf.mxu0
        %v2136 = vpop.f32.mrf.mxu0
        %v2137 = vadd.f32 %v2039, %v2136
        %v2138 = vpop.f32.mrf.mxu0
        %2139 = vmatprep.mubr.bf16.mxu0 0
        %2140 = vmatmul.mubr.bf16.gmra.mxu0 %v2078
        %v2141 = vpop.f32.mrf.mxu0
        %v2142 = vadd.f32 %v2039, %v2141
        %v2143 = vpop.f32.mrf.mxu0
        %v2144 = vpop.f32.mrf.mxu0
        %v2145 = vadd.f32 %v2039, %v2144
        %v2146 = vpop.f32.mrf.mxu0
        %2147 = vdwg.mxu0
        %v2148 = vsel %vm1261, %v2118, 0.0
        %2149 = vadd.xlane.f32.xlu0 %v2148
        %v2150 = vpop.xlane.xlu0 %2149
        %v2151 = vsel %vm1261, %v2121, 0.0
        %2152 = vadd.xlane.f32.xlu0 %v2151
        %v2153 = vpop.xlane.xlu0 %2152
        %v2154 = vsel %vm1261, %v2126, 0.0
        %2155 = vadd.xlane.f32.xlu0 %v2154
        %v2156 = vpop.xlane.xlu0 %2155
        %v2157 = vsel %vm1261, %v2129, 0.0
        %2158 = vadd.xlane.f32.xlu0 %v2157
        %v2159 = vpop.xlane.xlu0 %2158
        %v2160 = vsel %vm1261, %v2134, 0.0
        %2161 = vadd.xlane.f32.xlu0 %v2160
        %v2162 = vpop.xlane.xlu0 %2161
        %v2163 = vsel %vm1261, %v2137, 0.0
        %2164 = vadd.xlane.f32.xlu0 %v2163
        %v2165 = vpop.xlane.xlu0 %2164
        %v2166 = vsel %vm1261, %v2142, 0.0
        %2167 = vadd.xlane.f32.xlu0 %v2166
        %v2168 = vpop.xlane.xlu0 %2167
        %v2169 = vsel %vm1261, %v2145, 0.0
        %2170 = vadd.xlane.f32.xlu0 %v2169
        %v2171 = vpop.xlane.xlu0 %2170
        %v2172 = vadd.f32 %v2150, %v2153
        %v2173 = vadd.f32 %v2172, %v2156
        %v2174 = vadd.f32 %v2173, %v2159
        %v2175 = vadd.f32 %v2174, %v2162
        %v2176 = vadd.f32 %v2175, %v2165
        %v2177 = vadd.f32 %v2176, %v2168
        %v2178 = vadd.f32 %v2177, %v2171
        %v2179 = vrot.slane %v2178, 4
        %v2180 = vadd.f32 %v2178, %v2179
        %v2181 = vrot.slane %v2180, 2
        %v2182 = vadd.f32 %v2180, %v2181
        %v2183 = vrot.slane %v2182, 1
        %v2184 = vadd.f32 %v2182, %v2183
        %v2185 = vmul.f32 %v2184, 0.0078125
        %v2186 = vsub.f32 %v2118, %v2185
        %v2187 = vsub.f32 %v2121, %v2185
        %v2188 = vsub.f32 %v2126, %v2185
        %v2189 = vsub.f32 %v2129, %v2185
        %v2190 = vsub.f32 %v2134, %v2185
        %v2191 = vsub.f32 %v2137, %v2185
        %v2192 = vsub.f32 %v2142, %v2185
        %v2193 = vsub.f32 %v2145, %v2185
        %v2194 = vmul.f32 %v2186, %v2186
        %v2195 = vmul.f32 %v2187, %v2187
        %v2196 = vmul.f32 %v2188, %v2188
        %v2197 = vmul.f32 %v2189, %v2189
        %v2198 = vmul.f32 %v2190, %v2190
        %v2199 = vmul.f32 %v2191, %v2191
        %v2200 = vmul.f32 %v2192, %v2192
        %v2201 = vmul.f32 %v2193, %v2193
        %v2202 = vsel %vm1261, %v2194, 0.0
        %2203 = vadd.xlane.f32.xlu0 %v2202
        %v2204 = vpop.xlane.xlu0 %2203
        %v2205 = vsel %vm1261, %v2195, 0.0
        %2206 = vadd.xlane.f32.xlu0 %v2205
        %v2207 = vpop.xlane.xlu0 %2206
        %v2208 = vsel %vm1261, %v2196, 0.0
        %2209 = vadd.xlane.f32.xlu0 %v2208
        %v2210 = vpop.xlane.xlu0 %2209
        %v2211 = vsel %vm1261, %v2197, 0.0
        %2212 = vadd.xlane.f32.xlu0 %v2211
        %v2213 = vpop.xlane.xlu0 %2212
        %v2214 = vsel %vm1261, %v2198, 0.0
        %2215 = vadd.xlane.f32.xlu0 %v2214
        %v2216 = vpop.xlane.xlu0 %2215
        %v2217 = vsel %vm1261, %v2199, 0.0
        %2218 = vadd.xlane.f32.xlu0 %v2217
        %v2219 = vpop.xlane.xlu0 %2218
        %v2220 = vsel %vm1261, %v2200, 0.0
        %2221 = vadd.xlane.f32.xlu0 %v2220
        %v2222 = vpop.xlane.xlu0 %2221
        %v2223 = vsel %vm1261, %v2201, 0.0
        %2224 = vadd.xlane.f32.xlu0 %v2223
        %v2225 = vpop.xlane.xlu0 %2224
        %v2226 = vadd.f32 %v2204, %v2207
        %v2227 = vadd.f32 %v2226, %v2210
        %v2228 = vadd.f32 %v2227, %v2213
        %v2229 = vadd.f32 %v2228, %v2216
        %v2230 = vadd.f32 %v2229, %v2219
        %v2231 = vadd.f32 %v2230, %v2222
        %v2232 = vadd.f32 %v2231, %v2225
        %v2233 = vrot.slane %v2232, 4
        %v2234 = vadd.f32 %v2232, %v2233
        %v2235 = vrot.slane %v2234, 2
        %v2236 = vadd.f32 %v2234, %v2235
        %v2237 = vrot.slane %v2236, 1
        %v2238 = vadd.f32 %v2236, %v2237
        %v2239 = vmul.f32 %v2238, 0.0078125
        %v2240 = vadd.f32 %v2239, 1e-05
        %v2241 = vrsqrt.pop %v2240
        %2250 = vrot.lane.b32.xlu0 %v2118, 126
        %v2251 = vpop.permute.xlu0 %2250
        %2252 = vrot.lane.b32.xlu0 %v2121, 126
        %v2253 = vpop.permute.xlu0 %2252
        %2254 = vrot.lane.b32.xlu0 %v2126, 126
        %v2255 = vpop.permute.xlu0 %2254
        %2256 = vrot.lane.b32.xlu0 %v2129, 126
        %v2257 = vpop.permute.xlu0 %2256
        %2258 = vrot.lane.b32.xlu0 %v2134, 126
        %v2259 = vpop.permute.xlu0 %2258
        %2260 = vrot.lane.b32.xlu0 %v2137, 126
        %v2261 = vpop.permute.xlu0 %2260
        %2262 = vrot.lane.b32.xlu0 %v2142, 126
        %v2263 = vpop.permute.xlu0 %2262
        %2264 = vrot.lane.b32.xlu0 %v2145, 126
        %v2265 = vpop.permute.xlu0 %2264
        %v2274 = vsel %vm1261, %v2251, 0.0
        %2275 = vadd.xlane.f32.xlu0 %v2274
        %v2276 = vpop.xlane.xlu0 %2275
        %v2277 = vsel %vm1261, %v2253, 0.0
        %2278 = vadd.xlane.f32.xlu0 %v2277
        %v2279 = vpop.xlane.xlu0 %2278
        %v2280 = vsel %vm1261, %v2255, 0.0
        %2281 = vadd.xlane.f32.xlu0 %v2280
        %v2282 = vpop.xlane.xlu0 %2281
        %v2283 = vsel %vm1261, %v2257, 0.0
        %2284 = vadd.xlane.f32.xlu0 %v2283
        %v2285 = vpop.xlane.xlu0 %2284
        %v2286 = vsel %vm1261, %v2259, 0.0
        %2287 = vadd.xlane.f32.xlu0 %v2286
        %v2288 = vpop.xlane.xlu0 %2287
        %v2289 = vsel %vm1261, %v2261, 0.0
        %2290 = vadd.xlane.f32.xlu0 %v2289
        %v2291 = vpop.xlane.xlu0 %2290
        %v2292 = vsel %vm1261, %v2263, 0.0
        %2293 = vadd.xlane.f32.xlu0 %v2292
        %v2294 = vpop.xlane.xlu0 %2293
        %v2295 = vsel %vm1261, %v2265, 0.0
        %2296 = vadd.xlane.f32.xlu0 %v2295
        %v2297 = vpop.xlane.xlu0 %2296
        %v2298 = vadd.f32 %v2276, %v2279
        %v2299 = vadd.f32 %v2298, %v2282
        %v2300 = vadd.f32 %v2299, %v2285
        %v2301 = vadd.f32 %v2300, %v2288
        %v2302 = vadd.f32 %v2301, %v2291
        %v2303 = vadd.f32 %v2302, %v2294
        %v2304 = vadd.f32 %v2303, %v2297
        %v2305 = vrot.slane %v2304, 4
        %v2306 = vadd.f32 %v2304, %v2305
        %v2307 = vrot.slane %v2306, 2
        %v2308 = vadd.f32 %v2306, %v2307
        %v2309 = vrot.slane %v2308, 1
        %v2310 = vadd.f32 %v2308, %v2309
        %v2311 = vmul.f32 %v2310, 0.0078125
        %v2312 = vsub.f32 %v2118, %v2311
        %v2313 = vsub.f32 %v2121, %v2311
        %v2314 = vsub.f32 %v2126, %v2311
        %v2315 = vsub.f32 %v2129, %v2311
        %v2316 = vsub.f32 %v2134, %v2311
        %v2317 = vsub.f32 %v2137, %v2311
        %v2318 = vsub.f32 %v2142, %v2311
        %v2319 = vsub.f32 %v2145, %v2311
        %v2320 = vmul.f32 %v2312, %v2312
        %v2321 = vmul.f32 %v2313, %v2313
        %v2322 = vmul.f32 %v2314, %v2314
        %v2323 = vmul.f32 %v2315, %v2315
        %v2324 = vmul.f32 %v2316, %v2316
        %v2325 = vmul.f32 %v2317, %v2317
        %v2326 = vmul.f32 %v2318, %v2318
        %v2327 = vmul.f32 %v2319, %v2319
        %2336 = vrot.lane.b32.xlu0 %v2320, 126
        %v2337 = vpop.permute.xlu0 %2336
        %2338 = vrot.lane.b32.xlu0 %v2321, 126
        %v2339 = vpop.permute.xlu0 %2338
        %2340 = vrot.lane.b32.xlu0 %v2322, 126
        %v2341 = vpop.permute.xlu0 %2340
        %2342 = vrot.lane.b32.xlu0 %v2323, 126
        %v2343 = vpop.permute.xlu0 %2342
        %2344 = vrot.lane.b32.xlu0 %v2324, 126
        %v2345 = vpop.permute.xlu0 %2344
        %2346 = vrot.lane.b32.xlu0 %v2325, 126
        %v2347 = vpop.permute.xlu0 %2346
        %2348 = vrot.lane.b32.xlu0 %v2326, 126
        %v2349 = vpop.permute.xlu0 %2348
        %2350 = vrot.lane.b32.xlu0 %v2327, 126
        %v2351 = vpop.permute.xlu0 %2350
        %v2360 = vsel %vm1261, %v2337, 0.0
        %2361 = vadd.xlane.f32.xlu0 %v2360
        %v2362 = vpop.xlane.xlu0 %2361
        %v2363 = vsel %vm1261, %v2339, 0.0
        %2364 = vadd.xlane.f32.xlu0 %v2363
        %v2365 = vpop.xlane.xlu0 %2364
        %v2366 = vsel %vm1261, %v2341, 0.0
        %2367 = vadd.xlane.f32.xlu0 %v2366
        %v2368 = vpop.xlane.xlu0 %2367
        %v2369 = vsel %vm1261, %v2343, 0.0
        %2370 = vadd.xlane.f32.xlu0 %v2369
        %v2371 = vpop.xlane.xlu0 %2370
        %v2372 = vsel %vm1261, %v2345, 0.0
        %2373 = vadd.xlane.f32.xlu0 %v2372
        %v2374 = vpop.xlane.xlu0 %2373
        %v2375 = vsel %vm1261, %v2347, 0.0
        %2376 = vadd.xlane.f32.xlu0 %v2375
        %v2377 = vpop.xlane.xlu0 %2376
        %v2378 = vsel %vm1261, %v2349, 0.0
        %2379 = vadd.xlane.f32.xlu0 %v2378
        %v2380 = vpop.xlane.xlu0 %2379
        %v2381 = vsel %vm1261, %v2351, 0.0
        %2382 = vadd.xlane.f32.xlu0 %v2381
        %v2383 = vpop.xlane.xlu0 %2382
        %v2384 = vadd.f32 %v2362, %v2365
        %v2385 = vadd.f32 %v2384, %v2368
        %v2386 = vadd.f32 %v2385, %v2371
        %v2387 = vadd.f32 %v2386, %v2374
        %v2388 = vadd.f32 %v2387, %v2377
        %v2389 = vadd.f32 %v2388, %v2380
        %v2390 = vadd.f32 %v2389, %v2383
        %v2391 = vrot.slane %v2390, 4
        %v2392 = vadd.f32 %v2390, %v2391
        %v2393 = vrot.slane %v2392, 2
        %v2394 = vadd.f32 %v2392, %v2393
        %v2395 = vrot.slane %v2394, 1
        %v2396 = vadd.f32 %v2394, %v2395
        %v2397 = vmul.f32 %v2396, 0.0078125
        %v2398 = vadd.f32 %v2397, 1e-05
        %v2399 = vrsqrt.pop %v2398
        %v2400 = vsel %vm1516, %v2185, %v2311
        %v2401 = vsel %vm1516, %v2241, %v2399
        %v2402 = vsub.f32 %v2118, %v2400
        %v2403 = vsub.f32 %v2121, %v2400
        %v2404 = vsub.f32 %v2126, %v2400
        %v2405 = vsub.f32 %v2129, %v2400
        %v2406 = vsub.f32 %v2134, %v2400
        %v2407 = vsub.f32 %v2137, %v2400
        %v2408 = vsub.f32 %v2142, %v2400
        %v2409 = vsub.f32 %v2145, %v2400
        %v2410 = vmul.f32 %v2402, %v2401
        %v2411 = vmul.f32 %v2403, %v2401
        %v2412 = vmul.f32 %v2404, %v2401
        %v2413 = vmul.f32 %v2405, %v2401
        %v2414 = vmul.f32 %v2406, %v2401
        %v2415 = vmul.f32 %v2407, %v2401
        %v2416 = vmul.f32 %v2408, %v2401
        %v2417 = vmul.f32 %v2409, %v2401
        %v2418 = vld [vmem:[%s7] sm:$0x1]
        %v2420 = vlaneseq
        %v2421 = vshrl.u32 %v2420, 7
        %v2422 = vsub.s32 0, %v2421
        %v2423 = vrot.slane %v2418, %v2422
        %v2425 = vmul.f32 %v2410, %v2423
        %v2426 = vmul.f32 %v2411, %v2423
        %v2427 = vmul.f32 %v2412, %v2423
        %v2428 = vmul.f32 %v2413, %v2423
        %v2429 = vmul.f32 %v2414, %v2423
        %v2430 = vmul.f32 %v2415, %v2423
        %v2431 = vmul.f32 %v2416, %v2423
        %v2432 = vmul.f32 %v2417, %v2423
        %v2433 = vld [vmem:[%s8] sm:$0x1]
        %v2435 = vlaneseq
        %v2436 = vshrl.u32 %v2435, 7
        %v2437 = vsub.s32 0, %v2436
        %v2438 = vrot.slane %v2433, %v2437
        %v2440 = vadd.f32 %v2425, %v2438
        %v2441 = vadd.f32 %v2426, %v2438
        %v2442 = vadd.f32 %v2427, %v2438
        %v2443 = vadd.f32 %v2428, %v2438
        %v2444 = vadd.f32 %v2429, %v2438
        %v2445 = vadd.f32 %v2430, %v2438
        %v2446 = vadd.f32 %v2431, %v2438
        %v2447 = vadd.f32 %v2432, %v2438
        %v2448 = vadd.f32 %v2440, %v698
        %v2449 = vadd.f32 %v2441, %v699
        %v2450 = vadd.f32 %v2442, %v700
        %v2451 = vadd.f32 %v2443, %v701
        %v2452 = vadd.f32 %v2444, %v702
        %v2453 = vadd.f32 %v2445, %v703
        %v2454 = vadd.f32 %v2446, %v704
        %v2455 = vadd.f32 %v2447, %v705
        %v2456 = vmul.f32 %v2448, 0.5
        %v2457 = vmul.f32 %v2449, 0.5
        %v2458 = vmul.f32 %v2450, 0.5
        %v2459 = vmul.f32 %v2451, 0.5
        %v2460 = vmul.f32 %v2452, 0.5
        %v2461 = vmul.f32 %v2453, 0.5
        %v2462 = vmul.f32 %v2454, 0.5
        %v2463 = vmul.f32 %v2455, 0.5
        %v2464 = vmul.f32 %v2448, 0.70710677
        %v2465 = vmul.f32 %v2449, 0.70710677
        %v2466 = vmul.f32 %v2450, 0.70710677
        %v2467 = vmul.f32 %v2451, 0.70710677
        %v2468 = vmul.f32 %v2452, 0.70710677
        %v2469 = vmul.f32 %v2453, 0.70710677
        %v2470 = vmul.f32 %v2454, 0.70710677
        %v2471 = vmul.f32 %v2455, 0.70710677
        %v2472 = verf.f32.pop %v2464
        %v2473 = verf.f32.pop %v2465
        %v2474 = verf.f32.pop %v2466
        %v2475 = verf.f32.pop %v2467
        %v2476 = verf.f32.pop %v2468
        %v2477 = verf.f32.pop %v2469
        %v2478 = verf.f32.pop %v2470
        %v2479 = verf.f32.pop %v2471
        %v2480 = vadd.f32 %v2472, 1.0
        %v2481 = vadd.f32 %v2473, 1.0
        %v2482 = vadd.f32 %v2474, 1.0
        %v2483 = vadd.f32 %v2475, 1.0
        %v2484 = vadd.f32 %v2476, 1.0
        %v2485 = vadd.f32 %v2477, 1.0
        %v2486 = vadd.f32 %v2478, 1.0
        %v2487 = vadd.f32 %v2479, 1.0
        %v2488 = vmul.f32 %v2456, %v2480
        %v2489 = vmul.f32 %v2457, %v2481
        %v2490 = vmul.f32 %v2458, %v2482
        %v2491 = vmul.f32 %v2459, %v2483
        %v2492 = vmul.f32 %v2460, %v2484
        %v2493 = vmul.f32 %v2461, %v2485
        %v2494 = vmul.f32 %v2462, %v2486
        %v2495 = vmul.f32 %v2463, %v2487
        %2496 = vst.msk [vmem:[%s706 + $0x1] sm:$0xff] %vm707, %v2488
        %2497 = vst.msk [vmem:[%s706 + $0x11] sm:$0xff] %vm707, %v2489
        %2498 = vst.msk [vmem:[%s706 + $0x21] sm:$0xff] %vm707, %v2490
        %2499 = vst.msk [vmem:[%s706 + $0x31] sm:$0xff] %vm707, %v2491
        %2500 = vst.msk [vmem:[%s706 + $0x41] sm:$0xff] %vm707, %v2492
        %2501 = vst.msk [vmem:[%s706 + $0x51] sm:$0xff] %vm707, %v2493
        %2502 = vst.msk [vmem:[%s706 + $0x61] sm:$0xff] %vm707, %v2494
        %2503 = vst.msk [vmem:[%s706 + $0x71] sm:$0xff] %vm707, %v2495
        %v2504 = vld [vmem:[#allocation2] sm:$0xff]
        %v2505 = vld [vmem:[#allocation2 + $0x10] sm:$0xff]
        %v2506 = vld [vmem:[#allocation2 + $0x20] sm:$0xff]
        %v2507 = vld [vmem:[#allocation2 + $0x30] sm:$0xff]
        %v2508 = vld [vmem:[#allocation2 + $0x40] sm:$0xff]
        %v2509 = vld [vmem:[#allocation2 + $0x50] sm:$0xff]
        %v2510 = vld [vmem:[#allocation2 + $0x60] sm:$0xff]
        %v2511 = vld [vmem:[#allocation2 + $0x70] sm:$0xff]
        %2512 = vst.msk [vmem:[#allocation3] sm:$0xff] %vm707, %v2504
        %2513 = vst.msk [vmem:[#allocation3 + $0x8] sm:$0xff] %vm707, %v2505
        %2514 = vst.msk [vmem:[#allocation3 + $0x10] sm:$0xff] %vm707, %v2506
        %2515 = vst.msk [vmem:[#allocation3 + $0x18] sm:$0xff] %vm707, %v2507
        %2516 = vst.msk [vmem:[#allocation3 + $0x20] sm:$0xff] %vm707, %v2508
        %2517 = vst.msk [vmem:[#allocation3 + $0x28] sm:$0xff] %vm707, %v2509
        %2518 = vst.msk [vmem:[#allocation3 + $0x30] sm:$0xff] %vm707, %v2510
        %2519 = vst.msk [vmem:[#allocation3 + $0x38] sm:$0xff] %vm707, %v2511
        %v2520 = vld [vmem:[#allocation2 + $0x1] sm:$0xff]
        %v2521 = vld [vmem:[#allocation2 + $0x11] sm:$0xff]
        %v2522 = vld [vmem:[#allocation2 + $0x21] sm:$0xff]
        %v2523 = vld [vmem:[#allocation2 + $0x31] sm:$0xff]
        %v2524 = vld [vmem:[#allocation2 + $0x41] sm:$0xff]
        %v2525 = vld [vmem:[#allocation2 + $0x51] sm:$0xff]
        %v2526 = vld [vmem:[#allocation2 + $0x61] sm:$0xff]
        %v2527 = vld [vmem:[#allocation2 + $0x71] sm:$0xff]
        %2536 = vrot.lane.b32.xlu0 %v2520, 8
        %v2537 = vpop.permute.xlu0 %2536
        %2538 = vrot.lane.b32.xlu0 %v2521, 8
        %v2539 = vpop.permute.xlu0 %2538
        %2540 = vrot.lane.b32.xlu0 %v2522, 8
        %v2541 = vpop.permute.xlu0 %2540
        %2542 = vrot.lane.b32.xlu0 %v2523, 8
        %v2543 = vpop.permute.xlu0 %2542
        %2544 = vrot.lane.b32.xlu0 %v2524, 8
        %v2545 = vpop.permute.xlu0 %2544
        %2546 = vrot.lane.b32.xlu0 %v2525, 8
        %v2547 = vpop.permute.xlu0 %2546
        %2548 = vrot.lane.b32.xlu0 %v2526, 8
        %v2549 = vpop.permute.xlu0 %2548
        %2550 = vrot.lane.b32.xlu0 %v2527, 8
        %v2551 = vpop.permute.xlu0 %2550
        %2560 = vst.msk [vmem:[#allocation3] sm:$0xff] %vm772, %v2537
        %2561 = vst.msk [vmem:[#allocation3 + $0x8] sm:$0xff] %vm772, %v2539
        %2562 = vst.msk [vmem:[#allocation3 + $0x10] sm:$0xff] %vm772, %v2541
        %2563 = vst.msk [vmem:[#allocation3 + $0x18] sm:$0xff] %vm772, %v2543
        %2564 = vst.msk [vmem:[#allocation3 + $0x20] sm:$0xff] %vm772, %v2545
        %2565 = vst.msk [vmem:[#allocation3 + $0x28] sm:$0xff] %vm772, %v2547
        %2566 = vst.msk [vmem:[#allocation3 + $0x30] sm:$0xff] %vm772, %v2549
        %2567 = vst.msk [vmem:[#allocation3 + $0x38] sm:$0xff] %vm772, %v2551
        %v2568 = vld [vmem:[#allocation2 + $0x2] sm:$0xff]
        %v2569 = vld [vmem:[#allocation2 + $0x12] sm:$0xff]
        %v2570 = vld [vmem:[#allocation2 + $0x22] sm:$0xff]
        %v2571 = vld [vmem:[#allocation2 + $0x32] sm:$0xff]
        %v2572 = vld [vmem:[#allocation2 + $0x42] sm:$0xff]
        %v2573 = vld [vmem:[#allocation2 + $0x52] sm:$0xff]
        %v2574 = vld [vmem:[#allocation2 + $0x62] sm:$0xff]
        %v2575 = vld [vmem:[#allocation2 + $0x72] sm:$0xff]
        %2584 = vrot.lane.b32.xlu0 %v2568, 16
        %v2585 = vpop.permute.xlu0 %2584
        %2586 = vrot.lane.b32.xlu0 %v2569, 16
        %v2587 = vpop.permute.xlu0 %2586
        %2588 = vrot.lane.b32.xlu0 %v2570, 16
        %v2589 = vpop.permute.xlu0 %2588
        %2590 = vrot.lane.b32.xlu0 %v2571, 16
        %v2591 = vpop.permute.xlu0 %2590
        %2592 = vrot.lane.b32.xlu0 %v2572, 16
        %v2593 = vpop.permute.xlu0 %2592
        %2594 = vrot.lane.b32.xlu0 %v2573, 16
        %v2595 = vpop.permute.xlu0 %2594
        %2596 = vrot.lane.b32.xlu0 %v2574, 16
        %v2597 = vpop.permute.xlu0 %2596
        %2598 = vrot.lane.b32.xlu0 %v2575, 16
        %v2599 = vpop.permute.xlu0 %2598
        %2608 = vst.msk [vmem:[#allocation3] sm:$0xff] %vm821, %v2585
        %2609 = vst.msk [vmem:[#allocation3 + $0x8] sm:$0xff] %vm821, %v2587
        %2610 = vst.msk [vmem:[#allocation3 + $0x10] sm:$0xff] %vm821, %v2589
        %2611 = vst.msk [vmem:[#allocation3 + $0x18] sm:$0xff] %vm821, %v2591
        %2612 = vst.msk [vmem:[#allocation3 + $0x20] sm:$0xff] %vm821, %v2593
        %2613 = vst.msk [vmem:[#allocation3 + $0x28] sm:$0xff] %vm821, %v2595
        %2614 = vst.msk [vmem:[#allocation3 + $0x30] sm:$0xff] %vm821, %v2597
        %2615 = vst.msk [vmem:[#allocation3 + $0x38] sm:$0xff] %vm821, %v2599
        %v2616 = vld [vmem:[%s706] sm:$0xff]
        %v2617 = vld [vmem:[%s706 + $0x10] sm:$0xff]
        %v2618 = vld [vmem:[%s706 + $0x20] sm:$0xff]
        %v2619 = vld [vmem:[%s706 + $0x30] sm:$0xff]
        %v2620 = vld [vmem:[%s706 + $0x40] sm:$0xff]
        %v2621 = vld [vmem:[%s706 + $0x50] sm:$0xff]
        %v2622 = vld [vmem:[%s706 + $0x60] sm:$0xff]
        %v2623 = vld [vmem:[%s706 + $0x70] sm:$0xff]
        %2632 = vrot.lane.b32.xlu0 %v2616, 24
        %v2633 = vpop.permute.xlu0 %2632
        %2634 = vrot.lane.b32.xlu0 %v2617, 24
        %v2635 = vpop.permute.xlu0 %2634
        %2636 = vrot.lane.b32.xlu0 %v2618, 24
        %v2637 = vpop.permute.xlu0 %2636
        %2638 = vrot.lane.b32.xlu0 %v2619, 24
        %v2639 = vpop.permute.xlu0 %2638
        %2640 = vrot.lane.b32.xlu0 %v2620, 24
        %v2641 = vpop.permute.xlu0 %2640
        %2642 = vrot.lane.b32.xlu0 %v2621, 24
        %v2643 = vpop.permute.xlu0 %2642
        %2644 = vrot.lane.b32.xlu0 %v2622, 24
        %v2645 = vpop.permute.xlu0 %2644
        %2646 = vrot.lane.b32.xlu0 %v2623, 24
        %v2647 = vpop.permute.xlu0 %2646
        %2656 = vst.msk [vmem:[#allocation3] sm:$0xff] %vm870, %v2633
        %2657 = vst.msk [vmem:[#allocation3 + $0x8] sm:$0xff] %vm870, %v2635
        %2658 = vst.msk [vmem:[#allocation3 + $0x10] sm:$0xff] %vm870, %v2637
        %2659 = vst.msk [vmem:[#allocation3 + $0x18] sm:$0xff] %vm870, %v2639
        %2660 = vst.msk [vmem:[#allocation3 + $0x20] sm:$0xff] %vm870, %v2641
        %2661 = vst.msk [vmem:[#allocation3 + $0x28] sm:$0xff] %vm870, %v2643
        %2662 = vst.msk [vmem:[#allocation3 + $0x30] sm:$0xff] %vm870, %v2645
        %2663 = vst.msk [vmem:[#allocation3 + $0x38] sm:$0xff] %vm870, %v2647
        %v2664 = vld [vmem:[%s706 + $0x1] sm:$0xff]
        %v2665 = vld [vmem:[%s706 + $0x11] sm:$0xff]
        %v2666 = vld [vmem:[%s706 + $0x21] sm:$0xff]
        %v2667 = vld [vmem:[%s706 + $0x31] sm:$0xff]
        %v2668 = vld [vmem:[%s706 + $0x41] sm:$0xff]
        %v2669 = vld [vmem:[%s706 + $0x51] sm:$0xff]
        %v2670 = vld [vmem:[%s706 + $0x61] sm:$0xff]
        %v2671 = vld [vmem:[%s706 + $0x71] sm:$0xff]
        %2680 = vrot.lane.b32.xlu0 %v2664, 32
        %v2681 = vpop.permute.xlu0 %2680
        %2682 = vrot.lane.b32.xlu0 %v2665, 32
        %v2683 = vpop.permute.xlu0 %2682
        %2684 = vrot.lane.b32.xlu0 %v2666, 32
        %v2685 = vpop.permute.xlu0 %2684
        %2686 = vrot.lane.b32.xlu0 %v2667, 32
        %v2687 = vpop.permute.xlu0 %2686
        %2688 = vrot.lane.b32.xlu0 %v2668, 32
        %v2689 = vpop.permute.xlu0 %2688
        %2690 = vrot.lane.b32.xlu0 %v2669, 32
        %v2691 = vpop.permute.xlu0 %2690
        %2692 = vrot.lane.b32.xlu0 %v2670, 32
        %v2693 = vpop.permute.xlu0 %2692
        %2694 = vrot.lane.b32.xlu0 %v2671, 32
        %v2695 = vpop.permute.xlu0 %2694
        %2704 = vst.msk [vmem:[#allocation3] sm:$0xff] %vm919, %v2681
        %2705 = vst.msk [vmem:[#allocation3 + $0x8] sm:$0xff] %vm919, %v2683
        %2706 = vst.msk [vmem:[#allocation3 + $0x10] sm:$0xff] %vm919, %v2685
        %2707 = vst.msk [vmem:[#allocation3 + $0x18] sm:$0xff] %vm919, %v2687
        %2708 = vst.msk [vmem:[#allocation3 + $0x20] sm:$0xff] %vm919, %v2689
        %2709 = vst.msk [vmem:[#allocation3 + $0x28] sm:$0xff] %vm919, %v2691
        %2710 = vst.msk [vmem:[#allocation3 + $0x30] sm:$0xff] %vm919, %v2693
        %2711 = vst.msk [vmem:[#allocation3 + $0x38] sm:$0xff] %vm919, %v2695
        %v2712 = vld [vmem:[%s706 + $0x2] sm:$0xff]
        %v2713 = vld [vmem:[%s706 + $0x12] sm:$0xff]
        %v2714 = vld [vmem:[%s706 + $0x22] sm:$0xff]
        %v2715 = vld [vmem:[%s706 + $0x32] sm:$0xff]
        %v2716 = vld [vmem:[%s706 + $0x42] sm:$0xff]
        %v2717 = vld [vmem:[%s706 + $0x52] sm:$0xff]
        %v2718 = vld [vmem:[%s706 + $0x62] sm:$0xff]
        %v2719 = vld [vmem:[%s706 + $0x72] sm:$0xff]
        %2728 = vrot.lane.b32.xlu0 %v2712, 40
        %v2729 = vpop.permute.xlu0 %2728
        %2730 = vrot.lane.b32.xlu0 %v2713, 40
        %v2731 = vpop.permute.xlu0 %2730
        %2732 = vrot.lane.b32.xlu0 %v2714, 40
        %v2733 = vpop.permute.xlu0 %2732
        %2734 = vrot.lane.b32.xlu0 %v2715, 40
        %v2735 = vpop.permute.xlu0 %2734
        %2736 = vrot.lane.b32.xlu0 %v2716, 40
        %v2737 = vpop.permute.xlu0 %2736
        %2738 = vrot.lane.b32.xlu0 %v2717, 40
        %v2739 = vpop.permute.xlu0 %2738
        %2740 = vrot.lane.b32.xlu0 %v2718, 40
        %v2741 = vpop.permute.xlu0 %2740
        %2742 = vrot.lane.b32.xlu0 %v2719, 40
        %v2743 = vpop.permute.xlu0 %2742
        %2752 = vst.msk [vmem:[#allocation3] sm:$0xff] %vm968, %v2729
        %2753 = vst.msk [vmem:[#allocation3 + $0x8] sm:$0xff] %vm968, %v2731
        %2754 = vst.msk [vmem:[#allocation3 + $0x10] sm:$0xff] %vm968, %v2733
        %2755 = vst.msk [vmem:[#allocation3 + $0x18] sm:$0xff] %vm968, %v2735
        %2756 = vst.msk [vmem:[#allocation3 + $0x20] sm:$0xff] %vm968, %v2737
        %2757 = vst.msk [vmem:[#allocation3 + $0x28] sm:$0xff] %vm968, %v2739
        %2758 = vst.msk [vmem:[#allocation3 + $0x30] sm:$0xff] %vm968, %v2741
        %2759 = vst.msk [vmem:[#allocation3 + $0x38] sm:$0xff] %vm968, %v2743
        %v2760 = vld [vmem:[%s977] sm:$0xff]
        %v2761 = vld [vmem:[%s977 + $0x10] sm:$0xff]
        %v2762 = vld [vmem:[%s977 + $0x20] sm:$0xff]
        %v2763 = vld [vmem:[%s977 + $0x30] sm:$0xff]
        %v2764 = vld [vmem:[%s977 + $0x40] sm:$0xff]
        %v2765 = vld [vmem:[%s977 + $0x50] sm:$0xff]
        %v2766 = vld [vmem:[%s977 + $0x60] sm:$0xff]
        %v2767 = vld [vmem:[%s977 + $0x70] sm:$0xff]
        %2776 = vrot.lane.b32.xlu0 %v2760, 48
        %v2777 = vpop.permute.xlu0 %2776
        %2778 = vrot.lane.b32.xlu0 %v2761, 48
        %v2779 = vpop.permute.xlu0 %2778
        %2780 = vrot.lane.b32.xlu0 %v2762, 48
        %v2781 = vpop.permute.xlu0 %2780
        %2782 = vrot.lane.b32.xlu0 %v2763, 48
        %v2783 = vpop.permute.xlu0 %2782
        %2784 = vrot.lane.b32.xlu0 %v2764, 48
        %v2785 = vpop.permute.xlu0 %2784
        %2786 = vrot.lane.b32.xlu0 %v2765, 48
        %v2787 = vpop.permute.xlu0 %2786
        %2788 = vrot.lane.b32.xlu0 %v2766, 48
        %v2789 = vpop.permute.xlu0 %2788
        %2790 = vrot.lane.b32.xlu0 %v2767, 48
        %v2791 = vpop.permute.xlu0 %2790
        %2800 = vst.msk [vmem:[#allocation3] sm:$0xff] %vm1018, %v2777
        %2801 = vst.msk [vmem:[#allocation3 + $0x8] sm:$0xff] %vm1018, %v2779
        %2802 = vst.msk [vmem:[#allocation3 + $0x10] sm:$0xff] %vm1018, %v2781
        %2803 = vst.msk [vmem:[#allocation3 + $0x18] sm:$0xff] %vm1018, %v2783
        %2804 = vst.msk [vmem:[#allocation3 + $0x20] sm:$0xff] %vm1018, %v2785
        %2805 = vst.msk [vmem:[#allocation3 + $0x28] sm:$0xff] %vm1018, %v2787
        %2806 = vst.msk [vmem:[#allocation3 + $0x30] sm:$0xff] %vm1018, %v2789
        %2807 = vst.msk [vmem:[#allocation3 + $0x38] sm:$0xff] %vm1018, %v2791
        %v2808 = vld [vmem:[%s977 + $0x1] sm:$0xff]
        %v2809 = vld [vmem:[%s977 + $0x11] sm:$0xff]
        %v2810 = vld [vmem:[%s977 + $0x21] sm:$0xff]
        %v2811 = vld [vmem:[%s977 + $0x31] sm:$0xff]
        %v2812 = vld [vmem:[%s977 + $0x41] sm:$0xff]
        %v2813 = vld [vmem:[%s977 + $0x51] sm:$0xff]
        %v2814 = vld [vmem:[%s977 + $0x61] sm:$0xff]
        %v2815 = vld [vmem:[%s977 + $0x71] sm:$0xff]
        %2824 = vrot.lane.b32.xlu0 %v2808, 56
        %v2825 = vpop.permute.xlu0 %2824
        %2826 = vrot.lane.b32.xlu0 %v2809, 56
        %v2827 = vpop.permute.xlu0 %2826
        %2828 = vrot.lane.b32.xlu0 %v2810, 56
        %v2829 = vpop.permute.xlu0 %2828
        %2830 = vrot.lane.b32.xlu0 %v2811, 56
        %v2831 = vpop.permute.xlu0 %2830
        %2832 = vrot.lane.b32.xlu0 %v2812, 56
        %v2833 = vpop.permute.xlu0 %2832
        %2834 = vrot.lane.b32.xlu0 %v2813, 56
        %v2835 = vpop.permute.xlu0 %2834
        %2836 = vrot.lane.b32.xlu0 %v2814, 56
        %v2837 = vpop.permute.xlu0 %2836
        %2838 = vrot.lane.b32.xlu0 %v2815, 56
        %v2839 = vpop.permute.xlu0 %2838
        %2848 = vst.msk [vmem:[#allocation3] sm:$0xff] %vm1067, %v2825
        %2849 = vst.msk [vmem:[#allocation3 + $0x8] sm:$0xff] %vm1067, %v2827
        %2850 = vst.msk [vmem:[#allocation3 + $0x10] sm:$0xff] %vm1067, %v2829
        %2851 = vst.msk [vmem:[#allocation3 + $0x18] sm:$0xff] %vm1067, %v2831
        %2852 = vst.msk [vmem:[#allocation3 + $0x20] sm:$0xff] %vm1067, %v2833
        %2853 = vst.msk [vmem:[#allocation3 + $0x28] sm:$0xff] %vm1067, %v2835
        %2854 = vst.msk [vmem:[#allocation3 + $0x30] sm:$0xff] %vm1067, %v2837
        %2855 = vst.msk [vmem:[#allocation3 + $0x38] sm:$0xff] %vm1067, %v2839
        %v2856 = vld [vmem:[%s977 + $0x2] sm:$0xff]
        %v2857 = vld [vmem:[%s977 + $0x12] sm:$0xff]
        %v2858 = vld [vmem:[%s977 + $0x22] sm:$0xff]
        %v2859 = vld [vmem:[%s977 + $0x32] sm:$0xff]
        %v2860 = vld [vmem:[%s977 + $0x42] sm:$0xff]
        %v2861 = vld [vmem:[%s977 + $0x52] sm:$0xff]
        %v2862 = vld [vmem:[%s977 + $0x62] sm:$0xff]
        %v2863 = vld [vmem:[%s977 + $0x72] sm:$0xff]
        %2872 = vrot.lane.b32.xlu0 %v2856, 64
        %v2873 = vpop.permute.xlu0 %2872
        %2874 = vrot.lane.b32.xlu0 %v2857, 64
        %v2875 = vpop.permute.xlu0 %2874
        %2876 = vrot.lane.b32.xlu0 %v2858, 64
        %v2877 = vpop.permute.xlu0 %2876
        %2878 = vrot.lane.b32.xlu0 %v2859, 64
        %v2879 = vpop.permute.xlu0 %2878
        %2880 = vrot.lane.b32.xlu0 %v2860, 64
        %v2881 = vpop.permute.xlu0 %2880
        %2882 = vrot.lane.b32.xlu0 %v2861, 64
        %v2883 = vpop.permute.xlu0 %2882
        %2884 = vrot.lane.b32.xlu0 %v2862, 64
        %v2885 = vpop.permute.xlu0 %2884
        %2886 = vrot.lane.b32.xlu0 %v2863, 64
        %v2887 = vpop.permute.xlu0 %2886
        %2896 = vst.msk [vmem:[#allocation3] sm:$0xff] %vm1116, %v2873
        %2897 = vst.msk [vmem:[#allocation3 + $0x8] sm:$0xff] %vm1116, %v2875
        %2898 = vst.msk [vmem:[#allocation3 + $0x10] sm:$0xff] %vm1116, %v2877
        %2899 = vst.msk [vmem:[#allocation3 + $0x18] sm:$0xff] %vm1116, %v2879
        %2900 = vst.msk [vmem:[#allocation3 + $0x20] sm:$0xff] %vm1116, %v2881
        %2901 = vst.msk [vmem:[#allocation3 + $0x28] sm:$0xff] %vm1116, %v2883
        %2902 = vst.msk [vmem:[#allocation3 + $0x30] sm:$0xff] %vm1116, %v2885
        %2903 = vst.msk [vmem:[#allocation3 + $0x38] sm:$0xff] %vm1116, %v2887
        %v2904 = vld [vmem:[#allocation3] sm:$0xff]
        %v2905 = vld [vmem:[#allocation3 + $0x8] sm:$0xff]
        %v2906 = vld [vmem:[#allocation3 + $0x10] sm:$0xff]
        %v2907 = vld [vmem:[#allocation3 + $0x18] sm:$0xff]
        %v2908 = vld [vmem:[#allocation3 + $0x20] sm:$0xff]
        %v2909 = vld [vmem:[#allocation3 + $0x28] sm:$0xff]
        %v2910 = vld [vmem:[#allocation3 + $0x30] sm:$0xff]
        %v2911 = vld [vmem:[#allocation3 + $0x38] sm:$0xff]
        %v2912 = vpack.c.bf16 %v2905, %v2904
        %v2913 = vpack.c.bf16 %v2907, %v2906
        %v2914 = vpack.c.bf16 %v2909, %v2908
        %v2915 = vpack.c.bf16 %v2911, %v2910
        %v2916 = vld [vmem:[%s9] sm:$0xf]
        %v2917 = vld [vmem:[%s9 + $0x4] sm:$0xf]
        %v2918 = vld [vmem:[%s9 + $0x8] sm:$0xf]
        %v2919 = vld [vmem:[%s9 + $0xc] sm:$0xf]
        %v2920 = vld [vmem:[%s9 + $0x10] sm:$0xf]
        %v2921 = vld [vmem:[%s9 + $0x14] sm:$0xf]
        %v2922 = vld [vmem:[%s9 + $0x18] sm:$0xf]
        %v2923 = vld [vmem:[%s9 + $0x1c] sm:$0xf]
        %v2924 = vld [vmem:[%s9 + $0x20] sm:$0xf]
        %v2925 = vld [vmem:[%s10] sm:$0x1]
        %v2927 = vlaneseq
        %v2928 = vshrl.u32 %v2927, 7
        %v2929 = vsub.s32 0, %v2928
        %v2930 = vrot.slane %v2925, %v2929
        %v2941 = vunpack.c.l.b16 %v2916
        %v2942 = vunpack.c.l.b16 %v2917
        %v2943 = vunpack.c.l.b16 %v2918
        %v2944 = vunpack.c.l.b16 %v2919
        %v2945 = vunpack.c.l.b16 %v2920
        %v2946 = vunpack.c.l.b16 %v2921
        %v2947 = vunpack.c.l.b16 %v2922
        %v2948 = vunpack.c.l.b16 %v2923
        %v2949 = vunpack.c.l.b16 %v2924
        %v2950 = vpack.c.b16 %v2942, %v2941
        %v2951 = vpack.c.b16 %v2944, %v2943
        %v2952 = vpack.c.b16 %v2946, %v2945
        %v2953 = vpack.c.b16 %v2948, %v2947
        %v2954 = vpack.c.b16 %v2949, %v2949
        %v2960 = vsel %vm592, %v2912, 0
        %v2963 = vsel %vm592, %v2913, 0
        %v2966 = vsel %vm592, %v2914, 0
        %v2969 = vsel %vm592, %v2915, 0
        %v2972 = vsel %vm1192, %v2954, 0
        %2974 = vmatprep.subr.bf16.mxu0 0
        %2975 = vmatpush1.bf16.msra.mxu0 0
        %2976 = vmatprep.subr.bf16.mxu0 0
        %2977 = vmatpush1.bf16.msra.mxu0 0
        %2978 = vmatprep.subr.bf16.mxu0 0
        %2979 = vmatpush1.bf16.msra.mxu0 0
        %2980 = vmatprep.subr.bf16.mxu0 0
        %2981 = vmatpush1.bf16.msra.mxu0 %v2972
        %2982 = vmatprep.subr.bf16.mxu0 0
        %2983 = vmatpush1.bf16.msra.mxu0 %v2953
        %2984 = vmatprep.subr.bf16.mxu0 0
        %2985 = vmatpush1.bf16.msra.mxu0 %v2952
        %2986 = vmatprep.subr.bf16.mxu0 0
        %2987 = vmatpush1.bf16.msra.mxu0 %v2951
        %2988 = vmatprep.subr.bf16.mxu0 0
        %2989 = vmatpush1.bf16.msra.mxu0 %v2950
        %2990 = vmatprep.subr.bf16.mxu0 0
        %2991 = vmatpush2.bf16.msra.mxu0 0
        %2992 = vmatprep.subr.bf16.mxu0 0
        %2993 = vmatpush2.bf16.msra.mxu0 0
        %2994 = vmatprep.subr.bf16.mxu0 0
        %2995 = vmatpush2.bf16.msra.mxu0 0
        %2996 = vmatprep.subr.bf16.mxu0 0
        %2997 = vmatpush2.bf16.msra.mxu0 0
        %2998 = vmatprep.subr.bf16.mxu0 0
        %2999 = vmatpush2.bf16.msra.mxu0 0
        %3000 = vmatprep.subr.bf16.mxu0 0
        %3001 = vmatpush2.bf16.msra.mxu0 0
        %3002 = vmatprep.subr.bf16.mxu0 0
        %3003 = vmatpush2.bf16.msra.mxu0 0
        %3004 = vmatprep.subr.bf16.mxu0 0
        %3005 = vmatpush2.bf16.msra.mxu0 0
        %3006 = vmatprep.mubr.bf16.mxu0 0
        %3007 = vmatmul.mubr.bf16.gmra.mxu0 %v2960
        %v3008 = vpop.f32.mrf.mxu0
        %v3009 = vadd.f32 %v2930, %v3008
        %v3010 = vpop.f32.mrf.mxu0
        %v3011 = vpop.f32.mrf.mxu0
        %v3012 = vadd.f32 %v2930, %v3011
        %v3013 = vpop.f32.mrf.mxu0
        %3014 = vmatprep.mubr.bf16.mxu0 0
        %3015 = vmatmul.mubr.bf16.gmra.mxu0 %v2963
        %v3016 = vpop.f32.mrf.mxu0
        %v3017 = vadd.f32 %v2930, %v3016
        %v3018 = vpop.f32.mrf.mxu0
        %v3019 = vpop.f32.mrf.mxu0
        %v3020 = vadd.f32 %v2930, %v3019
        %v3021 = vpop.f32.mrf.mxu0
        %3022 = vmatprep.mubr.bf16.mxu0 0
        %3023 = vmatmul.mubr.bf16.gmra.mxu0 %v2966
        %v3024 = vpop.f32.mrf.mxu0
        %v3025 = vadd.f32 %v2930, %v3024
        %v3026 = vpop.f32.mrf.mxu0
        %v3027 = vpop.f32.mrf.mxu0
        %v3028 = vadd.f32 %v2930, %v3027
        %v3029 = vpop.f32.mrf.mxu0
        %3030 = vmatprep.mubr.bf16.mxu0 0
        %3031 = vmatmul.mubr.bf16.gmra.mxu0 %v2969
        %v3032 = vpop.f32.mrf.mxu0
        %v3033 = vadd.f32 %v2930, %v3032
        %v3034 = vpop.f32.mrf.mxu0
        %v3035 = vpop.f32.mrf.mxu0
        %v3036 = vadd.f32 %v2930, %v3035
        %v3037 = vpop.f32.mrf.mxu0
        %3038 = vdwg.mxu0
        %v3039 = vsel %vm707, %v3009, 0.0
        %3040 = vadd.xlane.f32.xlu0 %v3039
        %v3041 = vpop.xlane.xlu0 %3040
        %v3042 = vsel %vm707, %v3012, 0.0
        %3043 = vadd.xlane.f32.xlu0 %v3042
        %v3044 = vpop.xlane.xlu0 %3043
        %v3045 = vsel %vm707, %v3017, 0.0
        %3046 = vadd.xlane.f32.xlu0 %v3045
        %v3047 = vpop.xlane.xlu0 %3046
        %v3048 = vsel %vm707, %v3020, 0.0
        %3049 = vadd.xlane.f32.xlu0 %v3048
        %v3050 = vpop.xlane.xlu0 %3049
        %v3051 = vsel %vm707, %v3025, 0.0
        %3052 = vadd.xlane.f32.xlu0 %v3051
        %v3053 = vpop.xlane.xlu0 %3052
        %v3054 = vsel %vm707, %v3028, 0.0
        %3055 = vadd.xlane.f32.xlu0 %v3054
        %v3056 = vpop.xlane.xlu0 %3055
        %v3057 = vsel %vm707, %v3033, 0.0
        %3058 = vadd.xlane.f32.xlu0 %v3057
        %v3059 = vpop.xlane.xlu0 %3058
        %v3060 = vsel %vm707, %v3036, 0.0
        %3061 = vadd.xlane.f32.xlu0 %v3060
        %v3062 = vpop.xlane.xlu0 %3061
        %v3063 = vadd.f32 %v3041, %v3044
        %v3064 = vadd.f32 %v3063, %v3047
        %v3065 = vadd.f32 %v3064, %v3050
        %v3066 = vadd.f32 %v3065, %v3053
        %v3067 = vadd.f32 %v3066, %v3056
        %v3068 = vadd.f32 %v3067, %v3059
        %v3069 = vadd.f32 %v3068, %v3062
        %v3070 = vrot.slane %v3069, 4
        %v3071 = vadd.f32 %v3069, %v3070
        %v3072 = vrot.slane %v3071, 2
        %v3073 = vadd.f32 %v3071, %v3072
        %v3074 = vrot.slane %v3073, 1
        %v3075 = vadd.f32 %v3073, %v3074
        %v3076 = vmul.f32 %v3075, 0.00390625
        %v3077 = vsub.f32 %v3009, %v3076
        %v3078 = vsub.f32 %v3012, %v3076
        %v3079 = vsub.f32 %v3017, %v3076
        %v3080 = vsub.f32 %v3020, %v3076
        %v3081 = vsub.f32 %v3025, %v3076
        %v3082 = vsub.f32 %v3028, %v3076
        %v3083 = vsub.f32 %v3033, %v3076
        %v3084 = vsub.f32 %v3036, %v3076
        %v3085 = vmul.f32 %v3077, %v3077
        %v3086 = vmul.f32 %v3078, %v3078
        %v3087 = vmul.f32 %v3079, %v3079
        %v3088 = vmul.f32 %v3080, %v3080
        %v3089 = vmul.f32 %v3081, %v3081
        %v3090 = vmul.f32 %v3082, %v3082
        %v3091 = vmul.f32 %v3083, %v3083
        %v3092 = vmul.f32 %v3084, %v3084
        %v3093 = vsel %vm707, %v3085, 0.0
        %3094 = vadd.xlane.f32.xlu0 %v3093
        %v3095 = vpop.xlane.xlu0 %3094
        %v3096 = vsel %vm707, %v3086, 0.0
        %3097 = vadd.xlane.f32.xlu0 %v3096
        %v3098 = vpop.xlane.xlu0 %3097
        %v3099 = vsel %vm707, %v3087, 0.0
        %3100 = vadd.xlane.f32.xlu0 %v3099
        %v3101 = vpop.xlane.xlu0 %3100
        %v3102 = vsel %vm707, %v3088, 0.0
        %3103 = vadd.xlane.f32.xlu0 %v3102
        %v3104 = vpop.xlane.xlu0 %3103
        %v3105 = vsel %vm707, %v3089, 0.0
        %3106 = vadd.xlane.f32.xlu0 %v3105
        %v3107 = vpop.xlane.xlu0 %3106
        %v3108 = vsel %vm707, %v3090, 0.0
        %3109 = vadd.xlane.f32.xlu0 %v3108
        %v3110 = vpop.xlane.xlu0 %3109
        %v3111 = vsel %vm707, %v3091, 0.0
        %3112 = vadd.xlane.f32.xlu0 %v3111
        %v3113 = vpop.xlane.xlu0 %3112
        %v3114 = vsel %vm707, %v3092, 0.0
        %3115 = vadd.xlane.f32.xlu0 %v3114
        %v3116 = vpop.xlane.xlu0 %3115
        %v3117 = vadd.f32 %v3095, %v3098
        %v3118 = vadd.f32 %v3117, %v3101
        %v3119 = vadd.f32 %v3118, %v3104
        %v3120 = vadd.f32 %v3119, %v3107
        %v3121 = vadd.f32 %v3120, %v3110
        %v3122 = vadd.f32 %v3121, %v3113
        %v3123 = vadd.f32 %v3122, %v3116
        %v3124 = vrot.slane %v3123, 4
        %v3125 = vadd.f32 %v3123, %v3124
        %v3126 = vrot.slane %v3125, 2
        %v3127 = vadd.f32 %v3125, %v3126
        %v3128 = vrot.slane %v3127, 1
        %v3129 = vadd.f32 %v3127, %v3128
        %v3130 = vmul.f32 %v3129, 0.00390625
        %v3131 = vadd.f32 %v3130, 1e-05
        %v3132 = vrsqrt.pop %v3131
        %3141 = vrot.lane.b32.xlu0 %v3009, 124
        %v3142 = vpop.permute.xlu0 %3141
        %3143 = vrot.lane.b32.xlu0 %v3012, 124
        %v3144 = vpop.permute.xlu0 %3143
        %3145 = vrot.lane.b32.xlu0 %v3017, 124
        %v3146 = vpop.permute.xlu0 %3145
        %3147 = vrot.lane.b32.xlu0 %v3020, 124
        %v3148 = vpop.permute.xlu0 %3147
        %3149 = vrot.lane.b32.xlu0 %v3025, 124
        %v3150 = vpop.permute.xlu0 %3149
        %3151 = vrot.lane.b32.xlu0 %v3028, 124
        %v3152 = vpop.permute.xlu0 %3151
        %3153 = vrot.lane.b32.xlu0 %v3033, 124
        %v3154 = vpop.permute.xlu0 %3153
        %3155 = vrot.lane.b32.xlu0 %v3036, 124
        %v3156 = vpop.permute.xlu0 %3155
        %v3165 = vsel %vm707, %v3142, 0.0
        %3166 = vadd.xlane.f32.xlu0 %v3165
        %v3167 = vpop.xlane.xlu0 %3166
        %v3168 = vsel %vm707, %v3144, 0.0
        %3169 = vadd.xlane.f32.xlu0 %v3168
        %v3170 = vpop.xlane.xlu0 %3169
        %v3171 = vsel %vm707, %v3146, 0.0
        %3172 = vadd.xlane.f32.xlu0 %v3171
        %v3173 = vpop.xlane.xlu0 %3172
        %v3174 = vsel %vm707, %v3148, 0.0
        %3175 = vadd.xlane.f32.xlu0 %v3174
        %v3176 = vpop.xlane.xlu0 %3175
        %v3177 = vsel %vm707, %v3150, 0.0
        %3178 = vadd.xlane.f32.xlu0 %v3177
        %v3179 = vpop.xlane.xlu0 %3178
        %v3180 = vsel %vm707, %v3152, 0.0
        %3181 = vadd.xlane.f32.xlu0 %v3180
        %v3182 = vpop.xlane.xlu0 %3181
        %v3183 = vsel %vm707, %v3154, 0.0
        %3184 = vadd.xlane.f32.xlu0 %v3183
        %v3185 = vpop.xlane.xlu0 %3184
        %v3186 = vsel %vm707, %v3156, 0.0
        %3187 = vadd.xlane.f32.xlu0 %v3186
        %v3188 = vpop.xlane.xlu0 %3187
        %v3189 = vadd.f32 %v3167, %v3170
        %v3190 = vadd.f32 %v3189, %v3173
        %v3191 = vadd.f32 %v3190, %v3176
        %v3192 = vadd.f32 %v3191, %v3179
        %v3193 = vadd.f32 %v3192, %v3182
        %v3194 = vadd.f32 %v3193, %v3185
        %v3195 = vadd.f32 %v3194, %v3188
        %v3196 = vrot.slane %v3195, 4
        %v3197 = vadd.f32 %v3195, %v3196
        %v3198 = vrot.slane %v3197, 2
        %v3199 = vadd.f32 %v3197, %v3198
        %v3200 = vrot.slane %v3199, 1
        %v3201 = vadd.f32 %v3199, %v3200
        %v3202 = vmul.f32 %v3201, 0.00390625
        %v3203 = vsub.f32 %v3009, %v3202
        %v3204 = vsub.f32 %v3012, %v3202
        %v3205 = vsub.f32 %v3017, %v3202
        %v3206 = vsub.f32 %v3020, %v3202
        %v3207 = vsub.f32 %v3025, %v3202
        %v3208 = vsub.f32 %v3028, %v3202
        %v3209 = vsub.f32 %v3033, %v3202
        %v3210 = vsub.f32 %v3036, %v3202
        %v3211 = vmul.f32 %v3203, %v3203
        %v3212 = vmul.f32 %v3204, %v3204
        %v3213 = vmul.f32 %v3205, %v3205
        %v3214 = vmul.f32 %v3206, %v3206
        %v3215 = vmul.f32 %v3207, %v3207
        %v3216 = vmul.f32 %v3208, %v3208
        %v3217 = vmul.f32 %v3209, %v3209
        %v3218 = vmul.f32 %v3210, %v3210
        %3227 = vrot.lane.b32.xlu0 %v3211, 124
        %v3228 = vpop.permute.xlu0 %3227
        %3229 = vrot.lane.b32.xlu0 %v3212, 124
        %v3230 = vpop.permute.xlu0 %3229
        %3231 = vrot.lane.b32.xlu0 %v3213, 124
        %v3232 = vpop.permute.xlu0 %3231
        %3233 = vrot.lane.b32.xlu0 %v3214, 124
        %v3234 = vpop.permute.xlu0 %3233
        %3235 = vrot.lane.b32.xlu0 %v3215, 124
        %v3236 = vpop.permute.xlu0 %3235
        %3237 = vrot.lane.b32.xlu0 %v3216, 124
        %v3238 = vpop.permute.xlu0 %3237
        %3239 = vrot.lane.b32.xlu0 %v3217, 124
        %v3240 = vpop.permute.xlu0 %3239
        %3241 = vrot.lane.b32.xlu0 %v3218, 124
        %v3242 = vpop.permute.xlu0 %3241
        %v3251 = vsel %vm707, %v3228, 0.0
        %3252 = vadd.xlane.f32.xlu0 %v3251
        %v3253 = vpop.xlane.xlu0 %3252
        %v3254 = vsel %vm707, %v3230, 0.0
        %3255 = vadd.xlane.f32.xlu0 %v3254
        %v3256 = vpop.xlane.xlu0 %3255
        %v3257 = vsel %vm707, %v3232, 0.0
        %3258 = vadd.xlane.f32.xlu0 %v3257
        %v3259 = vpop.xlane.xlu0 %3258
        %v3260 = vsel %vm707, %v3234, 0.0
        %3261 = vadd.xlane.f32.xlu0 %v3260
        %v3262 = vpop.xlane.xlu0 %3261
        %v3263 = vsel %vm707, %v3236, 0.0
        %3264 = vadd.xlane.f32.xlu0 %v3263
        %v3265 = vpop.xlane.xlu0 %3264
        %v3266 = vsel %vm707, %v3238, 0.0
        %3267 = vadd.xlane.f32.xlu0 %v3266
        %v3268 = vpop.xlane.xlu0 %3267
        %v3269 = vsel %vm707, %v3240, 0.0
        %3270 = vadd.xlane.f32.xlu0 %v3269
        %v3271 = vpop.xlane.xlu0 %3270
        %v3272 = vsel %vm707, %v3242, 0.0
        %3273 = vadd.xlane.f32.xlu0 %v3272
        %v3274 = vpop.xlane.xlu0 %3273
        %v3275 = vadd.f32 %v3253, %v3256
        %v3276 = vadd.f32 %v3275, %v3259
        %v3277 = vadd.f32 %v3276, %v3262
        %v3278 = vadd.f32 %v3277, %v3265
        %v3279 = vadd.f32 %v3278, %v3268
        %v3280 = vadd.f32 %v3279, %v3271
        %v3281 = vadd.f32 %v3280, %v3274
        %v3282 = vrot.slane %v3281, 4
        %v3283 = vadd.f32 %v3281, %v3282
        %v3284 = vrot.slane %v3283, 2
        %v3285 = vadd.f32 %v3283, %v3284
        %v3286 = vrot.slane %v3285, 1
        %v3287 = vadd.f32 %v3285, %v3286
        %v3288 = vmul.f32 %v3287, 0.00390625
        %v3289 = vadd.f32 %v3288, 1e-05
        %v3290 = vrsqrt.pop %v3289
        %vm3291 = vcmp.lt.s32.totalorder %v1515, 4
        %v3292 = vsel %vm3291, %v3076, %v3202
        %v3293 = vsel %vm3291, %v3132, %v3290
        %v3294 = vsub.f32 %v3009, %v3292
        %v3295 = vsub.f32 %v3012, %v3292
        %v3296 = vsub.f32 %v3017, %v3292
        %v3297 = vsub.f32 %v3020, %v3292
        %v3298 = vsub.f32 %v3025, %v3292
        %v3299 = vsub.f32 %v3028, %v3292
        %v3300 = vsub.f32 %v3033, %v3292
        %v3301 = vsub.f32 %v3036, %v3292
        %v3302 = vmul.f32 %v3294, %v3293
        %v3303 = vmul.f32 %v3295, %v3293
        %v3304 = vmul.f32 %v3296, %v3293
        %v3305 = vmul.f32 %v3297, %v3293
        %v3306 = vmul.f32 %v3298, %v3293
        %v3307 = vmul.f32 %v3299, %v3293
        %v3308 = vmul.f32 %v3300, %v3293
        %v3309 = vmul.f32 %v3301, %v3293
        %v3310 = vld [vmem:[%s11] sm:$0x1]
        %v3312 = vlaneseq
        %v3313 = vshrl.u32 %v3312, 7
        %v3314 = vsub.s32 0, %v3313
        %v3315 = vrot.slane %v3310, %v3314
        %v3317 = vmul.f32 %v3302, %v3315
        %v3318 = vmul.f32 %v3303, %v3315
        %v3319 = vmul.f32 %v3304, %v3315
        %v3320 = vmul.f32 %v3305, %v3315
        %v3321 = vmul.f32 %v3306, %v3315
        %v3322 = vmul.f32 %v3307, %v3315
        %v3323 = vmul.f32 %v3308, %v3315
        %v3324 = vmul.f32 %v3309, %v3315
        %v3325 = vld [vmem:[%s12] sm:$0x1]
        %v3327 = vlaneseq
        %v3328 = vshrl.u32 %v3327, 7
        %v3329 = vsub.s32 0, %v3328
        %v3330 = vrot.slane %v3325, %v3329
        %v3332 = vadd.f32 %v3317, %v3330
        %v3333 = vadd.f32 %v3318, %v3330
        %v3334 = vadd.f32 %v3319, %v3330
        %v3335 = vadd.f32 %v3320, %v3330
        %v3336 = vadd.f32 %v3321, %v3330
        %v3337 = vadd.f32 %v3322, %v3330
        %v3338 = vadd.f32 %v3323, %v3330
        %v3339 = vadd.f32 %v3324, %v3330
        %v3340 = vmul.f32 %v3332, 0.5
        %v3341 = vmul.f32 %v3333, 0.5
        %v3342 = vmul.f32 %v3334, 0.5
        %v3343 = vmul.f32 %v3335, 0.5
        %v3344 = vmul.f32 %v3336, 0.5
        %v3345 = vmul.f32 %v3337, 0.5
        %v3346 = vmul.f32 %v3338, 0.5
        %v3347 = vmul.f32 %v3339, 0.5
        %v3348 = vmul.f32 %v3332, 0.70710677
        %v3349 = vmul.f32 %v3333, 0.70710677
        %v3350 = vmul.f32 %v3334, 0.70710677
        %v3351 = vmul.f32 %v3335, 0.70710677
        %v3352 = vmul.f32 %v3336, 0.70710677
        %v3353 = vmul.f32 %v3337, 0.70710677
        %v3354 = vmul.f32 %v3338, 0.70710677
        %v3355 = vmul.f32 %v3339, 0.70710677
        %v3356 = verf.f32.pop %v3348
        %v3357 = verf.f32.pop %v3349
        %v3358 = verf.f32.pop %v3350
        %v3359 = verf.f32.pop %v3351
        %v3360 = verf.f32.pop %v3352
        %v3361 = verf.f32.pop %v3353
        %v3362 = verf.f32.pop %v3354
        %v3363 = verf.f32.pop %v3355
        %v3364 = vadd.f32 %v3356, 1.0
        %v3365 = vadd.f32 %v3357, 1.0
        %v3366 = vadd.f32 %v3358, 1.0
        %v3367 = vadd.f32 %v3359, 1.0
        %v3368 = vadd.f32 %v3360, 1.0
        %v3369 = vadd.f32 %v3361, 1.0
        %v3370 = vadd.f32 %v3362, 1.0
        %v3371 = vadd.f32 %v3363, 1.0
        %v3372 = vmul.f32 %v3340, %v3364
        %v3373 = vmul.f32 %v3341, %v3365
        %v3374 = vmul.f32 %v3342, %v3366
        %v3375 = vmul.f32 %v3343, %v3367
        %v3376 = vmul.f32 %v3344, %v3368
        %v3377 = vmul.f32 %v3345, %v3369
        %v3378 = vmul.f32 %v3346, %v3370
        %v3379 = vmul.f32 %v3347, %v3371
        %3380 = vst.msk [vmem:[%s706 + $0x1] sm:$0xff] %vm570, %v3372
        %3381 = vst.msk [vmem:[%s706 + $0x11] sm:$0xff] %vm570, %v3373
        %3382 = vst.msk [vmem:[%s706 + $0x21] sm:$0xff] %vm570, %v3374
        %3383 = vst.msk [vmem:[%s706 + $0x31] sm:$0xff] %vm570, %v3375
        %3384 = vst.msk [vmem:[%s706 + $0x41] sm:$0xff] %vm570, %v3376
        %3385 = vst.msk [vmem:[%s706 + $0x51] sm:$0xff] %vm570, %v3377
        %3386 = vst.msk [vmem:[%s706 + $0x61] sm:$0xff] %vm570, %v3378
        %3387 = vst.msk [vmem:[%s706 + $0x71] sm:$0xff] %vm570, %v3379
        %v3388 = vld [vmem:[#allocation2] sm:$0xff]
        %v3389 = vld [vmem:[#allocation2 + $0x10] sm:$0xff]
        %v3390 = vld [vmem:[#allocation2 + $0x20] sm:$0xff]
        %v3391 = vld [vmem:[#allocation2 + $0x30] sm:$0xff]
        %v3392 = vld [vmem:[#allocation2 + $0x40] sm:$0xff]
        %v3393 = vld [vmem:[#allocation2 + $0x50] sm:$0xff]
        %v3394 = vld [vmem:[#allocation2 + $0x60] sm:$0xff]
        %v3395 = vld [vmem:[#allocation2 + $0x70] sm:$0xff]
        %3396 = vst.msk [vmem:[#allocation3] sm:$0xff] %vm570, %v3388
        %3397 = vst.msk [vmem:[#allocation3 + $0x8] sm:$0xff] %vm570, %v3389
        %3398 = vst.msk [vmem:[#allocation3 + $0x10] sm:$0xff] %vm570, %v3390
        %3399 = vst.msk [vmem:[#allocation3 + $0x18] sm:$0xff] %vm570, %v3391
        %3400 = vst.msk [vmem:[#allocation3 + $0x20] sm:$0xff] %vm570, %v3392
        %3401 = vst.msk [vmem:[#allocation3 + $0x28] sm:$0xff] %vm570, %v3393
        %3402 = vst.msk [vmem:[#allocation3 + $0x30] sm:$0xff] %vm570, %v3394
        %3403 = vst.msk [vmem:[#allocation3 + $0x38] sm:$0xff] %vm570, %v3395
        %v3404 = vld [vmem:[#allocation2 + $0x1] sm:$0xff]
        %v3405 = vld [vmem:[#allocation2 + $0x11] sm:$0xff]
        %v3406 = vld [vmem:[#allocation2 + $0x21] sm:$0xff]
        %v3407 = vld [vmem:[#allocation2 + $0x31] sm:$0xff]
        %v3408 = vld [vmem:[#allocation2 + $0x41] sm:$0xff]
        %v3409 = vld [vmem:[#allocation2 + $0x51] sm:$0xff]
        %v3410 = vld [vmem:[#allocation2 + $0x61] sm:$0xff]
        %v3411 = vld [vmem:[#allocation2 + $0x71] sm:$0xff]
        %3420 = vrot.lane.b32.xlu0 %v3404, 8
        %v3421 = vpop.permute.xlu0 %3420
        %3422 = vrot.lane.b32.xlu0 %v3405, 8
        %v3423 = vpop.permute.xlu0 %3422
        %3424 = vrot.lane.b32.xlu0 %v3406, 8
        %v3425 = vpop.permute.xlu0 %3424
        %3426 = vrot.lane.b32.xlu0 %v3407, 8
        %v3427 = vpop.permute.xlu0 %3426
        %3428 = vrot.lane.b32.xlu0 %v3408, 8
        %v3429 = vpop.permute.xlu0 %3428
        %3430 = vrot.lane.b32.xlu0 %v3409, 8
        %v3431 = vpop.permute.xlu0 %3430
        %3432 = vrot.lane.b32.xlu0 %v3410, 8
        %v3433 = vpop.permute.xlu0 %3432
        %3434 = vrot.lane.b32.xlu0 %v3411, 8
        %v3435 = vpop.permute.xlu0 %3434
        %vm3444 = vcmask 130112
        %3445 = vst.msk [vmem:[#allocation3] sm:$0xff] %vm3444, %v3421
        %3446 = vst.msk [vmem:[#allocation3 + $0x8] sm:$0xff] %vm3444, %v3423
        %3447 = vst.msk [vmem:[#allocation3 + $0x10] sm:$0xff] %vm3444, %v3425
        %3448 = vst.msk [vmem:[#allocation3 + $0x18] sm:$0xff] %vm3444, %v3427
        %3449 = vst.msk [vmem:[#allocation3 + $0x20] sm:$0xff] %vm3444, %v3429
        %3450 = vst.msk [vmem:[#allocation3 + $0x28] sm:$0xff] %vm3444, %v3431
        %3451 = vst.msk [vmem:[#allocation3 + $0x30] sm:$0xff] %vm3444, %v3433
        %3452 = vst.msk [vmem:[#allocation3 + $0x38] sm:$0xff] %vm3444, %v3435
        %v3453 = vld [vmem:[#allocation2 + $0x2] sm:$0xff]
        %v3454 = vld [vmem:[#allocation2 + $0x12] sm:$0xff]
        %v3455 = vld [vmem:[#allocation2 + $0x22] sm:$0xff]
        %v3456 = vld [vmem:[#allocation2 + $0x32] sm:$0xff]
        %v3457 = vld [vmem:[#allocation2 + $0x42] sm:$0xff]
        %v3458 = vld [vmem:[#allocation2 + $0x52] sm:$0xff]
        %v3459 = vld [vmem:[#allocation2 + $0x62] sm:$0xff]
        %v3460 = vld [vmem:[#allocation2 + $0x72] sm:$0xff]
        %3469 = vrot.lane.b32.xlu0 %v3453, 16
        %v3470 = vpop.permute.xlu0 %3469
        %3471 = vrot.lane.b32.xlu0 %v3454, 16
        %v3472 = vpop.permute.xlu0 %3471
        %3473 = vrot.lane.b32.xlu0 %v3455, 16
        %v3474 = vpop.permute.xlu0 %3473
        %3475 = vrot.lane.b32.xlu0 %v3456, 16
        %v3476 = vpop.permute.xlu0 %3475
        %3477 = vrot.lane.b32.xlu0 %v3457, 16
        %v3478 = vpop.permute.xlu0 %3477
        %3479 = vrot.lane.b32.xlu0 %v3458, 16
        %v3480 = vpop.permute.xlu0 %3479
        %3481 = vrot.lane.b32.xlu0 %v3459, 16
        %v3482 = vpop.permute.xlu0 %3481
        %3483 = vrot.lane.b32.xlu0 %v3460, 16
        %v3484 = vpop.permute.xlu0 %3483
        %vm3493 = vcmask 195712
        %3494 = vst.msk [vmem:[#allocation3] sm:$0xff] %vm3493, %v3470
        %3495 = vst.msk [vmem:[#allocation3 + $0x8] sm:$0xff] %vm3493, %v3472
        %3496 = vst.msk [vmem:[#allocation3 + $0x10] sm:$0xff] %vm3493, %v3474
        %3497 = vst.msk [vmem:[#allocation3 + $0x18] sm:$0xff] %vm3493, %v3476
        %3498 = vst.msk [vmem:[#allocation3 + $0x20] sm:$0xff] %vm3493, %v3478
        %3499 = vst.msk [vmem:[#allocation3 + $0x28] sm:$0xff] %vm3493, %v3480
        %3500 = vst.msk [vmem:[#allocation3 + $0x30] sm:$0xff] %vm3493, %v3482
        %3501 = vst.msk [vmem:[#allocation3 + $0x38] sm:$0xff] %vm3493, %v3484
        %v3502 = vld [vmem:[%s706] sm:$0xff]
        %v3503 = vld [vmem:[%s706 + $0x10] sm:$0xff]
        %v3504 = vld [vmem:[%s706 + $0x20] sm:$0xff]
        %v3505 = vld [vmem:[%s706 + $0x30] sm:$0xff]
        %v3506 = vld [vmem:[%s706 + $0x40] sm:$0xff]
        %v3507 = vld [vmem:[%s706 + $0x50] sm:$0xff]
        %v3508 = vld [vmem:[%s706 + $0x60] sm:$0xff]
        %v3509 = vld [vmem:[%s706 + $0x70] sm:$0xff]
        %3518 = vrot.lane.b32.xlu0 %v3502, 24
        %v3519 = vpop.permute.xlu0 %3518
        %3520 = vrot.lane.b32.xlu0 %v3503, 24
        %v3521 = vpop.permute.xlu0 %3520
        %3522 = vrot.lane.b32.xlu0 %v3504, 24
        %v3523 = vpop.permute.xlu0 %3522
        %3524 = vrot.lane.b32.xlu0 %v3505, 24
        %v3525 = vpop.permute.xlu0 %3524
        %3526 = vrot.lane.b32.xlu0 %v3506, 24
        %v3527 = vpop.permute.xlu0 %3526
        %3528 = vrot.lane.b32.xlu0 %v3507, 24
        %v3529 = vpop.permute.xlu0 %3528
        %3530 = vrot.lane.b32.xlu0 %v3508, 24
        %v3531 = vpop.permute.xlu0 %3530
        %3532 = vrot.lane.b32.xlu0 %v3509, 24
        %v3533 = vpop.permute.xlu0 %3532
        %vm3542 = vcmask 261312
        %3543 = vst.msk [vmem:[#allocation3] sm:$0xff] %vm3542, %v3519
        %3544 = vst.msk [vmem:[#allocation3 + $0x8] sm:$0xff] %vm3542, %v3521
        %3545 = vst.msk [vmem:[#allocation3 + $0x10] sm:$0xff] %vm3542, %v3523
        %3546 = vst.msk [vmem:[#allocation3 + $0x18] sm:$0xff] %vm3542, %v3525
        %3547 = vst.msk [vmem:[#allocation3 + $0x20] sm:$0xff] %vm3542, %v3527
        %3548 = vst.msk [vmem:[#allocation3 + $0x28] sm:$0xff] %vm3542, %v3529
        %3549 = vst.msk [vmem:[#allocation3 + $0x30] sm:$0xff] %vm3542, %v3531
        %3550 = vst.msk [vmem:[#allocation3 + $0x38] sm:$0xff] %vm3542, %v3533
        %v3551 = vld [vmem:[%s706 + $0x1] sm:$0xff]
        %v3552 = vld [vmem:[%s706 + $0x11] sm:$0xff]
        %v3553 = vld [vmem:[%s706 + $0x21] sm:$0xff]
        %v3554 = vld [vmem:[%s706 + $0x31] sm:$0xff]
        %v3555 = vld [vmem:[%s706 + $0x41] sm:$0xff]
        %v3556 = vld [vmem:[%s706 + $0x51] sm:$0xff]
        %v3557 = vld [vmem:[%s706 + $0x61] sm:$0xff]
        %v3558 = vld [vmem:[%s706 + $0x71] sm:$0xff]
        %3567 = vrot.lane.b32.xlu0 %v3551, 32
        %v3568 = vpop.permute.xlu0 %3567
        %3569 = vrot.lane.b32.xlu0 %v3552, 32
        %v3570 = vpop.permute.xlu0 %3569
        %3571 = vrot.lane.b32.xlu0 %v3553, 32
        %v3572 = vpop.permute.xlu0 %3571
        %3573 = vrot.lane.b32.xlu0 %v3554, 32
        %v3574 = vpop.permute.xlu0 %3573
        %3575 = vrot.lane.b32.xlu0 %v3555, 32
        %v3576 = vpop.permute.xlu0 %3575
        %3577 = vrot.lane.b32.xlu0 %v3556, 32
        %v3578 = vpop.permute.xlu0 %3577
        %3579 = vrot.lane.b32.xlu0 %v3557, 32
        %v3580 = vpop.permute.xlu0 %3579
        %3581 = vrot.lane.b32.xlu0 %v3558, 32
        %v3582 = vpop.permute.xlu0 %3581
        %vm3591 = vcmask 326912
        %3592 = vst.msk [vmem:[#allocation3] sm:$0xff] %vm3591, %v3568
        %3593 = vst.msk [vmem:[#allocation3 + $0x8] sm:$0xff] %vm3591, %v3570
        %3594 = vst.msk [vmem:[#allocation3 + $0x10] sm:$0xff] %vm3591, %v3572
        %3595 = vst.msk [vmem:[#allocation3 + $0x18] sm:$0xff] %vm3591, %v3574
        %3596 = vst.msk [vmem:[#allocation3 + $0x20] sm:$0xff] %vm3591, %v3576
        %3597 = vst.msk [vmem:[#allocation3 + $0x28] sm:$0xff] %vm3591, %v3578
        %3598 = vst.msk [vmem:[#allocation3 + $0x30] sm:$0xff] %vm3591, %v3580
        %3599 = vst.msk [vmem:[#allocation3 + $0x38] sm:$0xff] %vm3591, %v3582
        %v3600 = vld [vmem:[%s706 + $0x2] sm:$0xff]
        %v3601 = vld [vmem:[%s706 + $0x12] sm:$0xff]
        %v3602 = vld [vmem:[%s706 + $0x22] sm:$0xff]
        %v3603 = vld [vmem:[%s706 + $0x32] sm:$0xff]
        %v3604 = vld [vmem:[%s706 + $0x42] sm:$0xff]
        %v3605 = vld [vmem:[%s706 + $0x52] sm:$0xff]
        %v3606 = vld [vmem:[%s706 + $0x62] sm:$0xff]
        %v3607 = vld [vmem:[%s706 + $0x72] sm:$0xff]
        %3616 = vrot.lane.b32.xlu0 %v3600, 40
        %v3617 = vpop.permute.xlu0 %3616
        %3618 = vrot.lane.b32.xlu0 %v3601, 40
        %v3619 = vpop.permute.xlu0 %3618
        %3620 = vrot.lane.b32.xlu0 %v3602, 40
        %v3621 = vpop.permute.xlu0 %3620
        %3622 = vrot.lane.b32.xlu0 %v3603, 40
        %v3623 = vpop.permute.xlu0 %3622
        %3624 = vrot.lane.b32.xlu0 %v3604, 40
        %v3625 = vpop.permute.xlu0 %3624
        %3626 = vrot.lane.b32.xlu0 %v3605, 40
        %v3627 = vpop.permute.xlu0 %3626
        %3628 = vrot.lane.b32.xlu0 %v3606, 40
        %v3629 = vpop.permute.xlu0 %3628
        %3630 = vrot.lane.b32.xlu0 %v3607, 40
        %v3631 = vpop.permute.xlu0 %3630
        %vm3640 = vcmask 392512
        %3641 = vst.msk [vmem:[#allocation3] sm:$0xff] %vm3640, %v3617
        %3642 = vst.msk [vmem:[#allocation3 + $0x8] sm:$0xff] %vm3640, %v3619
        %3643 = vst.msk [vmem:[#allocation3 + $0x10] sm:$0xff] %vm3640, %v3621
        %3644 = vst.msk [vmem:[#allocation3 + $0x18] sm:$0xff] %vm3640, %v3623
        %3645 = vst.msk [vmem:[#allocation3 + $0x20] sm:$0xff] %vm3640, %v3625
        %3646 = vst.msk [vmem:[#allocation3 + $0x28] sm:$0xff] %vm3640, %v3627
        %3647 = vst.msk [vmem:[#allocation3 + $0x30] sm:$0xff] %vm3640, %v3629
        %3648 = vst.msk [vmem:[#allocation3 + $0x38] sm:$0xff] %vm3640, %v3631
        %v3649 = vld [vmem:[%s977] sm:$0xff]
        %v3650 = vld [vmem:[%s977 + $0x10] sm:$0xff]
        %v3651 = vld [vmem:[%s977 + $0x20] sm:$0xff]
        %v3652 = vld [vmem:[%s977 + $0x30] sm:$0xff]
        %v3653 = vld [vmem:[%s977 + $0x40] sm:$0xff]
        %v3654 = vld [vmem:[%s977 + $0x50] sm:$0xff]
        %v3655 = vld [vmem:[%s977 + $0x60] sm:$0xff]
        %v3656 = vld [vmem:[%s977 + $0x70] sm:$0xff]
        %3665 = vrot.lane.b32.xlu0 %v3649, 48
        %v3666 = vpop.permute.xlu0 %3665
        %3667 = vrot.lane.b32.xlu0 %v3650, 48
        %v3668 = vpop.permute.xlu0 %3667
        %3669 = vrot.lane.b32.xlu0 %v3651, 48
        %v3670 = vpop.permute.xlu0 %3669
        %3671 = vrot.lane.b32.xlu0 %v3652, 48
        %v3672 = vpop.permute.xlu0 %3671
        %3673 = vrot.lane.b32.xlu0 %v3653, 48
        %v3674 = vpop.permute.xlu0 %3673
        %3675 = vrot.lane.b32.xlu0 %v3654, 48
        %v3676 = vpop.permute.xlu0 %3675
        %3677 = vrot.lane.b32.xlu0 %v3655, 48
        %v3678 = vpop.permute.xlu0 %3677
        %3679 = vrot.lane.b32.xlu0 %v3656, 48
        %v3680 = vpop.permute.xlu0 %3679
        %vm3689 = vcmask 458112
        %3690 = vst.msk [vmem:[#allocation3] sm:$0xff] %vm3689, %v3666
        %3691 = vst.msk [vmem:[#allocation3 + $0x8] sm:$0xff] %vm3689, %v3668
        %3692 = vst.msk [vmem:[#allocation3 + $0x10] sm:$0xff] %vm3689, %v3670
        %3693 = vst.msk [vmem:[#allocation3 + $0x18] sm:$0xff] %vm3689, %v3672
        %3694 = vst.msk [vmem:[#allocation3 + $0x20] sm:$0xff] %vm3689, %v3674
        %3695 = vst.msk [vmem:[#allocation3 + $0x28] sm:$0xff] %vm3689, %v3676
        %3696 = vst.msk [vmem:[#allocation3 + $0x30] sm:$0xff] %vm3689, %v3678
        %3697 = vst.msk [vmem:[#allocation3 + $0x38] sm:$0xff] %vm3689, %v3680
        %v3698 = vld [vmem:[%s977 + $0x1] sm:$0xff]
        %v3699 = vld [vmem:[%s977 + $0x11] sm:$0xff]
        %v3700 = vld [vmem:[%s977 + $0x21] sm:$0xff]
        %v3701 = vld [vmem:[%s977 + $0x31] sm:$0xff]
        %v3702 = vld [vmem:[%s977 + $0x41] sm:$0xff]
        %v3703 = vld [vmem:[%s977 + $0x51] sm:$0xff]
        %v3704 = vld [vmem:[%s977 + $0x61] sm:$0xff]
        %v3705 = vld [vmem:[%s977 + $0x71] sm:$0xff]
        %3714 = vrot.lane.b32.xlu0 %v3698, 56
        %v3715 = vpop.permute.xlu0 %3714
        %3716 = vrot.lane.b32.xlu0 %v3699, 56
        %v3717 = vpop.permute.xlu0 %3716
        %3718 = vrot.lane.b32.xlu0 %v3700, 56
        %v3719 = vpop.permute.xlu0 %3718
        %3720 = vrot.lane.b32.xlu0 %v3701, 56
        %v3721 = vpop.permute.xlu0 %3720
        %3722 = vrot.lane.b32.xlu0 %v3702, 56
        %v3723 = vpop.permute.xlu0 %3722
        %3724 = vrot.lane.b32.xlu0 %v3703, 56
        %v3725 = vpop.permute.xlu0 %3724
        %3726 = vrot.lane.b32.xlu0 %v3704, 56
        %v3727 = vpop.permute.xlu0 %3726
        %3728 = vrot.lane.b32.xlu0 %v3705, 56
        %v3729 = vpop.permute.xlu0 %3728
        %vm3738 = vcmask 523712
        %3739 = vst.msk [vmem:[#allocation3] sm:$0xff] %vm3738, %v3715
        %3740 = vst.msk [vmem:[#allocation3 + $0x8] sm:$0xff] %vm3738, %v3717
        %3741 = vst.msk [vmem:[#allocation3 + $0x10] sm:$0xff] %vm3738, %v3719
        %3742 = vst.msk [vmem:[#allocation3 + $0x18] sm:$0xff] %vm3738, %v3721
        %3743 = vst.msk [vmem:[#allocation3 + $0x20] sm:$0xff] %vm3738, %v3723
        %3744 = vst.msk [vmem:[#allocation3 + $0x28] sm:$0xff] %vm3738, %v3725
        %3745 = vst.msk [vmem:[#allocation3 + $0x30] sm:$0xff] %vm3738, %v3727
        %3746 = vst.msk [vmem:[#allocation3 + $0x38] sm:$0xff] %vm3738, %v3729
        %v3747 = vld [vmem:[%s977 + $0x2] sm:$0xff]
        %v3748 = vld [vmem:[%s977 + $0x12] sm:$0xff]
        %v3749 = vld [vmem:[%s977 + $0x22] sm:$0xff]
        %v3750 = vld [vmem:[%s977 + $0x32] sm:$0xff]
        %v3751 = vld [vmem:[%s977 + $0x42] sm:$0xff]
        %v3752 = vld [vmem:[%s977 + $0x52] sm:$0xff]
        %v3753 = vld [vmem:[%s977 + $0x62] sm:$0xff]
        %v3754 = vld [vmem:[%s977 + $0x72] sm:$0xff]
        %3763 = vrot.lane.b32.xlu0 %v3747, 64
        %v3764 = vpop.permute.xlu0 %3763
        %3765 = vrot.lane.b32.xlu0 %v3748, 64
        %v3766 = vpop.permute.xlu0 %3765
        %3767 = vrot.lane.b32.xlu0 %v3749, 64
        %v3768 = vpop.permute.xlu0 %3767
        %3769 = vrot.lane.b32.xlu0 %v3750, 64
        %v3770 = vpop.permute.xlu0 %3769
        %3771 = vrot.lane.b32.xlu0 %v3751, 64
        %v3772 = vpop.permute.xlu0 %3771
        %3773 = vrot.lane.b32.xlu0 %v3752, 64
        %v3774 = vpop.permute.xlu0 %3773
        %3775 = vrot.lane.b32.xlu0 %v3753, 64
        %v3776 = vpop.permute.xlu0 %3775
        %3777 = vrot.lane.b32.xlu0 %v3754, 64
        %v3778 = vpop.permute.xlu0 %3777
        %vm3787 = vcmask 589312
        %3788 = vst.msk [vmem:[#allocation3] sm:$0xff] %vm3787, %v3764
        %3789 = vst.msk [vmem:[#allocation3 + $0x8] sm:$0xff] %vm3787, %v3766
        %3790 = vst.msk [vmem:[#allocation3 + $0x10] sm:$0xff] %vm3787, %v3768
        %3791 = vst.msk [vmem:[#allocation3 + $0x18] sm:$0xff] %vm3787, %v3770
        %3792 = vst.msk [vmem:[#allocation3 + $0x20] sm:$0xff] %vm3787, %v3772
        %3793 = vst.msk [vmem:[#allocation3 + $0x28] sm:$0xff] %vm3787, %v3774
        %3794 = vst.msk [vmem:[#allocation3 + $0x30] sm:$0xff] %vm3787, %v3776
        %3795 = vst.msk [vmem:[#allocation3 + $0x38] sm:$0xff] %vm3787, %v3778
        %v3796 = vld [vmem:[#allocation3] sm:$0xff]
        %v3797 = vld [vmem:[#allocation3 + $0x8] sm:$0xff]
        %v3798 = vld [vmem:[#allocation3 + $0x10] sm:$0xff]
        %v3799 = vld [vmem:[#allocation3 + $0x18] sm:$0xff]
        %v3800 = vld [vmem:[#allocation3 + $0x20] sm:$0xff]
        %v3801 = vld [vmem:[#allocation3 + $0x28] sm:$0xff]
        %v3802 = vld [vmem:[#allocation3 + $0x30] sm:$0xff]
        %v3803 = vld [vmem:[#allocation3 + $0x38] sm:$0xff]
        %v3804 = vpack.c.bf16 %v3797, %v3796
        %v3805 = vpack.c.bf16 %v3799, %v3798
        %v3806 = vpack.c.bf16 %v3801, %v3800
        %v3807 = vpack.c.bf16 %v3803, %v3802
        %v3808 = vld [vmem:[%s13] sm:$0xf]
        %v3809 = vld [vmem:[%s13 + $0x4] sm:$0xf]
        %v3810 = vld [vmem:[%s13 + $0x8] sm:$0xf]
        %v3811 = vld [vmem:[%s13 + $0xc] sm:$0xf]
        %v3812 = vld [vmem:[%s13 + $0x10] sm:$0xf]
        %v3813 = vld [vmem:[%s13 + $0x14] sm:$0xf]
        %v3814 = vld [vmem:[%s13 + $0x18] sm:$0xf]
        %v3815 = vld [vmem:[%s13 + $0x1c] sm:$0xf]
        %v3816 = vld [vmem:[%s13 + $0x20] sm:$0xf]
        %v3817 = vld [vmem:[%s14] sm:$0x1]
        %v3819 = vlaneseq
        %v3820 = vshrl.u32 %v3819, 7
        %v3821 = vsub.s32 0, %v3820
        %v3822 = vrot.slane %v3817, %v3821
        %v3833 = vunpack.c.l.b16 %v3808
        %v3834 = vunpack.c.l.b16 %v3809
        %v3835 = vunpack.c.l.b16 %v3810
        %v3836 = vunpack.c.l.b16 %v3811
        %v3837 = vunpack.c.l.b16 %v3812
        %v3838 = vunpack.c.l.b16 %v3813
        %v3839 = vunpack.c.l.b16 %v3814
        %v3840 = vunpack.c.l.b16 %v3815
        %v3841 = vunpack.c.l.b16 %v3816
        %v3842 = vpack.c.b16 %v3834, %v3833
        %v3843 = vpack.c.b16 %v3836, %v3835
        %v3844 = vpack.c.b16 %v3838, %v3837
        %v3845 = vpack.c.b16 %v3840, %v3839
        %v3846 = vpack.c.b16 %v3841, %v3841
        %v3852 = vsel %vm592, %v3804, 0
        %v3855 = vsel %vm592, %v3805, 0
        %v3858 = vsel %vm592, %v3806, 0
        %v3861 = vsel %vm592, %v3807, 0
        %v3864 = vsel %vm1192, %v3846, 0
        %3866 = vmatprep.subr.bf16.mxu0 0
        %3867 = vmatpush1.bf16.msra.mxu0 0
        %3868 = vmatprep.subr.bf16.mxu0 0
        %3869 = vmatpush1.bf16.msra.mxu0 0
        %3870 = vmatprep.subr.bf16.mxu0 0
        %3871 = vmatpush1.bf16.msra.mxu0 0
        %3872 = vmatprep.subr.bf16.mxu0 0
        %3873 = vmatpush1.bf16.msra.mxu0 %v3864
        %3874 = vmatprep.subr.bf16.mxu0 0
        %3875 = vmatpush1.bf16.msra.mxu0 %v3845
        %3876 = vmatprep.subr.bf16.mxu0 0
        %3877 = vmatpush1.bf16.msra.mxu0 %v3844
        %3878 = vmatprep.subr.bf16.mxu0 0
        %3879 = vmatpush1.bf16.msra.mxu0 %v3843
        %3880 = vmatprep.subr.bf16.mxu0 0
        %3881 = vmatpush1.bf16.msra.mxu0 %v3842
        %3882 = vmatprep.subr.bf16.mxu0 0
        %3883 = vmatpush2.bf16.msra.mxu0 0
        %3884 = vmatprep.subr.bf16.mxu0 0
        %3885 = vmatpush2.bf16.msra.mxu0 0
        %3886 = vmatprep.subr.bf16.mxu0 0
        %3887 = vmatpush2.bf16.msra.mxu0 0
        %3888 = vmatprep.subr.bf16.mxu0 0
        %3889 = vmatpush2.bf16.msra.mxu0 0
        %3890 = vmatprep.subr.bf16.mxu0 0
        %3891 = vmatpush2.bf16.msra.mxu0 0
        %3892 = vmatprep.subr.bf16.mxu0 0
        %3893 = vmatpush2.bf16.msra.mxu0 0
        %3894 = vmatprep.subr.bf16.mxu0 0
        %3895 = vmatpush2.bf16.msra.mxu0 0
        %3896 = vmatprep.subr.bf16.mxu0 0
        %3897 = vmatpush2.bf16.msra.mxu0 0
        %3898 = vmatprep.mubr.bf16.mxu0 0
        %3899 = vmatmul.mubr.bf16.gmra.mxu0 %v3852
        %v3900 = vpop.f32.mrf.mxu0
        %v3901 = vadd.f32 %v3822, %v3900
        %v3902 = vpop.f32.mrf.mxu0
        %v3903 = vpop.f32.mrf.mxu0
        %v3904 = vadd.f32 %v3822, %v3903
        %v3905 = vpop.f32.mrf.mxu0
        %3906 = vmatprep.mubr.bf16.mxu0 0
        %3907 = vmatmul.mubr.bf16.gmra.mxu0 %v3855
        %v3908 = vpop.f32.mrf.mxu0
        %v3909 = vadd.f32 %v3822, %v3908
        %v3910 = vpop.f32.mrf.mxu0
        %v3911 = vpop.f32.mrf.mxu0
        %v3912 = vadd.f32 %v3822, %v3911
        %v3913 = vpop.f32.mrf.mxu0
        %3914 = vmatprep.mubr.bf16.mxu0 0
        %3915 = vmatmul.mubr.bf16.gmra.mxu0 %v3858
        %v3916 = vpop.f32.mrf.mxu0
        %v3917 = vadd.f32 %v3822, %v3916
        %v3918 = vpop.f32.mrf.mxu0
        %v3919 = vpop.f32.mrf.mxu0
        %v3920 = vadd.f32 %v3822, %v3919
        %v3921 = vpop.f32.mrf.mxu0
        %3922 = vmatprep.mubr.bf16.mxu0 0
        %3923 = vmatmul.mubr.bf16.gmra.mxu0 %v3861
        %v3924 = vpop.f32.mrf.mxu0
        %v3925 = vadd.f32 %v3822, %v3924
        %v3926 = vpop.f32.mrf.mxu0
        %v3927 = vpop.f32.mrf.mxu0
        %v3928 = vadd.f32 %v3822, %v3927
        %v3929 = vpop.f32.mrf.mxu0
        %3930 = vdwg.mxu0
        %v3931 = vsel %vm707, %v3901, 0.0
        %3932 = vadd.xlane.f32.xlu0 %v3931
        %v3933 = vpop.xlane.xlu0 %3932
        %v3934 = vsel %vm707, %v3904, 0.0
        %3935 = vadd.xlane.f32.xlu0 %v3934
        %v3936 = vpop.xlane.xlu0 %3935
        %v3937 = vsel %vm707, %v3909, 0.0
        %3938 = vadd.xlane.f32.xlu0 %v3937
        %v3939 = vpop.xlane.xlu0 %3938
        %v3940 = vsel %vm707, %v3912, 0.0
        %3941 = vadd.xlane.f32.xlu0 %v3940
        %v3942 = vpop.xlane.xlu0 %3941
        %v3943 = vsel %vm707, %v3917, 0.0
        %3944 = vadd.xlane.f32.xlu0 %v3943
        %v3945 = vpop.xlane.xlu0 %3944
        %v3946 = vsel %vm707, %v3920, 0.0
        %3947 = vadd.xlane.f32.xlu0 %v3946
        %v3948 = vpop.xlane.xlu0 %3947
        %v3949 = vsel %vm707, %v3925, 0.0
        %3950 = vadd.xlane.f32.xlu0 %v3949
        %v3951 = vpop.xlane.xlu0 %3950
        %v3952 = vsel %vm707, %v3928, 0.0
        %3953 = vadd.xlane.f32.xlu0 %v3952
        %v3954 = vpop.xlane.xlu0 %3953
        %v3955 = vadd.f32 %v3933, %v3936
        %v3956 = vadd.f32 %v3955, %v3939
        %v3957 = vadd.f32 %v3956, %v3942
        %v3958 = vadd.f32 %v3957, %v3945
        %v3959 = vadd.f32 %v3958, %v3948
        %v3960 = vadd.f32 %v3959, %v3951
        %v3961 = vadd.f32 %v3960, %v3954
        %v3962 = vrot.slane %v3961, 4
        %v3963 = vadd.f32 %v3961, %v3962
        %v3964 = vrot.slane %v3963, 2
        %v3965 = vadd.f32 %v3963, %v3964
        %v3966 = vrot.slane %v3965, 1
        %v3967 = vadd.f32 %v3965, %v3966
        %v3968 = vmul.f32 %v3967, 0.00390625
        %v3969 = vsub.f32 %v3901, %v3968
        %v3970 = vsub.f32 %v3904, %v3968
        %v3971 = vsub.f32 %v3909, %v3968
        %v3972 = vsub.f32 %v3912, %v3968
        %v3973 = vsub.f32 %v3917, %v3968
        %v3974 = vsub.f32 %v3920, %v3968
        %v3975 = vsub.f32 %v3925, %v3968
        %v3976 = vsub.f32 %v3928, %v3968
        %v3977 = vmul.f32 %v3969, %v3969
        %v3978 = vmul.f32 %v3970, %v3970
        %v3979 = vmul.f32 %v3971, %v3971
        %v3980 = vmul.f32 %v3972, %v3972
        %v3981 = vmul.f32 %v3973, %v3973
        %v3982 = vmul.f32 %v3974, %v3974
        %v3983 = vmul.f32 %v3975, %v3975
        %v3984 = vmul.f32 %v3976, %v3976
        %v3985 = vsel %vm707, %v3977, 0.0
        %3986 = vadd.xlane.f32.xlu0 %v3985
        %v3987 = vpop.xlane.xlu0 %3986
        %v3988 = vsel %vm707, %v3978, 0.0
        %3989 = vadd.xlane.f32.xlu0 %v3988
        %v3990 = vpop.xlane.xlu0 %3989
        %v3991 = vsel %vm707, %v3979, 0.0
        %3992 = vadd.xlane.f32.xlu0 %v3991
        %v3993 = vpop.xlane.xlu0 %3992
        %v3994 = vsel %vm707, %v3980, 0.0
        %3995 = vadd.xlane.f32.xlu0 %v3994
        %v3996 = vpop.xlane.xlu0 %3995
        %v3997 = vsel %vm707, %v3981, 0.0
        %3998 = vadd.xlane.f32.xlu0 %v3997
        %v3999 = vpop.xlane.xlu0 %3998
        %v4000 = vsel %vm707, %v3982, 0.0
        %4001 = vadd.xlane.f32.xlu0 %v4000
        %v4002 = vpop.xlane.xlu0 %4001
        %v4003 = vsel %vm707, %v3983, 0.0
        %4004 = vadd.xlane.f32.xlu0 %v4003
        %v4005 = vpop.xlane.xlu0 %4004
        %v4006 = vsel %vm707, %v3984, 0.0
        %4007 = vadd.xlane.f32.xlu0 %v4006
        %v4008 = vpop.xlane.xlu0 %4007
        %v4009 = vadd.f32 %v3987, %v3990
        %v4010 = vadd.f32 %v4009, %v3993
        %v4011 = vadd.f32 %v4010, %v3996
        %v4012 = vadd.f32 %v4011, %v3999
        %v4013 = vadd.f32 %v4012, %v4002
        %v4014 = vadd.f32 %v4013, %v4005
        %v4015 = vadd.f32 %v4014, %v4008
        %v4016 = vrot.slane %v4015, 4
        %v4017 = vadd.f32 %v4015, %v4016
        %v4018 = vrot.slane %v4017, 2
        %v4019 = vadd.f32 %v4017, %v4018
        %v4020 = vrot.slane %v4019, 1
        %v4021 = vadd.f32 %v4019, %v4020
        %v4022 = vmul.f32 %v4021, 0.00390625
        %v4023 = vadd.f32 %v4022, 1e-05
        %v4024 = vrsqrt.pop %v4023
        %4033 = vrot.lane.b32.xlu0 %v3901, 124
        %v4034 = vpop.permute.xlu0 %4033
        %4035 = vrot.lane.b32.xlu0 %v3904, 124
        %v4036 = vpop.permute.xlu0 %4035
        %4037 = vrot.lane.b32.xlu0 %v3909, 124
        %v4038 = vpop.permute.xlu0 %4037
        %4039 = vrot.lane.b32.xlu0 %v3912, 124
        %v4040 = vpop.permute.xlu0 %4039
        %4041 = vrot.lane.b32.xlu0 %v3917, 124
        %v4042 = vpop.permute.xlu0 %4041
        %4043 = vrot.lane.b32.xlu0 %v3920, 124
        %v4044 = vpop.permute.xlu0 %4043
        %4045 = vrot.lane.b32.xlu0 %v3925, 124
        %v4046 = vpop.permute.xlu0 %4045
        %4047 = vrot.lane.b32.xlu0 %v3928, 124
        %v4048 = vpop.permute.xlu0 %4047
        %v4057 = vsel %vm707, %v4034, 0.0
        %4058 = vadd.xlane.f32.xlu0 %v4057
        %v4059 = vpop.xlane.xlu0 %4058
        %v4060 = vsel %vm707, %v4036, 0.0
        %4061 = vadd.xlane.f32.xlu0 %v4060
        %v4062 = vpop.xlane.xlu0 %4061
        %v4063 = vsel %vm707, %v4038, 0.0
        %4064 = vadd.xlane.f32.xlu0 %v4063
        %v4065 = vpop.xlane.xlu0 %4064
        %v4066 = vsel %vm707, %v4040, 0.0
        %4067 = vadd.xlane.f32.xlu0 %v4066
        %v4068 = vpop.xlane.xlu0 %4067
        %v4069 = vsel %vm707, %v4042, 0.0
        %4070 = vadd.xlane.f32.xlu0 %v4069
        %v4071 = vpop.xlane.xlu0 %4070
        %v4072 = vsel %vm707, %v4044, 0.0
        %4073 = vadd.xlane.f32.xlu0 %v4072
        %v4074 = vpop.xlane.xlu0 %4073
        %v4075 = vsel %vm707, %v4046, 0.0
        %4076 = vadd.xlane.f32.xlu0 %v4075
        %v4077 = vpop.xlane.xlu0 %4076
        %v4078 = vsel %vm707, %v4048, 0.0
        %4079 = vadd.xlane.f32.xlu0 %v4078
        %v4080 = vpop.xlane.xlu0 %4079
        %v4081 = vadd.f32 %v4059, %v4062
        %v4082 = vadd.f32 %v4081, %v4065
        %v4083 = vadd.f32 %v4082, %v4068
        %v4084 = vadd.f32 %v4083, %v4071
        %v4085 = vadd.f32 %v4084, %v4074
        %v4086 = vadd.f32 %v4085, %v4077
        %v4087 = vadd.f32 %v4086, %v4080
        %v4088 = vrot.slane %v4087, 4
        %v4089 = vadd.f32 %v4087, %v4088
        %v4090 = vrot.slane %v4089, 2
        %v4091 = vadd.f32 %v4089, %v4090
        %v4092 = vrot.slane %v4091, 1
        %v4093 = vadd.f32 %v4091, %v4092
        %v4094 = vmul.f32 %v4093, 0.00390625
        %v4095 = vsub.f32 %v3901, %v4094
        %v4096 = vsub.f32 %v3904, %v4094
        %v4097 = vsub.f32 %v3909, %v4094
        %v4098 = vsub.f32 %v3912, %v4094
        %v4099 = vsub.f32 %v3917, %v4094
        %v4100 = vsub.f32 %v3920, %v4094
        %v4101 = vsub.f32 %v3925, %v4094
        %v4102 = vsub.f32 %v3928, %v4094
        %v4103 = vmul.f32 %v4095, %v4095
        %v4104 = vmul.f32 %v4096, %v4096
        %v4105 = vmul.f32 %v4097, %v4097
        %v4106 = vmul.f32 %v4098, %v4098
        %v4107 = vmul.f32 %v4099, %v4099
        %v4108 = vmul.f32 %v4100, %v4100
        %v4109 = vmul.f32 %v4101, %v4101
        %v4110 = vmul.f32 %v4102, %v4102
        %4119 = vrot.lane.b32.xlu0 %v4103, 124
        %v4120 = vpop.permute.xlu0 %4119
        %4121 = vrot.lane.b32.xlu0 %v4104, 124
        %v4122 = vpop.permute.xlu0 %4121
        %4123 = vrot.lane.b32.xlu0 %v4105, 124
        %v4124 = vpop.permute.xlu0 %4123
        %4125 = vrot.lane.b32.xlu0 %v4106, 124
        %v4126 = vpop.permute.xlu0 %4125
        %4127 = vrot.lane.b32.xlu0 %v4107, 124
        %v4128 = vpop.permute.xlu0 %4127
        %4129 = vrot.lane.b32.xlu0 %v4108, 124
        %v4130 = vpop.permute.xlu0 %4129
        %4131 = vrot.lane.b32.xlu0 %v4109, 124
        %v4132 = vpop.permute.xlu0 %4131
        %4133 = vrot.lane.b32.xlu0 %v4110, 124
        %v4134 = vpop.permute.xlu0 %4133
        %v4143 = vsel %vm707, %v4120, 0.0
        %4144 = vadd.xlane.f32.xlu0 %v4143
        %v4145 = vpop.xlane.xlu0 %4144
        %v4146 = vsel %vm707, %v4122, 0.0
        %4147 = vadd.xlane.f32.xlu0 %v4146
        %v4148 = vpop.xlane.xlu0 %4147
        %v4149 = vsel %vm707, %v4124, 0.0
        %4150 = vadd.xlane.f32.xlu0 %v4149
        %v4151 = vpop.xlane.xlu0 %4150
        %v4152 = vsel %vm707, %v4126, 0.0
        %4153 = vadd.xlane.f32.xlu0 %v4152
        %v4154 = vpop.xlane.xlu0 %4153
        %v4155 = vsel %vm707, %v4128, 0.0
        %4156 = vadd.xlane.f32.xlu0 %v4155
        %v4157 = vpop.xlane.xlu0 %4156
        %v4158 = vsel %vm707, %v4130, 0.0
        %4159 = vadd.xlane.f32.xlu0 %v4158
        %v4160 = vpop.xlane.xlu0 %4159
        %v4161 = vsel %vm707, %v4132, 0.0
        %4162 = vadd.xlane.f32.xlu0 %v4161
        %v4163 = vpop.xlane.xlu0 %4162
        %v4164 = vsel %vm707, %v4134, 0.0
        %4165 = vadd.xlane.f32.xlu0 %v4164
        %v4166 = vpop.xlane.xlu0 %4165
        %v4167 = vadd.f32 %v4145, %v4148
        %v4168 = vadd.f32 %v4167, %v4151
        %v4169 = vadd.f32 %v4168, %v4154
        %v4170 = vadd.f32 %v4169, %v4157
        %v4171 = vadd.f32 %v4170, %v4160
        %v4172 = vadd.f32 %v4171, %v4163
        %v4173 = vadd.f32 %v4172, %v4166
        %v4174 = vrot.slane %v4173, 4
        %v4175 = vadd.f32 %v4173, %v4174
        %v4176 = vrot.slane %v4175, 2
        %v4177 = vadd.f32 %v4175, %v4176
        %v4178 = vrot.slane %v4177, 1
        %v4179 = vadd.f32 %v4177, %v4178
        %v4180 = vmul.f32 %v4179, 0.00390625
        %v4181 = vadd.f32 %v4180, 1e-05
        %v4182 = vrsqrt.pop %v4181
        %v4183 = vsel %vm3291, %v3968, %v4094
        %v4184 = vsel %vm3291, %v4024, %v4182
        %v4185 = vsub.f32 %v3901, %v4183
        %v4186 = vsub.f32 %v3904, %v4183
        %v4187 = vsub.f32 %v3909, %v4183
        %v4188 = vsub.f32 %v3912, %v4183
        %v4189 = vsub.f32 %v3917, %v4183
        %v4190 = vsub.f32 %v3920, %v4183
        %v4191 = vsub.f32 %v3925, %v4183
        %v4192 = vsub.f32 %v3928, %v4183
        %v4193 = vmul.f32 %v4185, %v4184
        %v4194 = vmul.f32 %v4186, %v4184
        %v4195 = vmul.f32 %v4187, %v4184
        %v4196 = vmul.f32 %v4188, %v4184
        %v4197 = vmul.f32 %v4189, %v4184
        %v4198 = vmul.f32 %v4190, %v4184
        %v4199 = vmul.f32 %v4191, %v4184
        %v4200 = vmul.f32 %v4192, %v4184
        %v4201 = vld [vmem:[%s15] sm:$0x1]
        %v4203 = vlaneseq
        %v4204 = vshrl.u32 %v4203, 7
        %v4205 = vsub.s32 0, %v4204
        %v4206 = vrot.slane %v4201, %v4205
        %v4208 = vmul.f32 %v4193, %v4206
        %v4209 = vmul.f32 %v4194, %v4206
        %v4210 = vmul.f32 %v4195, %v4206
        %v4211 = vmul.f32 %v4196, %v4206
        %v4212 = vmul.f32 %v4197, %v4206
        %v4213 = vmul.f32 %v4198, %v4206
        %v4214 = vmul.f32 %v4199, %v4206
        %v4215 = vmul.f32 %v4200, %v4206
        %v4216 = vld [vmem:[%s16] sm:$0x1]
        %v4218 = vlaneseq
        %v4219 = vshrl.u32 %v4218, 7
        %v4220 = vsub.s32 0, %v4219
        %v4221 = vrot.slane %v4216, %v4220
        %v4223 = vadd.f32 %v4208, %v4221
        %v4224 = vadd.f32 %v4209, %v4221
        %v4225 = vadd.f32 %v4210, %v4221
        %v4226 = vadd.f32 %v4211, %v4221
        %v4227 = vadd.f32 %v4212, %v4221
        %v4228 = vadd.f32 %v4213, %v4221
        %v4229 = vadd.f32 %v4214, %v4221
        %v4230 = vadd.f32 %v4215, %v4221
        %v4231 = vmul.f32 %v4223, 0.5
        %v4232 = vmul.f32 %v4224, 0.5
        %v4233 = vmul.f32 %v4225, 0.5
        %v4234 = vmul.f32 %v4226, 0.5
        %v4235 = vmul.f32 %v4227, 0.5
        %v4236 = vmul.f32 %v4228, 0.5
        %v4237 = vmul.f32 %v4229, 0.5
        %v4238 = vmul.f32 %v4230, 0.5
        %v4239 = vmul.f32 %v4223, 0.70710677
        %v4240 = vmul.f32 %v4224, 0.70710677
        %v4241 = vmul.f32 %v4225, 0.70710677
        %v4242 = vmul.f32 %v4226, 0.70710677
        %v4243 = vmul.f32 %v4227, 0.70710677
        %v4244 = vmul.f32 %v4228, 0.70710677
        %v4245 = vmul.f32 %v4229, 0.70710677
        %v4246 = vmul.f32 %v4230, 0.70710677
        %v4247 = verf.f32.pop %v4239
        %v4248 = verf.f32.pop %v4240
        %v4249 = verf.f32.pop %v4241
        %v4250 = verf.f32.pop %v4242
        %v4251 = verf.f32.pop %v4243
        %v4252 = verf.f32.pop %v4244
        %v4253 = verf.f32.pop %v4245
        %v4254 = verf.f32.pop %v4246
        %v4255 = vadd.f32 %v4247, 1.0
        %v4256 = vadd.f32 %v4248, 1.0
        %v4257 = vadd.f32 %v4249, 1.0
        %v4258 = vadd.f32 %v4250, 1.0
        %v4259 = vadd.f32 %v4251, 1.0
        %v4260 = vadd.f32 %v4252, 1.0
        %v4261 = vadd.f32 %v4253, 1.0
        %v4262 = vadd.f32 %v4254, 1.0
        %v4263 = vmul.f32 %v4231, %v4255
        %v4264 = vmul.f32 %v4232, %v4256
        %v4265 = vmul.f32 %v4233, %v4257
        %v4266 = vmul.f32 %v4234, %v4258
        %v4267 = vmul.f32 %v4235, %v4259
        %v4268 = vmul.f32 %v4236, %v4260
        %v4269 = vmul.f32 %v4237, %v4261
        %v4270 = vmul.f32 %v4238, %v4262
        %4271 = vst.msk [vmem:[%s568] sm:$0xff] %vm570, %v4263
        %4272 = vst.msk [vmem:[%s568 + $0x8] sm:$0xff] %vm570, %v4264
        %4273 = vst.msk [vmem:[%s568 + $0x10] sm:$0xff] %vm570, %v4265
        %4274 = vst.msk [vmem:[%s568 + $0x18] sm:$0xff] %vm570, %v4266
        %4275 = vst.msk [vmem:[%s568 + $0x20] sm:$0xff] %vm570, %v4267
        %4276 = vst.msk [vmem:[%s568 + $0x28] sm:$0xff] %vm570, %v4268
        %4277 = vst.msk [vmem:[%s568 + $0x30] sm:$0xff] %vm570, %v4269
        %4278 = vst.msk [vmem:[%s568 + $0x38] sm:$0xff] %vm570, %v4270
        %p4279 = scmp.lt.s32.totalorder %s31, 1
        %s4280 = scalar_select %p4279, %s31, 1
        %s4281 = smul.addr %s4280, 8
        %s4282 = smul.addr %s4281, 8
        %s4283 = scalar_lea.vmem %s17, %s4282
        // Predicated region
        $region93: #{tpu_custom_call.1} parent=87 // pred_check
          %p4284 = pneg %p411
        $region94: #{tpu_custom_call.1} parent=87 // pred_check_branch
          %4286 = sbr.rel (%p4284) target = $region96
        $region95: #{tpu_custom_call.1} parent=87 // pred_region
          _
        $region96: #{tpu_custom_call.1} parent=87 // pred_fallthru
          _
      $region88: #{tpu_custom_call.1} parent=5 // pred_fallthru
        _
      %p4287 = scmp.le.s32.totalorder 2, %s26
      // Predicated region
      $region97: #{tpu_custom_call.1} parent=5 // pred_check
        %p4288 = pneg %p4287
      $region98: #{tpu_custom_call.1} parent=5 // pred_check_branch
        %4290 = sbr.rel (%p4288) target = $region100
      $region99: #{tpu_custom_call.1} parent=5 // pred_region
        %s4291 = ssub.s32 %s26, 2
        // Predicated region
        $region101: #{tpu_custom_call.1} parent=99 // pred_check
          %p4292 = pneg %p417
        $region102: #{tpu_custom_call.1} parent=99 // pred_check_branch
          %4294 = sbr.rel (%p4292) target = $region104
        $region103: #{tpu_custom_call.1} parent=99 // pred_region
          %p4295 = scmp.lt.s32.totalorder %s32, 1
          %s4296 = scalar_select %p4295, %s32, 1
          %s4297 = smul.addr %s4296, 8
          %s4298 = smul.addr %s4297, 8
          %s4299 = scalar_lea.vmem %s17, %s4298
        $region104: #{tpu_custom_call.1} parent=99 // pred_fallthru
          _
      $region100: #{tpu_custom_call.1} parent=5 // pred_fallthru
        _
    $region6: #{tpu_custom_call.1} parent=1 // loop_footer
      %s30 = sadd.s32 1, %s26
    $region7: #{tpu_custom_call.1} parent=1 // loop_footer_branch
      %25 = sbr.rel target = $region3
    $region8: #{tpu_custom_call.1} parent=1 // loop_exit
      _
    %4300 = vsyncpa [#allocation5], 1
    %s4301 = scalar_lea.sflag [#allocation5], 1
    %4302 = vsyncpa %s4301, 1

</llo_original>
